<compile_context>
chip_gen: v7x
topology: tpu7x:2x2x1
jax: 0.10.0
libtpu: 0.0.40
codegen_flags: <defaults>
</compile_context>

<pallas_src>
import functools

import jax
import jax.numpy as jnp
from jax.experimental import pallas as pl
from jax.experimental.pallas import tpu as pltpu

EPS = 1e-5  # PyTorch nn.LayerNorm default eps


# ---------------------------------------------------------------- kernel utils
def _layernorm(x, w, b):
    mu = jnp.mean(x, axis=-1, keepdims=True)
    xc = x - mu
    var = jnp.mean(xc * xc, axis=-1, keepdims=True)
    return xc * jax.lax.rsqrt(var + EPS) * w + b


def _softmax(x):
    # max-subtracted softmax, exact divide (bit-closer to the torch reference)
    m = jnp.max(x, axis=-1, keepdims=True)
    e = jnp.exp(x - m)
    return e / jnp.sum(e, axis=-1, keepdims=True)


# -------------------------------------------------------------- fused kernel
def fused_forward_kernel(
    x_ref, pw_ref, pb_ref,
    ln1w_ref, ln1b_ref, wqkv_ref, wproj_ref, bproj_ref,
    ln2w_ref, ln2b_ref, w1_ref, b1_ref, w2_ref, b2_ref,
    lnpw_ref, lnpb_ref, wlog_ref, blog_ref,
    o_ref,
    *, n_layer, n_head, head_dim,
):
    Bt, S, E = x_ref.shape
    H = n_head * head_dim
    R = Bt * S  # activation rows processed this grid step

    # projection_embed over all Bt*S rows at once (fills the MXU M dimension)
    x = (
        jnp.dot(x_ref[...].reshape(R, E), pw_ref[...],
                preferred_element_type=jnp.float32)
        + pb_ref[...]
    )  # (R, D)
    D = x.shape[-1]

    for l in range(n_layer):  # static unroll over layers
        # --- multi-head self-attention branch (pre-LN) ---
        h = _layernorm(x, ln1w_ref[l], ln1b_ref[l])                      # (R, D)
        # ONE fused qkv matmul; 1/sqrt(head_dim) folded into the Q columns.
        qkv = jnp.dot(h, wqkv_ref[l], preferred_element_type=jnp.float32)  # (R, 3H)
        qkv = qkv.reshape(Bt, S, 3 * H)
        heads = []
        for hh in range(n_head):  # head split = static lane slices (XLU-cheap)
            qh = qkv[:, :, hh * head_dim:(hh + 1) * head_dim]            # (Bt,S,hd)
            kh = qkv[:, :, H + hh * head_dim:H + (hh + 1) * head_dim]
            vh = qkv[:, :, 2 * H + hh * head_dim:2 * H + (hh + 1) * head_dim]
            att = jnp.einsum("bqe,bke->bqk", qh, kh,
                             preferred_element_type=jnp.float32)          # (Bt,S,S)
            p = _softmax(att)
            heads.append(jnp.einsum("bqk,bke->bqe", p, vh,
                                    preferred_element_type=jnp.float32))  # (Bt,S,hd)
        o = jnp.concatenate(heads, axis=-1).reshape(R, H)                 # (R, H)
        # ONE fused output projection
        x = x + jnp.dot(o, wproj_ref[l],
                        preferred_element_type=jnp.float32) + bproj_ref[l]

        # --- feed-forward branch (pre-LN) ---
        h2 = _layernorm(x, ln2w_ref[l], ln2b_ref[l])
        f = jnp.dot(h2, w1_ref[l], preferred_element_type=jnp.float32) + b1_ref[l]
        f = jnp.maximum(f, 0.0)
        f = jnp.dot(f, w2_ref[l], preferred_element_type=jnp.float32) + b2_ref[l]
        x = x + f

    # --- PredictLogit head: LN -> mean over sequence -> Linear (mean commutes) ---
    h = _layernorm(x, lnpw_ref[...], lnpb_ref[...])                       # (R, D)
    hbar = jnp.mean(h.reshape(Bt, S, D), axis=1)                          # (Bt, D)
    o_ref[...] = (
        jnp.dot(hbar, wlog_ref[...], preferred_element_type=jnp.float32)
        + blog_ref[...]
    )  # (Bt, P_pad) lane-dense


# ------------------------------------------------------------------ wrapper
def _rep_spec(a):
    nd = a.ndim
    return pl.BlockSpec(a.shape, lambda b, _n=nd: (0,) * _n)


def _round_up(v, m):
    return (v + m - 1) // m * m


def _vmem_bytes(a):
    """Rough padded-VMEM footprint of one array ((8,128) tile padding)."""
    s = a.shape
    item = jnp.dtype(a.dtype).itemsize
    if len(s) == 0:
        return 8 * 128 * item
    if len(s) == 1:
        return 8 * _round_up(s[0], 128) * item
    lead = 1
    for d in s[:-2]:
        lead *= d
    return lead * _round_up(s[-2], 8) * _round_up(s[-1], 128) * item


def _choose_batch_tile(B, S, target_rows=256):
    """Bt batch elements per grid step; aim for Bt*S >= target rows while keeping
    an even grid extent >= 2 so both v7x TensorCores get equal work."""
    bt = min(B, max(1, target_rows // max(S, 1)))
    if B >= 2:
        while bt > 1 and (pl.cdiv(B, bt) < 2 or pl.cdiv(B, bt) % 2 != 0):
            bt -= 1
    return bt


def phenotype_encoding_forward(ids, params, *, n_head, head_dim):
    B, S = ids.shape
    # embedding lookup (glue, outside the kernel)
    x = jnp.take(params["emb"], ids, axis=0).astype(jnp.float32)  # (B, S, E)
    E = x.shape[-1]
    D = params["proj_w"].shape[1]
    H = n_head * head_dim
    n_layer = len(params["layers"])
    scale = 1.0 / (head_dim ** 0.5)

    # -------- trace-time weight stacking (original layouts kept; scale folded) ----
    layers = params["layers"]
    wqkv = jnp.stack([
        jnp.concatenate([lp["wqkv"][:, :H] * scale, lp["wqkv"][:, H:]], axis=1)
        for lp in layers])                                   # (L, D, 3H)
    wproj = jnp.stack([lp["wproj"] for lp in layers])        # (L, H, D)
    ln1w = jnp.stack([lp["ln1w"] for lp in layers])          # (L, 1, D)
    ln1b = jnp.stack([lp["ln1b"] for lp in layers])
    bproj = jnp.stack([lp["bproj"] for lp in layers])
    ln2w = jnp.stack([lp["ln2w"] for lp in layers])
    ln2b = jnp.stack([lp["ln2b"] for lp in layers])
    w1 = jnp.stack([lp["w1"] for lp in layers])              # (L, D, 4D)
    b1 = jnp.stack([lp["b1"] for lp in layers])              # (L, 1, 4D)
    w2 = jnp.stack([lp["w2"] for lp in layers])              # (L, 4D, D)
    b2 = jnp.stack([lp["b2"] for lp in layers])              # (L, 1, D)
    # TODO(synk): cast the large stacks (wqkv, wproj, w1, w2, wlog) to bf16 at
    # production D (keep LN/softmax math f32); noise at these toy shapes.

    # lane-dense head output: pad P up to a multiple of 128 lanes
    P = params["wlog"].shape[1]
    P_pad = _round_up(P, 128)
    wlog_pad = jnp.zeros((D, P_pad), jnp.float32).at[:, :P].set(params["wlog"])
    blog_pad = jnp.zeros((1, P_pad), jnp.float32).at[:, :P].set(params["blog"])

    # -------- batch tiling --------
    Bt = _choose_batch_tile(B, S)
    G = pl.cdiv(B, Bt)
    B_pad = G * Bt
    if B_pad != B:
        x = jnp.pad(x, ((0, B_pad - B), (0, 0), (0, 0)))

    args = [
        x, params["proj_w"], params["proj_b"],
        ln1w, ln1b, wqkv, wproj, bproj,
        ln2w, ln2b, w1, b1, w2, b2,
        params["lnp_w"], params["lnp_b"], wlog_pad, blog_pad,
    ]
    in_specs = [pl.BlockSpec((Bt, S, E), lambda b: (b, 0, 0))] + [
        _rep_spec(a) for a in args[1:]
    ]

    # scoped-VMEM budget from the padded footprint (x2 for default double
    # buffering) plus activation headroom; clamped to a safe range.
    vmem_need = 2 * sum(_vmem_bytes(a) for a in args) + 8 * (1 << 20)
    vmem_limit = int(min(100 * (1 << 20), max(32 * (1 << 20), vmem_need)))

    kern = functools.partial(fused_forward_kernel, n_layer=n_layer,
                             n_head=n_head, head_dim=head_dim)
    out = pl.pallas_call(
        kern,
        out_shape=jax.ShapeDtypeStruct((G, Bt, P_pad), jnp.float32),
        grid=(G,),
        in_specs=in_specs,
        out_specs=pl.BlockSpec((None, Bt, P_pad), lambda b: (b, 0, 0)),
        compiler_params=pltpu.CompilerParams(
            dimension_semantics=("parallel",),
            vmem_limit_bytes=vmem_limit),
    )(*args)
    return out.reshape(B_pad, P_pad)[:B, :P]  # (B, nb_phenos_possible - 1)


# ---------------------------------------------------------- pure-JAX reference
def reference_forward(ids, params, *, n_head, head_dim):
    def ln(x, w, b):
        mu = x.mean(-1, keepdims=True)
        var = ((x - mu) ** 2).mean(-1, keepdims=True)
        return (x - mu) / jnp.sqrt(var + EPS) * w[0] + b[0]

    x = params["emb"][ids]
    x = x @ params["proj_w"] + params["proj_b"][0]
    B, S, D = x.shape
    H = n_head * head_dim
    for lp in params["layers"]:
        h = ln(x, lp["ln1w"], lp["ln1b"])
        qkv = h @ lp["wqkv"]
        q, k, v = qkv[..., :H], qkv[..., H:2 * H], qkv[..., 2 * H:]
        q = q.reshape(B, S, n_head, head_dim).transpose(0, 2, 1, 3)
        k = k.reshape(B, S, n_head, head_dim).transpose(0, 2, 1, 3)
        v = v.reshape(B, S, n_head, head_dim).transpose(0, 2, 1, 3)
        att = jnp.einsum("bhqd,bhkd->bhqk", q, k) / jnp.sqrt(float(head_dim))
        p = jax.nn.softmax(att, axis=-1)
        o = jnp.einsum("bhqk,bhkd->bhqd", p, v).transpose(0, 2, 1, 3).reshape(B, S, H)
        x = x + (o @ lp["wproj"] + lp["bproj"][0])
        h2 = ln(x, lp["ln2w"], lp["ln2b"])
        f = jnp.maximum(h2 @ lp["w1"] + lp["b1"][0], 0.0) @ lp["w2"] + lp["b2"][0]
        x = x + f
    h = ln(x, params["lnp_w"], params["lnp_b"])
    logits = h @ params["wlog"] + params["blog"][0]
    return logits.mean(axis=1)


# ------------------------------------------------------------------ __main__
if __name__ == "__main__":
    # Small shapes consistent with the module
    B, S = 2, 8
    vocab = 20
    E = 16                 # Embedding size
    D = 32                 # instance_size
    Head_size = 32
    n_head = 4
    head_dim = Head_size // n_head
    n_layer = 2
    nb_phenos_possible = 6
    P = nb_phenos_possible - 1

    key = jax.random.PRNGKey(0)
    ks = iter(jax.random.split(key, 64))
    std = 0.02  # _init_weights: Linear weights ~ N(0, 0.02), biases = 0

    def lin_w(shape):
        return std * jax.random.normal(next(ks), shape, dtype=jnp.float32)

    layers = []
    for _ in range(n_layer):
        layers.append(dict(
            ln1w=jnp.ones((1, D), jnp.float32), ln1b=jnp.zeros((1, D), jnp.float32),
            wqkv=lin_w((D, 3 * Head_size)),
            wproj=lin_w((Head_size, D)), bproj=jnp.zeros((1, D), jnp.float32),
            ln2w=jnp.ones((1, D), jnp.float32), ln2b=jnp.zeros((1, D), jnp.float32),
            w1=lin_w((D, 4 * D)), b1=jnp.zeros((1, 4 * D), jnp.float32),
            w2=lin_w((4 * D, D)), b2=jnp.zeros((1, D), jnp.float32),
        ))

    params = dict(
        emb=jax.random.normal(next(ks), (vocab, E), dtype=jnp.float32),
        proj_w=lin_w((E, D)), proj_b=jnp.zeros((1, D), jnp.float32),
        layers=layers,
        lnp_w=jnp.ones((1, D), jnp.float32), lnp_b=jnp.zeros((1, D), jnp.float32),
        wlog=lin_w((D, P)), blog=jnp.zeros((1, P), jnp.float32),
    )

    ids = jax.random.randint(next(ks), (B, S), 0, vocab, dtype=jnp.int32)

    logits = phenotype_encoding_forward(ids, params, n_head=n_head, head_dim=head_dim)
    logits = jax.block_until_ready(logits)

    ref = reference_forward(ids, params, n_head=n_head, head_dim=head_dim)
    assert logits.shape == (B, P)
    # small tolerance for f32 reassociation (scale folded into Q, mean-before-matmul)
    assert jnp.allclose(logits, ref, atol=1e-3, rtol=1e-3), (logits, ref)

    print("KERNEL_OK")
</pallas_src>

<mosaic_0001>
module attributes {stable_mosaic.version = 11 : i64} {
  func.func @fused_forward_kernel(%arg0: i32, %arg1: memref<1x8x16xf32, #tpu.memory_space<vmem>>, %arg2: memref<16x32xf32, #tpu.memory_space<vmem>>, %arg3: memref<1x32xf32, #tpu.memory_space<vmem>>, %arg4: memref<2x1x32xf32, #tpu.memory_space<vmem>>, %arg5: memref<2x1x32xf32, #tpu.memory_space<vmem>>, %arg6: memref<2x32x96xf32, #tpu.memory_space<vmem>>, %arg7: memref<2x32x32xf32, #tpu.memory_space<vmem>>, %arg8: memref<2x1x32xf32, #tpu.memory_space<vmem>>, %arg9: memref<2x1x32xf32, #tpu.memory_space<vmem>>, %arg10: memref<2x1x32xf32, #tpu.memory_space<vmem>>, %arg11: memref<2x32x128xf32, #tpu.memory_space<vmem>>, %arg12: memref<2x1x128xf32, #tpu.memory_space<vmem>>, %arg13: memref<2x128x32xf32, #tpu.memory_space<vmem>>, %arg14: memref<2x1x32xf32, #tpu.memory_space<vmem>>, %arg15: memref<1x32xf32, #tpu.memory_space<vmem>>, %arg16: memref<1x32xf32, #tpu.memory_space<vmem>>, %arg17: memref<32x128xf32, #tpu.memory_space<vmem>>, %arg18: memref<1x128xf32, #tpu.memory_space<vmem>>, %arg19: memref<1x1x128xf32, #tpu.memory_space<vmem>>) attributes {dimension_semantics = [#tpu.dimension_semantics<parallel>], iteration_bounds = array<i64: 2>, scalar_prefetch = 0 : i64, scratch_operands = 0 : i64, tpu.core_type = #tpu.core_type<tc>, window_params = [{transform_indices = @transform_0, window_bounds = array<i64: 1, 8, 16>}, {pipeline_mode = #tpu.pipeline_mode<synchronous>, transform_indices = @transform_1, window_bounds = array<i64: 16, 32>}, {pipeline_mode = #tpu.pipeline_mode<synchronous>, transform_indices = @transform_2, window_bounds = array<i64: 1, 32>}, {pipeline_mode = #tpu.pipeline_mode<synchronous>, transform_indices = @transform_3, window_bounds = array<i64: 2, 1, 32>}, {pipeline_mode = #tpu.pipeline_mode<synchronous>, transform_indices = @transform_4, window_bounds = array<i64: 2, 1, 32>}, {pipeline_mode = #tpu.pipeline_mode<synchronous>, transform_indices = @transform_5, window_bounds = array<i64: 2, 32, 96>}, {pipeline_mode = #tpu.pipeline_mode<synchronous>, transform_indices = @transform_6, window_bounds = array<i64: 2, 32, 32>}, {pipeline_mode = #tpu.pipeline_mode<synchronous>, transform_indices = @transform_7, window_bounds = array<i64: 2, 1, 32>}, {pipeline_mode = #tpu.pipeline_mode<synchronous>, transform_indices = @transform_8, window_bounds = array<i64: 2, 1, 32>}, {pipeline_mode = #tpu.pipeline_mode<synchronous>, transform_indices = @transform_9, window_bounds = array<i64: 2, 1, 32>}, {pipeline_mode = #tpu.pipeline_mode<synchronous>, transform_indices = @transform_10, window_bounds = array<i64: 2, 32, 128>}, {pipeline_mode = #tpu.pipeline_mode<synchronous>, transform_indices = @transform_11, window_bounds = array<i64: 2, 1, 128>}, {pipeline_mode = #tpu.pipeline_mode<synchronous>, transform_indices = @transform_12, window_bounds = array<i64: 2, 128, 32>}, {pipeline_mode = #tpu.pipeline_mode<synchronous>, transform_indices = @transform_13, window_bounds = array<i64: 2, 1, 32>}, {pipeline_mode = #tpu.pipeline_mode<synchronous>, transform_indices = @transform_14, window_bounds = array<i64: 1, 32>}, {pipeline_mode = #tpu.pipeline_mode<synchronous>, transform_indices = @transform_15, window_bounds = array<i64: 1, 32>}, {pipeline_mode = #tpu.pipeline_mode<synchronous>, transform_indices = @transform_16, window_bounds = array<i64: 32, 128>}, {pipeline_mode = #tpu.pipeline_mode<synchronous>, transform_indices = @transform_17, window_bounds = array<i64: 1, 128>}, {transform_indices = @transform_18, window_bounds = array<i64: 1, 1, 128>}]} {
    %c0 = arith.constant 0 : index
    %c0_0 = arith.constant 0 : index
    %c0_1 = arith.constant 0 : index
    %0 = vector.load %arg1[%c0, %c0_0, %c0_1] : memref<1x8x16xf32, #tpu.memory_space<vmem>>, vector<1x8x16xf32>
    %1 = vector.shape_cast %0 : vector<1x8x16xf32> to vector<8x16xf32>
    %c0_2 = arith.constant 0 : index
    %c0_3 = arith.constant 0 : index
    %2 = vector.load %arg2[%c0_2, %c0_3] : memref<16x32xf32, #tpu.memory_space<vmem>>, vector<16x32xf32>
    %cst = arith.constant dense<0.000000e+00> : vector<8x32xf32>
    %3 = tpu.matmul %1, %2, %cst {dimension_numbers = #tpu.dot_dimension_numbers<[1], [0], [0], [1], [0, 0, 1, 1], [], []>} : vector<8x16xf32>, vector<16x32xf32>, vector<8x32xf32> -> vector<8x32xf32>
    %c0_4 = arith.constant 0 : index
    %c0_5 = arith.constant 0 : index
    %4 = vector.load %arg3[%c0_4, %c0_5] : memref<1x32xf32, #tpu.memory_space<vmem>>, vector<1x32xf32>
    %5 = vector.broadcast %4 : vector<1x32xf32> to vector<8x32xf32>
    %6 = arith.addf %3, %5 : vector<8x32xf32>
    %c0_6 = arith.constant 0 : index
    %c0_7 = arith.constant 0 : index
    %c0_8 = arith.constant 0 : index
    %7 = vector.load %arg4[%c0_6, %c0_7, %c0_8] : memref<2x1x32xf32, #tpu.memory_space<vmem>>, vector<1x1x32xf32>
    %8 = vector.shape_cast %7 : vector<1x1x32xf32> to vector<1x32xf32>
    %c0_9 = arith.constant 0 : index
    %c0_10 = arith.constant 0 : index
    %c0_11 = arith.constant 0 : index
    %9 = vector.load %arg5[%c0_9, %c0_10, %c0_11] : memref<2x1x32xf32, #tpu.memory_space<vmem>>, vector<1x1x32xf32>
    %10 = vector.shape_cast %9 : vector<1x1x32xf32> to vector<1x32xf32>
    %cst_12 = arith.constant dense<0.000000e+00> : vector<8xf32>
    %11 = vector.multi_reduction <add>, %6, %cst_12 [1] : vector<8x32xf32> to vector<8xf32>
    %12 = vector.shape_cast %11 : vector<8xf32> to vector<8x1xf32>
    %cst_13 = arith.constant 3.200000e+01 : f32
    %13 = vector.broadcast %cst_13 : f32 to vector<8x1xf32>
    %14 = arith.divf %12, %13 : vector<8x1xf32>
    %15 = vector.broadcast %14 : vector<8x1xf32> to vector<8x32xf32>
    %16 = arith.subf %6, %15 : vector<8x32xf32>
    %17 = arith.mulf %16, %16 : vector<8x32xf32>
    %cst_14 = arith.constant dense<0.000000e+00> : vector<8xf32>
    %18 = vector.multi_reduction <add>, %17, %cst_14 [1] : vector<8x32xf32> to vector<8xf32>
    %19 = vector.shape_cast %18 : vector<8xf32> to vector<8x1xf32>
    %cst_15 = arith.constant 3.200000e+01 : f32
    %20 = vector.broadcast %cst_15 : f32 to vector<8x1xf32>
    %21 = arith.divf %19, %20 : vector<8x1xf32>
    %cst_16 = arith.constant 9.99999974E-6 : f32
    %22 = vector.broadcast %cst_16 : f32 to vector<8x1xf32>
    %23 = arith.addf %21, %22 : vector<8x1xf32>
    %24 = math.rsqrt %23 : vector<8x1xf32>
    %25 = vector.broadcast %24 : vector<8x1xf32> to vector<8x32xf32>
    %26 = arith.mulf %16, %25 : vector<8x32xf32>
    %27 = vector.broadcast %8 : vector<1x32xf32> to vector<8x32xf32>
    %28 = arith.mulf %26, %27 : vector<8x32xf32>
    %29 = vector.broadcast %10 : vector<1x32xf32> to vector<8x32xf32>
    %30 = arith.addf %28, %29 : vector<8x32xf32>
    %c0_17 = arith.constant 0 : index
    %c0_18 = arith.constant 0 : index
    %c0_19 = arith.constant 0 : index
    %31 = vector.load %arg6[%c0_17, %c0_18, %c0_19] : memref<2x32x96xf32, #tpu.memory_space<vmem>>, vector<1x32x96xf32>
    %32 = vector.shape_cast %31 : vector<1x32x96xf32> to vector<32x96xf32>
    %cst_20 = arith.constant dense<0.000000e+00> : vector<8x96xf32>
    %33 = tpu.matmul %30, %32, %cst_20 {dimension_numbers = #tpu.dot_dimension_numbers<[1], [0], [0], [1], [0, 0, 1, 1], [], []>} : vector<8x32xf32>, vector<32x96xf32>, vector<8x96xf32> -> vector<8x96xf32>
    %34 = vector.shape_cast %33 : vector<8x96xf32> to vector<1x8x96xf32>
    %35 = vector.extract_strided_slice %34 {offsets = [0, 0, 0], sizes = [1, 8, 8], strides = [1, 1, 1]} : vector<1x8x96xf32> to vector<1x8x8xf32>
    %36 = vector.extract_strided_slice %34 {offsets = [0, 0, 32], sizes = [1, 8, 8], strides = [1, 1, 1]} : vector<1x8x96xf32> to vector<1x8x8xf32>
    %37 = vector.extract_strided_slice %34 {offsets = [0, 0, 64], sizes = [1, 8, 8], strides = [1, 1, 1]} : vector<1x8x96xf32> to vector<1x8x8xf32>
    "tpu.trace_start"() <{level = 10 : i32, message = "bqe,bke->bqk"}> : () -> ()
    %cst_21 = arith.constant dense<0.000000e+00> : vector<1x8x8xf32>
    %38 = tpu.matmul %35, %36, %cst_21 {dimension_numbers = #tpu.dot_dimension_numbers<[2], [2], [1], [1], [0, 0, 0, 1, 1, 1], [0], [0]>} : vector<1x8x8xf32>, vector<1x8x8xf32>, vector<1x8x8xf32> -> vector<1x8x8xf32>
    "tpu.trace_stop"() : () -> ()
    %cst_22 = arith.constant dense<0xFF800000> : vector<1x8xf32>
    %39 = vector.multi_reduction <maximumf>, %38, %cst_22 [2] : vector<1x8x8xf32> to vector<1x8xf32>
    %40 = vector.shape_cast %39 : vector<1x8xf32> to vector<1x8x1xf32>
    %41 = vector.broadcast %40 : vector<1x8x1xf32> to vector<1x8x8xf32>
    %42 = arith.subf %38, %41 : vector<1x8x8xf32>
    %43 = math.exp %42 : vector<1x8x8xf32>
    %cst_23 = arith.constant dense<0.000000e+00> : vector<1x8xf32>
    %44 = vector.multi_reduction <add>, %43, %cst_23 [2] : vector<1x8x8xf32> to vector<1x8xf32>
    %45 = vector.shape_cast %44 : vector<1x8xf32> to vector<1x8x1xf32>
    %46 = vector.broadcast %45 : vector<1x8x1xf32> to vector<1x8x8xf32>
    %47 = arith.divf %43, %46 : vector<1x8x8xf32>
    "tpu.trace_start"() <{level = 10 : i32, message = "bqk,bke->bqe"}> : () -> ()
    %cst_24 = arith.constant dense<0.000000e+00> : vector<1x8x8xf32>
    %48 = tpu.matmul %47, %37, %cst_24 {dimension_numbers = #tpu.dot_dimension_numbers<[2], [1], [1], [2], [0, 0, 0, 1, 1, 2], [0], [0]>} : vector<1x8x8xf32>, vector<1x8x8xf32>, vector<1x8x8xf32> -> vector<1x8x8xf32>
    "tpu.trace_stop"() : () -> ()
    %49 = vector.extract_strided_slice %34 {offsets = [0, 0, 8], sizes = [1, 8, 8], strides = [1, 1, 1]} : vector<1x8x96xf32> to vector<1x8x8xf32>
    %50 = vector.extract_strided_slice %34 {offsets = [0, 0, 40], sizes = [1, 8, 8], strides = [1, 1, 1]} : vector<1x8x96xf32> to vector<1x8x8xf32>
    %51 = vector.extract_strided_slice %34 {offsets = [0, 0, 72], sizes = [1, 8, 8], strides = [1, 1, 1]} : vector<1x8x96xf32> to vector<1x8x8xf32>
    "tpu.trace_start"() <{level = 10 : i32, message = "bqe,bke->bqk"}> : () -> ()
    %cst_25 = arith.constant dense<0.000000e+00> : vector<1x8x8xf32>
    %52 = tpu.matmul %49, %50, %cst_25 {dimension_numbers = #tpu.dot_dimension_numbers<[2], [2], [1], [1], [0, 0, 0, 1, 1, 1], [0], [0]>} : vector<1x8x8xf32>, vector<1x8x8xf32>, vector<1x8x8xf32> -> vector<1x8x8xf32>
    "tpu.trace_stop"() : () -> ()
    %cst_26 = arith.constant dense<0xFF800000> : vector<1x8xf32>
    %53 = vector.multi_reduction <maximumf>, %52, %cst_26 [2] : vector<1x8x8xf32> to vector<1x8xf32>
    %54 = vector.shape_cast %53 : vector<1x8xf32> to vector<1x8x1xf32>
    %55 = vector.broadcast %54 : vector<1x8x1xf32> to vector<1x8x8xf32>
    %56 = arith.subf %52, %55 : vector<1x8x8xf32>
    %57 = math.exp %56 : vector<1x8x8xf32>
    %cst_27 = arith.constant dense<0.000000e+00> : vector<1x8xf32>
    %58 = vector.multi_reduction <add>, %57, %cst_27 [2] : vector<1x8x8xf32> to vector<1x8xf32>
    %59 = vector.shape_cast %58 : vector<1x8xf32> to vector<1x8x1xf32>
    %60 = vector.broadcast %59 : vector<1x8x1xf32> to vector<1x8x8xf32>
    %61 = arith.divf %57, %60 : vector<1x8x8xf32>
    "tpu.trace_start"() <{level = 10 : i32, message = "bqk,bke->bqe"}> : () -> ()
    %cst_28 = arith.constant dense<0.000000e+00> : vector<1x8x8xf32>
    %62 = tpu.matmul %61, %51, %cst_28 {dimension_numbers = #tpu.dot_dimension_numbers<[2], [1], [1], [2], [0, 0, 0, 1, 1, 2], [0], [0]>} : vector<1x8x8xf32>, vector<1x8x8xf32>, vector<1x8x8xf32> -> vector<1x8x8xf32>
    "tpu.trace_stop"() : () -> ()
    %63 = vector.extract_strided_slice %34 {offsets = [0, 0, 16], sizes = [1, 8, 8], strides = [1, 1, 1]} : vector<1x8x96xf32> to vector<1x8x8xf32>
    %64 = vector.extract_strided_slice %34 {offsets = [0, 0, 48], sizes = [1, 8, 8], strides = [1, 1, 1]} : vector<1x8x96xf32> to vector<1x8x8xf32>
    %65 = vector.extract_strided_slice %34 {offsets = [0, 0, 80], sizes = [1, 8, 8], strides = [1, 1, 1]} : vector<1x8x96xf32> to vector<1x8x8xf32>
    "tpu.trace_start"() <{level = 10 : i32, message = "bqe,bke->bqk"}> : () -> ()
    %cst_29 = arith.constant dense<0.000000e+00> : vector<1x8x8xf32>
    %66 = tpu.matmul %63, %64, %cst_29 {dimension_numbers = #tpu.dot_dimension_numbers<[2], [2], [1], [1], [0, 0, 0, 1, 1, 1], [0], [0]>} : vector<1x8x8xf32>, vector<1x8x8xf32>, vector<1x8x8xf32> -> vector<1x8x8xf32>
    "tpu.trace_stop"() : () -> ()
    %cst_30 = arith.constant dense<0xFF800000> : vector<1x8xf32>
    %67 = vector.multi_reduction <maximumf>, %66, %cst_30 [2] : vector<1x8x8xf32> to vector<1x8xf32>
    %68 = vector.shape_cast %67 : vector<1x8xf32> to vector<1x8x1xf32>
    %69 = vector.broadcast %68 : vector<1x8x1xf32> to vector<1x8x8xf32>
    %70 = arith.subf %66, %69 : vector<1x8x8xf32>
    %71 = math.exp %70 : vector<1x8x8xf32>
    %cst_31 = arith.constant dense<0.000000e+00> : vector<1x8xf32>
    %72 = vector.multi_reduction <add>, %71, %cst_31 [2] : vector<1x8x8xf32> to vector<1x8xf32>
    %73 = vector.shape_cast %72 : vector<1x8xf32> to vector<1x8x1xf32>
    %74 = vector.broadcast %73 : vector<1x8x1xf32> to vector<1x8x8xf32>
    %75 = arith.divf %71, %74 : vector<1x8x8xf32>
    "tpu.trace_start"() <{level = 10 : i32, message = "bqk,bke->bqe"}> : () -> ()
    %cst_32 = arith.constant dense<0.000000e+00> : vector<1x8x8xf32>
    %76 = tpu.matmul %75, %65, %cst_32 {dimension_numbers = #tpu.dot_dimension_numbers<[2], [1], [1], [2], [0, 0, 0, 1, 1, 2], [0], [0]>} : vector<1x8x8xf32>, vector<1x8x8xf32>, vector<1x8x8xf32> -> vector<1x8x8xf32>
    "tpu.trace_stop"() : () -> ()
    %77 = vector.extract_strided_slice %34 {offsets = [0, 0, 24], sizes = [1, 8, 8], strides = [1, 1, 1]} : vector<1x8x96xf32> to vector<1x8x8xf32>
    %78 = vector.extract_strided_slice %34 {offsets = [0, 0, 56], sizes = [1, 8, 8], strides = [1, 1, 1]} : vector<1x8x96xf32> to vector<1x8x8xf32>
    %79 = vector.extract_strided_slice %34 {offsets = [0, 0, 88], sizes = [1, 8, 8], strides = [1, 1, 1]} : vector<1x8x96xf32> to vector<1x8x8xf32>
    "tpu.trace_start"() <{level = 10 : i32, message = "bqe,bke->bqk"}> : () -> ()
    %cst_33 = arith.constant dense<0.000000e+00> : vector<1x8x8xf32>
    %80 = tpu.matmul %77, %78, %cst_33 {dimension_numbers = #tpu.dot_dimension_numbers<[2], [2], [1], [1], [0, 0, 0, 1, 1, 1], [0], [0]>} : vector<1x8x8xf32>, vector<1x8x8xf32>, vector<1x8x8xf32> -> vector<1x8x8xf32>
    "tpu.trace_stop"() : () -> ()
    %cst_34 = arith.constant dense<0xFF800000> : vector<1x8xf32>
    %81 = vector.multi_reduction <maximumf>, %80, %cst_34 [2] : vector<1x8x8xf32> to vector<1x8xf32>
    %82 = vector.shape_cast %81 : vector<1x8xf32> to vector<1x8x1xf32>
    %83 = vector.broadcast %82 : vector<1x8x1xf32> to vector<1x8x8xf32>
    %84 = arith.subf %80, %83 : vector<1x8x8xf32>
    %85 = math.exp %84 : vector<1x8x8xf32>
    %cst_35 = arith.constant dense<0.000000e+00> : vector<1x8xf32>
    %86 = vector.multi_reduction <add>, %85, %cst_35 [2] : vector<1x8x8xf32> to vector<1x8xf32>
    %87 = vector.shape_cast %86 : vector<1x8xf32> to vector<1x8x1xf32>
    %88 = vector.broadcast %87 : vector<1x8x1xf32> to vector<1x8x8xf32>
    %89 = arith.divf %85, %88 : vector<1x8x8xf32>
    "tpu.trace_start"() <{level = 10 : i32, message = "bqk,bke->bqe"}> : () -> ()
    %cst_36 = arith.constant dense<0.000000e+00> : vector<1x8x8xf32>
    %90 = tpu.matmul %89, %79, %cst_36 {dimension_numbers = #tpu.dot_dimension_numbers<[2], [1], [1], [2], [0, 0, 0, 1, 1, 2], [0], [0]>} : vector<1x8x8xf32>, vector<1x8x8xf32>, vector<1x8x8xf32> -> vector<1x8x8xf32>
    "tpu.trace_stop"() : () -> ()
    %91 = tpu.concatenate %48, %62, %76, %90 in 2 : vector<1x8x8xf32>, vector<1x8x8xf32>, vector<1x8x8xf32>, vector<1x8x8xf32> -> vector<1x8x32xf32>
    %92 = vector.shape_cast %91 : vector<1x8x32xf32> to vector<8x32xf32>
    %c0_37 = arith.constant 0 : index
    %c0_38 = arith.constant 0 : index
    %c0_39 = arith.constant 0 : index
    %93 = vector.load %arg7[%c0_37, %c0_38, %c0_39] : memref<2x32x32xf32, #tpu.memory_space<vmem>>, vector<1x32x32xf32>
    %94 = vector.shape_cast %93 : vector<1x32x32xf32> to vector<32x32xf32>
    %cst_40 = arith.constant dense<0.000000e+00> : vector<8x32xf32>
    %95 = tpu.matmul %92, %94, %cst_40 {dimension_numbers = #tpu.dot_dimension_numbers<[1], [0], [0], [1], [0, 0, 1, 1], [], []>} : vector<8x32xf32>, vector<32x32xf32>, vector<8x32xf32> -> vector<8x32xf32>
    %96 = arith.addf %6, %95 : vector<8x32xf32>
    %c0_41 = arith.constant 0 : index
    %c0_42 = arith.constant 0 : index
    %c0_43 = arith.constant 0 : index
    %97 = vector.load %arg8[%c0_41, %c0_42, %c0_43] : memref<2x1x32xf32, #tpu.memory_space<vmem>>, vector<1x1x32xf32>
    %98 = vector.shape_cast %97 : vector<1x1x32xf32> to vector<1x32xf32>
    %99 = vector.broadcast %98 : vector<1x32xf32> to vector<8x32xf32>
    %100 = arith.addf %96, %99 : vector<8x32xf32>
    %c0_44 = arith.constant 0 : index
    %c0_45 = arith.constant 0 : index
    %c0_46 = arith.constant 0 : index
    %101 = vector.load %arg9[%c0_44, %c0_45, %c0_46] : memref<2x1x32xf32, #tpu.memory_space<vmem>>, vector<1x1x32xf32>
    %102 = vector.shape_cast %101 : vector<1x1x32xf32> to vector<1x32xf32>
    %c0_47 = arith.constant 0 : index
    %c0_48 = arith.constant 0 : index
    %c0_49 = arith.constant 0 : index
    %103 = vector.load %arg10[%c0_47, %c0_48, %c0_49] : memref<2x1x32xf32, #tpu.memory_space<vmem>>, vector<1x1x32xf32>
    %104 = vector.shape_cast %103 : vector<1x1x32xf32> to vector<1x32xf32>
    %cst_50 = arith.constant dense<0.000000e+00> : vector<8xf32>
    %105 = vector.multi_reduction <add>, %100, %cst_50 [1] : vector<8x32xf32> to vector<8xf32>
    %106 = vector.shape_cast %105 : vector<8xf32> to vector<8x1xf32>
    %cst_51 = arith.constant 3.200000e+01 : f32
    %107 = vector.broadcast %cst_51 : f32 to vector<8x1xf32>
    %108 = arith.divf %106, %107 : vector<8x1xf32>
    %109 = vector.broadcast %108 : vector<8x1xf32> to vector<8x32xf32>
    %110 = arith.subf %100, %109 : vector<8x32xf32>
    %111 = arith.mulf %110, %110 : vector<8x32xf32>
    %cst_52 = arith.constant dense<0.000000e+00> : vector<8xf32>
    %112 = vector.multi_reduction <add>, %111, %cst_52 [1] : vector<8x32xf32> to vector<8xf32>
    %113 = vector.shape_cast %112 : vector<8xf32> to vector<8x1xf32>
    %cst_53 = arith.constant 3.200000e+01 : f32
    %114 = vector.broadcast %cst_53 : f32 to vector<8x1xf32>
    %115 = arith.divf %113, %114 : vector<8x1xf32>
    %cst_54 = arith.constant 9.99999974E-6 : f32
    %116 = vector.broadcast %cst_54 : f32 to vector<8x1xf32>
    %117 = arith.addf %115, %116 : vector<8x1xf32>
    %118 = math.rsqrt %117 : vector<8x1xf32>
    %119 = vector.broadcast %118 : vector<8x1xf32> to vector<8x32xf32>
    %120 = arith.mulf %110, %119 : vector<8x32xf32>
    %121 = vector.broadcast %102 : vector<1x32xf32> to vector<8x32xf32>
    %122 = arith.mulf %120, %121 : vector<8x32xf32>
    %123 = vector.broadcast %104 : vector<1x32xf32> to vector<8x32xf32>
    %124 = arith.addf %122, %123 : vector<8x32xf32>
    %c0_55 = arith.constant 0 : index
    %c0_56 = arith.constant 0 : index
    %c0_57 = arith.constant 0 : index
    %125 = vector.load %arg11[%c0_55, %c0_56, %c0_57] : memref<2x32x128xf32, #tpu.memory_space<vmem>>, vector<1x32x128xf32>
    %126 = vector.shape_cast %125 : vector<1x32x128xf32> to vector<32x128xf32>
    %cst_58 = arith.constant dense<0.000000e+00> : vector<8x128xf32>
    %127 = tpu.matmul %124, %126, %cst_58 {dimension_numbers = #tpu.dot_dimension_numbers<[1], [0], [0], [1], [0, 0, 1, 1], [], []>} : vector<8x32xf32>, vector<32x128xf32>, vector<8x128xf32> -> vector<8x128xf32>
    %c0_59 = arith.constant 0 : index
    %c0_60 = arith.constant 0 : index
    %c0_61 = arith.constant 0 : index
    %128 = vector.load %arg12[%c0_59, %c0_60, %c0_61] : memref<2x1x128xf32, #tpu.memory_space<vmem>>, vector<1x1x128xf32>
    %129 = vector.shape_cast %128 : vector<1x1x128xf32> to vector<1x128xf32>
    %130 = vector.broadcast %129 : vector<1x128xf32> to vector<8x128xf32>
    %131 = arith.addf %127, %130 : vector<8x128xf32>
    %cst_62 = arith.constant 0.000000e+00 : f32
    %132 = vector.broadcast %cst_62 : f32 to vector<8x128xf32>
    %133 = arith.maximumf %131, %132 : vector<8x128xf32>
    %c0_63 = arith.constant 0 : index
    %c0_64 = arith.constant 0 : index
    %c0_65 = arith.constant 0 : index
    %134 = vector.load %arg13[%c0_63, %c0_64, %c0_65] : memref<2x128x32xf32, #tpu.memory_space<vmem>>, vector<1x128x32xf32>
    %135 = vector.shape_cast %134 : vector<1x128x32xf32> to vector<128x32xf32>
    %cst_66 = arith.constant dense<0.000000e+00> : vector<8x32xf32>
    %136 = tpu.matmul %133, %135, %cst_66 {dimension_numbers = #tpu.dot_dimension_numbers<[1], [0], [0], [1], [0, 0, 1, 1], [], []>} : vector<8x128xf32>, vector<128x32xf32>, vector<8x32xf32> -> vector<8x32xf32>
    %c0_67 = arith.constant 0 : index
    %c0_68 = arith.constant 0 : index
    %c0_69 = arith.constant 0 : index
    %137 = vector.load %arg14[%c0_67, %c0_68, %c0_69] : memref<2x1x32xf32, #tpu.memory_space<vmem>>, vector<1x1x32xf32>
    %138 = vector.shape_cast %137 : vector<1x1x32xf32> to vector<1x32xf32>
    %139 = vector.broadcast %138 : vector<1x32xf32> to vector<8x32xf32>
    %140 = arith.addf %136, %139 : vector<8x32xf32>
    %141 = arith.addf %100, %140 : vector<8x32xf32>
    %c1 = arith.constant 1 : index
    %c0_70 = arith.constant 0 : index
    %c0_71 = arith.constant 0 : index
    %142 = vector.load %arg4[%c1, %c0_70, %c0_71] : memref<2x1x32xf32, #tpu.memory_space<vmem>>, vector<1x1x32xf32>
    %143 = vector.shape_cast %142 : vector<1x1x32xf32> to vector<1x32xf32>
    %c1_72 = arith.constant 1 : index
    %c0_73 = arith.constant 0 : index
    %c0_74 = arith.constant 0 : index
    %144 = vector.load %arg5[%c1_72, %c0_73, %c0_74] : memref<2x1x32xf32, #tpu.memory_space<vmem>>, vector<1x1x32xf32>
    %145 = vector.shape_cast %144 : vector<1x1x32xf32> to vector<1x32xf32>
    %cst_75 = arith.constant dense<0.000000e+00> : vector<8xf32>
    %146 = vector.multi_reduction <add>, %141, %cst_75 [1] : vector<8x32xf32> to vector<8xf32>
    %147 = vector.shape_cast %146 : vector<8xf32> to vector<8x1xf32>
    %cst_76 = arith.constant 3.200000e+01 : f32
    %148 = vector.broadcast %cst_76 : f32 to vector<8x1xf32>
    %149 = arith.divf %147, %148 : vector<8x1xf32>
    %150 = vector.broadcast %149 : vector<8x1xf32> to vector<8x32xf32>
    %151 = arith.subf %141, %150 : vector<8x32xf32>
    %152 = arith.mulf %151, %151 : vector<8x32xf32>
    %cst_77 = arith.constant dense<0.000000e+00> : vector<8xf32>
    %153 = vector.multi_reduction <add>, %152, %cst_77 [1] : vector<8x32xf32> to vector<8xf32>
    %154 = vector.shape_cast %153 : vector<8xf32> to vector<8x1xf32>
    %cst_78 = arith.constant 3.200000e+01 : f32
    %155 = vector.broadcast %cst_78 : f32 to vector<8x1xf32>
    %156 = arith.divf %154, %155 : vector<8x1xf32>
    %cst_79 = arith.constant 9.99999974E-6 : f32
    %157 = vector.broadcast %cst_79 : f32 to vector<8x1xf32>
    %158 = arith.addf %156, %157 : vector<8x1xf32>
    %159 = math.rsqrt %158 : vector<8x1xf32>
    %160 = vector.broadcast %159 : vector<8x1xf32> to vector<8x32xf32>
    %161 = arith.mulf %151, %160 : vector<8x32xf32>
    %162 = vector.broadcast %143 : vector<1x32xf32> to vector<8x32xf32>
    %163 = arith.mulf %161, %162 : vector<8x32xf32>
    %164 = vector.broadcast %145 : vector<1x32xf32> to vector<8x32xf32>
    %165 = arith.addf %163, %164 : vector<8x32xf32>
    %c1_80 = arith.constant 1 : index
    %c0_81 = arith.constant 0 : index
    %c0_82 = arith.constant 0 : index
    %166 = vector.load %arg6[%c1_80, %c0_81, %c0_82] : memref<2x32x96xf32, #tpu.memory_space<vmem>>, vector<1x32x96xf32>
    %167 = vector.shape_cast %166 : vector<1x32x96xf32> to vector<32x96xf32>
    %cst_83 = arith.constant dense<0.000000e+00> : vector<8x96xf32>
    %168 = tpu.matmul %165, %167, %cst_83 {dimension_numbers = #tpu.dot_dimension_numbers<[1], [0], [0], [1], [0, 0, 1, 1], [], []>} : vector<8x32xf32>, vector<32x96xf32>, vector<8x96xf32> -> vector<8x96xf32>
    %169 = vector.shape_cast %168 : vector<8x96xf32> to vector<1x8x96xf32>
    %170 = vector.extract_strided_slice %169 {offsets = [0, 0, 0], sizes = [1, 8, 8], strides = [1, 1, 1]} : vector<1x8x96xf32> to vector<1x8x8xf32>
    %171 = vector.extract_strided_slice %169 {offsets = [0, 0, 32], sizes = [1, 8, 8], strides = [1, 1, 1]} : vector<1x8x96xf32> to vector<1x8x8xf32>
    %172 = vector.extract_strided_slice %169 {offsets = [0, 0, 64], sizes = [1, 8, 8], strides = [1, 1, 1]} : vector<1x8x96xf32> to vector<1x8x8xf32>
    "tpu.trace_start"() <{level = 10 : i32, message = "bqe,bke->bqk"}> : () -> ()
    %cst_84 = arith.constant dense<0.000000e+00> : vector<1x8x8xf32>
    %173 = tpu.matmul %170, %171, %cst_84 {dimension_numbers = #tpu.dot_dimension_numbers<[2], [2], [1], [1], [0, 0, 0, 1, 1, 1], [0], [0]>} : vector<1x8x8xf32>, vector<1x8x8xf32>, vector<1x8x8xf32> -> vector<1x8x8xf32>
    "tpu.trace_stop"() : () -> ()
    %cst_85 = arith.constant dense<0xFF800000> : vector<1x8xf32>
    %174 = vector.multi_reduction <maximumf>, %173, %cst_85 [2] : vector<1x8x8xf32> to vector<1x8xf32>
    %175 = vector.shape_cast %174 : vector<1x8xf32> to vector<1x8x1xf32>
    %176 = vector.broadcast %175 : vector<1x8x1xf32> to vector<1x8x8xf32>
    %177 = arith.subf %173, %176 : vector<1x8x8xf32>
    %178 = math.exp %177 : vector<1x8x8xf32>
    %cst_86 = arith.constant dense<0.000000e+00> : vector<1x8xf32>
    %179 = vector.multi_reduction <add>, %178, %cst_86 [2] : vector<1x8x8xf32> to vector<1x8xf32>
    %180 = vector.shape_cast %179 : vector<1x8xf32> to vector<1x8x1xf32>
    %181 = vector.broadcast %180 : vector<1x8x1xf32> to vector<1x8x8xf32>
    %182 = arith.divf %178, %181 : vector<1x8x8xf32>
    "tpu.trace_start"() <{level = 10 : i32, message = "bqk,bke->bqe"}> : () -> ()
    %cst_87 = arith.constant dense<0.000000e+00> : vector<1x8x8xf32>
    %183 = tpu.matmul %182, %172, %cst_87 {dimension_numbers = #tpu.dot_dimension_numbers<[2], [1], [1], [2], [0, 0, 0, 1, 1, 2], [0], [0]>} : vector<1x8x8xf32>, vector<1x8x8xf32>, vector<1x8x8xf32> -> vector<1x8x8xf32>
    "tpu.trace_stop"() : () -> ()
    %184 = vector.extract_strided_slice %169 {offsets = [0, 0, 8], sizes = [1, 8, 8], strides = [1, 1, 1]} : vector<1x8x96xf32> to vector<1x8x8xf32>
    %185 = vector.extract_strided_slice %169 {offsets = [0, 0, 40], sizes = [1, 8, 8], strides = [1, 1, 1]} : vector<1x8x96xf32> to vector<1x8x8xf32>
    %186 = vector.extract_strided_slice %169 {offsets = [0, 0, 72], sizes = [1, 8, 8], strides = [1, 1, 1]} : vector<1x8x96xf32> to vector<1x8x8xf32>
    "tpu.trace_start"() <{level = 10 : i32, message = "bqe,bke->bqk"}> : () -> ()
    %cst_88 = arith.constant dense<0.000000e+00> : vector<1x8x8xf32>
    %187 = tpu.matmul %184, %185, %cst_88 {dimension_numbers = #tpu.dot_dimension_numbers<[2], [2], [1], [1], [0, 0, 0, 1, 1, 1], [0], [0]>} : vector<1x8x8xf32>, vector<1x8x8xf32>, vector<1x8x8xf32> -> vector<1x8x8xf32>
    "tpu.trace_stop"() : () -> ()
    %cst_89 = arith.constant dense<0xFF800000> : vector<1x8xf32>
    %188 = vector.multi_reduction <maximumf>, %187, %cst_89 [2] : vector<1x8x8xf32> to vector<1x8xf32>
    %189 = vector.shape_cast %188 : vector<1x8xf32> to vector<1x8x1xf32>
    %190 = vector.broadcast %189 : vector<1x8x1xf32> to vector<1x8x8xf32>
    %191 = arith.subf %187, %190 : vector<1x8x8xf32>
    %192 = math.exp %191 : vector<1x8x8xf32>
    %cst_90 = arith.constant dense<0.000000e+00> : vector<1x8xf32>
    %193 = vector.multi_reduction <add>, %192, %cst_90 [2] : vector<1x8x8xf32> to vector<1x8xf32>
    %194 = vector.shape_cast %193 : vector<1x8xf32> to vector<1x8x1xf32>
    %195 = vector.broadcast %194 : vector<1x8x1xf32> to vector<1x8x8xf32>
    %196 = arith.divf %192, %195 : vector<1x8x8xf32>
    "tpu.trace_start"() <{level = 10 : i32, message = "bqk,bke->bqe"}> : () -> ()
    %cst_91 = arith.constant dense<0.000000e+00> : vector<1x8x8xf32>
    %197 = tpu.matmul %196, %186, %cst_91 {dimension_numbers = #tpu.dot_dimension_numbers<[2], [1], [1], [2], [0, 0, 0, 1, 1, 2], [0], [0]>} : vector<1x8x8xf32>, vector<1x8x8xf32>, vector<1x8x8xf32> -> vector<1x8x8xf32>
    "tpu.trace_stop"() : () -> ()
    %198 = vector.extract_strided_slice %169 {offsets = [0, 0, 16], sizes = [1, 8, 8], strides = [1, 1, 1]} : vector<1x8x96xf32> to vector<1x8x8xf32>
    %199 = vector.extract_strided_slice %169 {offsets = [0, 0, 48], sizes = [1, 8, 8], strides = [1, 1, 1]} : vector<1x8x96xf32> to vector<1x8x8xf32>
    %200 = vector.extract_strided_slice %169 {offsets = [0, 0, 80], sizes = [1, 8, 8], strides = [1, 1, 1]} : vector<1x8x96xf32> to vector<1x8x8xf32>
    "tpu.trace_start"() <{level = 10 : i32, message = "bqe,bke->bqk"}> : () -> ()
    %cst_92 = arith.constant dense<0.000000e+00> : vector<1x8x8xf32>
    %201 = tpu.matmul %198, %199, %cst_92 {dimension_numbers = #tpu.dot_dimension_numbers<[2], [2], [1], [1], [0, 0, 0, 1, 1, 1], [0], [0]>} : vector<1x8x8xf32>, vector<1x8x8xf32>, vector<1x8x8xf32> -> vector<1x8x8xf32>
    "tpu.trace_stop"() : () -> ()
    %cst_93 = arith.constant dense<0xFF800000> : vector<1x8xf32>
    %202 = vector.multi_reduction <maximumf>, %201, %cst_93 [2] : vector<1x8x8xf32> to vector<1x8xf32>
    %203 = vector.shape_cast %202 : vector<1x8xf32> to vector<1x8x1xf32>
    %204 = vector.broadcast %203 : vector<1x8x1xf32> to vector<1x8x8xf32>
    %205 = arith.subf %201, %204 : vector<1x8x8xf32>
    %206 = math.exp %205 : vector<1x8x8xf32>
    %cst_94 = arith.constant dense<0.000000e+00> : vector<1x8xf32>
    %207 = vector.multi_reduction <add>, %206, %cst_94 [2] : vector<1x8x8xf32> to vector<1x8xf32>
    %208 = vector.shape_cast %207 : vector<1x8xf32> to vector<1x8x1xf32>
    %209 = vector.broadcast %208 : vector<1x8x1xf32> to vector<1x8x8xf32>
    %210 = arith.divf %206, %209 : vector<1x8x8xf32>
    "tpu.trace_start"() <{level = 10 : i32, message = "bqk,bke->bqe"}> : () -> ()
    %cst_95 = arith.constant dense<0.000000e+00> : vector<1x8x8xf32>
    %211 = tpu.matmul %210, %200, %cst_95 {dimension_numbers = #tpu.dot_dimension_numbers<[2], [1], [1], [2], [0, 0, 0, 1, 1, 2], [0], [0]>} : vector<1x8x8xf32>, vector<1x8x8xf32>, vector<1x8x8xf32> -> vector<1x8x8xf32>
    "tpu.trace_stop"() : () -> ()
    %212 = vector.extract_strided_slice %169 {offsets = [0, 0, 24], sizes = [1, 8, 8], strides = [1, 1, 1]} : vector<1x8x96xf32> to vector<1x8x8xf32>
    %213 = vector.extract_strided_slice %169 {offsets = [0, 0, 56], sizes = [1, 8, 8], strides = [1, 1, 1]} : vector<1x8x96xf32> to vector<1x8x8xf32>
    %214 = vector.extract_strided_slice %169 {offsets = [0, 0, 88], sizes = [1, 8, 8], strides = [1, 1, 1]} : vector<1x8x96xf32> to vector<1x8x8xf32>
    "tpu.trace_start"() <{level = 10 : i32, message = "bqe,bke->bqk"}> : () -> ()
    %cst_96 = arith.constant dense<0.000000e+00> : vector<1x8x8xf32>
    %215 = tpu.matmul %212, %213, %cst_96 {dimension_numbers = #tpu.dot_dimension_numbers<[2], [2], [1], [1], [0, 0, 0, 1, 1, 1], [0], [0]>} : vector<1x8x8xf32>, vector<1x8x8xf32>, vector<1x8x8xf32> -> vector<1x8x8xf32>
    "tpu.trace_stop"() : () -> ()
    %cst_97 = arith.constant dense<0xFF800000> : vector<1x8xf32>
    %216 = vector.multi_reduction <maximumf>, %215, %cst_97 [2] : vector<1x8x8xf32> to vector<1x8xf32>
    %217 = vector.shape_cast %216 : vector<1x8xf32> to vector<1x8x1xf32>
    %218 = vector.broadcast %217 : vector<1x8x1xf32> to vector<1x8x8xf32>
    %219 = arith.subf %215, %218 : vector<1x8x8xf32>
    %220 = math.exp %219 : vector<1x8x8xf32>
    %cst_98 = arith.constant dense<0.000000e+00> : vector<1x8xf32>
    %221 = vector.multi_reduction <add>, %220, %cst_98 [2] : vector<1x8x8xf32> to vector<1x8xf32>
    %222 = vector.shape_cast %221 : vector<1x8xf32> to vector<1x8x1xf32>
    %223 = vector.broadcast %222 : vector<1x8x1xf32> to vector<1x8x8xf32>
    %224 = arith.divf %220, %223 : vector<1x8x8xf32>
    "tpu.trace_start"() <{level = 10 : i32, message = "bqk,bke->bqe"}> : () -> ()
    %cst_99 = arith.constant dense<0.000000e+00> : vector<1x8x8xf32>
    %225 = tpu.matmul %224, %214, %cst_99 {dimension_numbers = #tpu.dot_dimension_numbers<[2], [1], [1], [2], [0, 0, 0, 1, 1, 2], [0], [0]>} : vector<1x8x8xf32>, vector<1x8x8xf32>, vector<1x8x8xf32> -> vector<1x8x8xf32>
    "tpu.trace_stop"() : () -> ()
    %226 = tpu.concatenate %183, %197, %211, %225 in 2 : vector<1x8x8xf32>, vector<1x8x8xf32>, vector<1x8x8xf32>, vector<1x8x8xf32> -> vector<1x8x32xf32>
    %227 = vector.shape_cast %226 : vector<1x8x32xf32> to vector<8x32xf32>
    %c1_100 = arith.constant 1 : index
    %c0_101 = arith.constant 0 : index
    %c0_102 = arith.constant 0 : index
    %228 = vector.load %arg7[%c1_100, %c0_101, %c0_102] : memref<2x32x32xf32, #tpu.memory_space<vmem>>, vector<1x32x32xf32>
    %229 = vector.shape_cast %228 : vector<1x32x32xf32> to vector<32x32xf32>
    %cst_103 = arith.constant dense<0.000000e+00> : vector<8x32xf32>
    %230 = tpu.matmul %227, %229, %cst_103 {dimension_numbers = #tpu.dot_dimension_numbers<[1], [0], [0], [1], [0, 0, 1, 1], [], []>} : vector<8x32xf32>, vector<32x32xf32>, vector<8x32xf32> -> vector<8x32xf32>
    %231 = arith.addf %141, %230 : vector<8x32xf32>
    %c1_104 = arith.constant 1 : index
    %c0_105 = arith.constant 0 : index
    %c0_106 = arith.constant 0 : index
    %232 = vector.load %arg8[%c1_104, %c0_105, %c0_106] : memref<2x1x32xf32, #tpu.memory_space<vmem>>, vector<1x1x32xf32>
    %233 = vector.shape_cast %232 : vector<1x1x32xf32> to vector<1x32xf32>
    %234 = vector.broadcast %233 : vector<1x32xf32> to vector<8x32xf32>
    %235 = arith.addf %231, %234 : vector<8x32xf32>
    %c1_107 = arith.constant 1 : index
    %c0_108 = arith.constant 0 : index
    %c0_109 = arith.constant 0 : index
    %236 = vector.load %arg9[%c1_107, %c0_108, %c0_109] : memref<2x1x32xf32, #tpu.memory_space<vmem>>, vector<1x1x32xf32>
    %237 = vector.shape_cast %236 : vector<1x1x32xf32> to vector<1x32xf32>
    %c1_110 = arith.constant 1 : index
    %c0_111 = arith.constant 0 : index
    %c0_112 = arith.constant 0 : index
    %238 = vector.load %arg10[%c1_110, %c0_111, %c0_112] : memref<2x1x32xf32, #tpu.memory_space<vmem>>, vector<1x1x32xf32>
    %239 = vector.shape_cast %238 : vector<1x1x32xf32> to vector<1x32xf32>
    %cst_113 = arith.constant dense<0.000000e+00> : vector<8xf32>
    %240 = vector.multi_reduction <add>, %235, %cst_113 [1] : vector<8x32xf32> to vector<8xf32>
    %241 = vector.shape_cast %240 : vector<8xf32> to vector<8x1xf32>
    %cst_114 = arith.constant 3.200000e+01 : f32
    %242 = vector.broadcast %cst_114 : f32 to vector<8x1xf32>
    %243 = arith.divf %241, %242 : vector<8x1xf32>
    %244 = vector.broadcast %243 : vector<8x1xf32> to vector<8x32xf32>
    %245 = arith.subf %235, %244 : vector<8x32xf32>
    %246 = arith.mulf %245, %245 : vector<8x32xf32>
    %cst_115 = arith.constant dense<0.000000e+00> : vector<8xf32>
    %247 = vector.multi_reduction <add>, %246, %cst_115 [1] : vector<8x32xf32> to vector<8xf32>
    %248 = vector.shape_cast %247 : vector<8xf32> to vector<8x1xf32>
    %cst_116 = arith.constant 3.200000e+01 : f32
    %249 = vector.broadcast %cst_116 : f32 to vector<8x1xf32>
    %250 = arith.divf %248, %249 : vector<8x1xf32>
    %cst_117 = arith.constant 9.99999974E-6 : f32
    %251 = vector.broadcast %cst_117 : f32 to vector<8x1xf32>
    %252 = arith.addf %250, %251 : vector<8x1xf32>
    %253 = math.rsqrt %252 : vector<8x1xf32>
    %254 = vector.broadcast %253 : vector<8x1xf32> to vector<8x32xf32>
    %255 = arith.mulf %245, %254 : vector<8x32xf32>
    %256 = vector.broadcast %237 : vector<1x32xf32> to vector<8x32xf32>
    %257 = arith.mulf %255, %256 : vector<8x32xf32>
    %258 = vector.broadcast %239 : vector<1x32xf32> to vector<8x32xf32>
    %259 = arith.addf %257, %258 : vector<8x32xf32>
    %c1_118 = arith.constant 1 : index
    %c0_119 = arith.constant 0 : index
    %c0_120 = arith.constant 0 : index
    %260 = vector.load %arg11[%c1_118, %c0_119, %c0_120] : memref<2x32x128xf32, #tpu.memory_space<vmem>>, vector<1x32x128xf32>
    %261 = vector.shape_cast %260 : vector<1x32x128xf32> to vector<32x128xf32>
    %cst_121 = arith.constant dense<0.000000e+00> : vector<8x128xf32>
    %262 = tpu.matmul %259, %261, %cst_121 {dimension_numbers = #tpu.dot_dimension_numbers<[1], [0], [0], [1], [0, 0, 1, 1], [], []>} : vector<8x32xf32>, vector<32x128xf32>, vector<8x128xf32> -> vector<8x128xf32>
    %c1_122 = arith.constant 1 : index
    %c0_123 = arith.constant 0 : index
    %c0_124 = arith.constant 0 : index
    %263 = vector.load %arg12[%c1_122, %c0_123, %c0_124] : memref<2x1x128xf32, #tpu.memory_space<vmem>>, vector<1x1x128xf32>
    %264 = vector.shape_cast %263 : vector<1x1x128xf32> to vector<1x128xf32>
    %265 = vector.broadcast %264 : vector<1x128xf32> to vector<8x128xf32>
    %266 = arith.addf %262, %265 : vector<8x128xf32>
    %cst_125 = arith.constant 0.000000e+00 : f32
    %267 = vector.broadcast %cst_125 : f32 to vector<8x128xf32>
    %268 = arith.maximumf %266, %267 : vector<8x128xf32>
    %c1_126 = arith.constant 1 : index
    %c0_127 = arith.constant 0 : index
    %c0_128 = arith.constant 0 : index
    %269 = vector.load %arg13[%c1_126, %c0_127, %c0_128] : memref<2x128x32xf32, #tpu.memory_space<vmem>>, vector<1x128x32xf32>
    %270 = vector.shape_cast %269 : vector<1x128x32xf32> to vector<128x32xf32>
    %cst_129 = arith.constant dense<0.000000e+00> : vector<8x32xf32>
    %271 = tpu.matmul %268, %270, %cst_129 {dimension_numbers = #tpu.dot_dimension_numbers<[1], [0], [0], [1], [0, 0, 1, 1], [], []>} : vector<8x128xf32>, vector<128x32xf32>, vector<8x32xf32> -> vector<8x32xf32>
    %c1_130 = arith.constant 1 : index
    %c0_131 = arith.constant 0 : index
    %c0_132 = arith.constant 0 : index
    %272 = vector.load %arg14[%c1_130, %c0_131, %c0_132] : memref<2x1x32xf32, #tpu.memory_space<vmem>>, vector<1x1x32xf32>
    %273 = vector.shape_cast %272 : vector<1x1x32xf32> to vector<1x32xf32>
    %274 = vector.broadcast %273 : vector<1x32xf32> to vector<8x32xf32>
    %275 = arith.addf %271, %274 : vector<8x32xf32>
    %276 = arith.addf %235, %275 : vector<8x32xf32>
    %c0_133 = arith.constant 0 : index
    %c0_134 = arith.constant 0 : index
    %277 = vector.load %arg15[%c0_133, %c0_134] : memref<1x32xf32, #tpu.memory_space<vmem>>, vector<1x32xf32>
    %c0_135 = arith.constant 0 : index
    %c0_136 = arith.constant 0 : index
    %278 = vector.load %arg16[%c0_135, %c0_136] : memref<1x32xf32, #tpu.memory_space<vmem>>, vector<1x32xf32>
    %cst_137 = arith.constant dense<0.000000e+00> : vector<8xf32>
    %279 = vector.multi_reduction <add>, %276, %cst_137 [1] : vector<8x32xf32> to vector<8xf32>
    %280 = vector.shape_cast %279 : vector<8xf32> to vector<8x1xf32>
    %cst_138 = arith.constant 3.200000e+01 : f32
    %281 = vector.broadcast %cst_138 : f32 to vector<8x1xf32>
    %282 = arith.divf %280, %281 : vector<8x1xf32>
    %283 = vector.broadcast %282 : vector<8x1xf32> to vector<8x32xf32>
    %284 = arith.subf %276, %283 : vector<8x32xf32>
    %285 = arith.mulf %284, %284 : vector<8x32xf32>
    %cst_139 = arith.constant dense<0.000000e+00> : vector<8xf32>
    %286 = vector.multi_reduction <add>, %285, %cst_139 [1] : vector<8x32xf32> to vector<8xf32>
    %287 = vector.shape_cast %286 : vector<8xf32> to vector<8x1xf32>
    %cst_140 = arith.constant 3.200000e+01 : f32
    %288 = vector.broadcast %cst_140 : f32 to vector<8x1xf32>
    %289 = arith.divf %287, %288 : vector<8x1xf32>
    %cst_141 = arith.constant 9.99999974E-6 : f32
    %290 = vector.broadcast %cst_141 : f32 to vector<8x1xf32>
    %291 = arith.addf %289, %290 : vector<8x1xf32>
    %292 = math.rsqrt %291 : vector<8x1xf32>
    %293 = vector.broadcast %292 : vector<8x1xf32> to vector<8x32xf32>
    %294 = arith.mulf %284, %293 : vector<8x32xf32>
    %295 = vector.broadcast %277 : vector<1x32xf32> to vector<8x32xf32>
    %296 = arith.mulf %294, %295 : vector<8x32xf32>
    %297 = vector.broadcast %278 : vector<1x32xf32> to vector<8x32xf32>
    %298 = arith.addf %296, %297 : vector<8x32xf32>
    %299 = vector.shape_cast %298 : vector<8x32xf32> to vector<1x8x32xf32>
    %cst_142 = arith.constant dense<0.000000e+00> : vector<1x32xf32>
    %300 = vector.multi_reduction <add>, %299, %cst_142 [1] : vector<1x8x32xf32> to vector<1x32xf32>
    %cst_143 = arith.constant 8.000000e+00 : f32
    %301 = vector.broadcast %cst_143 : f32 to vector<1x32xf32>
    %302 = arith.divf %300, %301 : vector<1x32xf32>
    %c0_144 = arith.constant 0 : index
    %c0_145 = arith.constant 0 : index
    %303 = vector.load %arg17[%c0_144, %c0_145] : memref<32x128xf32, #tpu.memory_space<vmem>>, vector<32x128xf32>
    %cst_146 = arith.constant dense<0.000000e+00> : vector<1x128xf32>
    %304 = tpu.matmul %302, %303, %cst_146 {dimension_numbers = #tpu.dot_dimension_numbers<[1], [0], [0], [1], [0, 0, 1, 1], [], []>} : vector<1x32xf32>, vector<32x128xf32>, vector<1x128xf32> -> vector<1x128xf32>
    %c0_147 = arith.constant 0 : index
    %c0_148 = arith.constant 0 : index
    %305 = vector.load %arg18[%c0_147, %c0_148] : memref<1x128xf32, #tpu.memory_space<vmem>>, vector<1x128xf32>
    %306 = arith.addf %304, %305 : vector<1x128xf32>
    %c0_149 = arith.constant 0 : index
    %c0_150 = arith.constant 0 : index
    %c0_151 = arith.constant 0 : index
    %307 = vector.load %arg19[%c0_149, %c0_150, %c0_151] : memref<1x1x128xf32, #tpu.memory_space<vmem>>, vector<1x1x128xf32>
    %308 = vector.shape_cast %307 : vector<1x1x128xf32> to vector<1x128xf32>
    %309 = vector.shape_cast %306 : vector<1x128xf32> to vector<1x1x128xf32>
    tpu.vector_store %arg19[%c0_149, %c0_150, %c0_151], %309 {strides = array<i32>} : memref<1x1x128xf32, #tpu.memory_space<vmem>>, vector<1x1x128xf32>,
    return
  }
  func.func @transform_0(%arg0: i32) -> (i32, i32, i32) {
    %c0_i32 = arith.constant 0 : i32
    %c0_i32_0 = arith.constant 0 : i32
    %c0_i32_1 = arith.constant 0 : i32
    return %arg0, %c0_i32, %c0_i32_0 : i32, i32, i32
  }
  func.func @transform_1(%arg0: i32) -> (i32, i32) {
    %c0_i32 = arith.constant 0 : i32
    %c0_i32_0 = arith.constant 0 : i32
    %c0_i32_1 = arith.constant 0 : i32
    return %c0_i32, %c0_i32_0 : i32, i32
  }
  func.func @transform_2(%arg0: i32) -> (i32, i32) {
    %c0_i32 = arith.constant 0 : i32
    %c0_i32_0 = arith.constant 0 : i32
    %c0_i32_1 = arith.constant 0 : i32
    return %c0_i32, %c0_i32_0 : i32, i32
  }
  func.func @transform_3(%arg0: i32) -> (i32, i32, i32) {
    %c0_i32 = arith.constant 0 : i32
    %c0_i32_0 = arith.constant 0 : i32
    %c0_i32_1 = arith.constant 0 : i32
    %c0_i32_2 = arith.constant 0 : i32
    return %c0_i32, %c0_i32_0, %c0_i32_1 : i32, i32, i32
  }
  func.func @transform_4(%arg0: i32) -> (i32, i32, i32) {
    %c0_i32 = arith.constant 0 : i32
    %c0_i32_0 = arith.constant 0 : i32
    %c0_i32_1 = arith.constant 0 : i32
    %c0_i32_2 = arith.constant 0 : i32
    return %c0_i32, %c0_i32_0, %c0_i32_1 : i32, i32, i32
  }
  func.func @transform_5(%arg0: i32) -> (i32, i32, i32) {
    %c0_i32 = arith.constant 0 : i32
    %c0_i32_0 = arith.constant 0 : i32
    %c0_i32_1 = arith.constant 0 : i32
    %c0_i32_2 = arith.constant 0 : i32
    return %c0_i32, %c0_i32_0, %c0_i32_1 : i32, i32, i32
  }
  func.func @transform_6(%arg0: i32) -> (i32, i32, i32) {
    %c0_i32 = arith.constant 0 : i32
    %c0_i32_0 = arith.constant 0 : i32
    %c0_i32_1 = arith.constant 0 : i32
    %c0_i32_2 = arith.constant 0 : i32
    return %c0_i32, %c0_i32_0, %c0_i32_1 : i32, i32, i32
  }
  func.func @transform_7(%arg0: i32) -> (i32, i32, i32) {
    %c0_i32 = arith.constant 0 : i32
    %c0_i32_0 = arith.constant 0 : i32
    %c0_i32_1 = arith.constant 0 : i32
    %c0_i32_2 = arith.constant 0 : i32
    return %c0_i32, %c0_i32_0, %c0_i32_1 : i32, i32, i32
  }
  func.func @transform_8(%arg0: i32) -> (i32, i32, i32) {
    %c0_i32 = arith.constant 0 : i32
    %c0_i32_0 = arith.constant 0 : i32
    %c0_i32_1 = arith.constant 0 : i32
    %c0_i32_2 = arith.constant 0 : i32
    return %c0_i32, %c0_i32_0, %c0_i32_1 : i32, i32, i32
  }
  func.func @transform_9(%arg0: i32) -> (i32, i32, i32) {
    %c0_i32 = arith.constant 0 : i32
    %c0_i32_0 = arith.constant 0 : i32
    %c0_i32_1 = arith.constant 0 : i32
    %c0_i32_2 = arith.constant 0 : i32
    return %c0_i32, %c0_i32_0, %c0_i32_1 : i32, i32, i32
  }
  func.func @transform_10(%arg0: i32) -> (i32, i32, i32) {
    %c0_i32 = arith.constant 0 : i32
    %c0_i32_0 = arith.constant 0 : i32
    %c0_i32_1 = arith.constant 0 : i32
    %c0_i32_2 = arith.constant 0 : i32
    return %c0_i32, %c0_i32_0, %c0_i32_1 : i32, i32, i32
  }
  func.func @transform_11(%arg0: i32) -> (i32, i32, i32) {
    %c0_i32 = arith.constant 0 : i32
    %c0_i32_0 = arith.constant 0 : i32
    %c0_i32_1 = arith.constant 0 : i32
    %c0_i32_2 = arith.constant 0 : i32
    return %c0_i32, %c0_i32_0, %c0_i32_1 : i32, i32, i32
  }
  func.func @transform_12(%arg0: i32) -> (i32, i32, i32) {
    %c0_i32 = arith.constant 0 : i32
    %c0_i32_0 = arith.constant 0 : i32
    %c0_i32_1 = arith.constant 0 : i32
    %c0_i32_2 = arith.constant 0 : i32
    return %c0_i32, %c0_i32_0, %c0_i32_1 : i32, i32, i32
  }
  func.func @transform_13(%arg0: i32) -> (i32, i32, i32) {
    %c0_i32 = arith.constant 0 : i32
    %c0_i32_0 = arith.constant 0 : i32
    %c0_i32_1 = arith.constant 0 : i32
    %c0_i32_2 = arith.constant 0 : i32
    return %c0_i32, %c0_i32_0, %c0_i32_1 : i32, i32, i32
  }
  func.func @transform_14(%arg0: i32) -> (i32, i32) {
    %c0_i32 = arith.constant 0 : i32
    %c0_i32_0 = arith.constant 0 : i32
    %c0_i32_1 = arith.constant 0 : i32
    return %c0_i32, %c0_i32_0 : i32, i32
  }
  func.func @transform_15(%arg0: i32) -> (i32, i32) {
    %c0_i32 = arith.constant 0 : i32
    %c0_i32_0 = arith.constant 0 : i32
    %c0_i32_1 = arith.constant 0 : i32
    return %c0_i32, %c0_i32_0 : i32, i32
  }
  func.func @transform_16(%arg0: i32) -> (i32, i32) {
    %c0_i32 = arith.constant 0 : i32
    %c0_i32_0 = arith.constant 0 : i32
    %c0_i32_1 = arith.constant 0 : i32
    return %c0_i32, %c0_i32_0 : i32, i32
  }
  func.func @transform_17(%arg0: i32) -> (i32, i32) {
    %c0_i32 = arith.constant 0 : i32
    %c0_i32_0 = arith.constant 0 : i32
    %c0_i32_1 = arith.constant 0 : i32
    return %c0_i32, %c0_i32_0 : i32, i32
  }
  func.func @transform_18(%arg0: i32) -> (i32, i32, i32) {
    %c0_i32 = arith.constant 0 : i32
    %c0_i32_0 = arith.constant 0 : i32
    %c0_i32_1 = arith.constant 0 : i32
    return %arg0, %c0_i32, %c0_i32_0 : i32, i32, i32
  }
}

</mosaic_0001>

<llo_original>
// kernel: tpu_custom_call.1
$region0: #{tpu_custom_call.1}
  #allocation0 [shape = 'u32[]', space=smem, size = 0x4, offset = 0x4, fixed_abs, tag = 'smem constant byte address 0x4 - core index']
  #allocation1 [shape = 'u32[144,128]{1,0:T(1,128)}', space=vmem, size = 0x12000, scoped, tag = 'internal scratch']
  %s0 = inlined_call_operand.vmem [shape: f32[2,8,16], index: 0, kind: input, shape index: {}]
  %s1 = inlined_call_operand.vmem [shape: f32[16,32], index: 1, kind: input, shape index: {}]
  %s2 = inlined_call_operand.vmem [shape: f32[1,32], index: 2, kind: input, shape index: {}]
  %s3 = inlined_call_operand.vmem [shape: f32[2,1,32], index: 3, kind: input, shape index: {}]
  %s4 = inlined_call_operand.vmem [shape: f32[2,1,32], index: 4, kind: input, shape index: {}]
  %s5 = inlined_call_operand.vmem [shape: f32[2,32,96], index: 5, kind: input, shape index: {}]
  %s6 = inlined_call_operand.vmem [shape: f32[2,32,32], index: 6, kind: input, shape index: {}]
  %s7 = inlined_call_operand.vmem [shape: f32[2,1,32], index: 7, kind: input, shape index: {}]
  %s8 = inlined_call_operand.vmem [shape: f32[2,1,32], index: 8, kind: input, shape index: {}]
  %s9 = inlined_call_operand.vmem [shape: f32[2,1,32], index: 9, kind: input, shape index: {}]
  %s10 = inlined_call_operand.vmem [shape: f32[2,32,128], index: 10, kind: input, shape index: {}]
  %s11 = inlined_call_operand.vmem [shape: f32[2,1,128], index: 11, kind: input, shape index: {}]
  %s12 = inlined_call_operand.vmem [shape: f32[2,128,32], index: 12, kind: input, shape index: {}]
  %s13 = inlined_call_operand.vmem [shape: f32[2,1,32], index: 13, kind: input, shape index: {}]
  %s14 = inlined_call_operand.vmem [shape: f32[1,32], index: 14, kind: input, shape index: {}]
  %s15 = inlined_call_operand.vmem [shape: f32[1,32], index: 15, kind: input, shape index: {}]
  %s16 = inlined_call_operand.vmem [shape: f32[32,128], index: 16, kind: input, shape index: {}]
  %s17 = inlined_call_operand.vmem [shape: f32[1,128], index: 17, kind: input, shape index: {}]
  %s18 = inlined_call_operand.hbm [shape: f32[2,1,128], index: 18, kind: output, shape index: {}]
  %s19 = sld [smem:[#allocation0]]
  $region105: #{tpu_custom_call.1} parent=0
    _
  %s21 = ssub.s32 1, %s19
  %s22 = scalar_select 0, %s21, %s19
  $region1: #{tpu_custom_call.1} parent=0
    #allocation2 [shape = 'u8[1024]{0}', space=vmem, size = 0x400, scoped, tag = 'output window, operand 0']
    #allocation3 [shape = 's32[2]{0}', space=sflag, size = 0x8, scoped, tag = 'scoped memory for tpu_custom_call.1']
    %23 = vsyncpa [#allocation3], 0
    %s24 = scalar_lea.sflag [#allocation3], 1
    %25 = vsyncpa %s24, 0
    loop: start=0, step=1, limit=4
    $region2: #{tpu_custom_call.1} parent=1 // loop_pre_header
      _
    $region3: #{tpu_custom_call.1} parent=1 // loop_header
      %s27 = sphi 0, %s31
      %p28 = scmp.ge.s32.totalorder %s27, 4
      %s37 = sphi 0, %s39
      %s40 = sphi 0, %s37
      %s41 = sphi 0, %s40
      %s57 = sphi 0, %s41
      %s61 = sphi 0, %s61
      %s63 = sphi 0, %s61
      %s64 = sphi 0, %s63
      %s78 = sphi 0, %s64
      %s82 = sphi 0, %s82
      %s84 = sphi 0, %s82
      %s85 = sphi 0, %s84
      %s99 = sphi 0, %s85
      %s103 = sphi 0, %s103
      %s105 = sphi 0, %s103
      %s106 = sphi 0, %s105
      %s120 = sphi 0, %s106
      %s124 = sphi 0, %s124
      %s126 = sphi 0, %s124
      %s127 = sphi 0, %s126
      %s141 = sphi 0, %s127
      %s145 = sphi 0, %s145
      %s147 = sphi 0, %s145
      %s148 = sphi 0, %s147
      %s162 = sphi 0, %s148
      %s166 = sphi 0, %s166
      %s168 = sphi 0, %s166
      %s169 = sphi 0, %s168
      %s183 = sphi 0, %s169
      %s187 = sphi 0, %s187
      %s189 = sphi 0, %s187
      %s190 = sphi 0, %s189
      %s204 = sphi 0, %s190
      %s208 = sphi 0, %s208
      %s210 = sphi 0, %s208
      %s211 = sphi 0, %s210
      %s225 = sphi 0, %s211
      %s229 = sphi 0, %s229
      %s231 = sphi 0, %s229
      %s232 = sphi 0, %s231
      %s246 = sphi 0, %s232
      %s250 = sphi 0, %s250
      %s252 = sphi 0, %s250
      %s253 = sphi 0, %s252
      %s267 = sphi 0, %s253
      %s271 = sphi 0, %s271
      %s273 = sphi 0, %s271
      %s274 = sphi 0, %s273
      %s288 = sphi 0, %s274
      %s292 = sphi 0, %s292
      %s294 = sphi 0, %s292
      %s295 = sphi 0, %s294
      %s309 = sphi 0, %s295
      %s313 = sphi 0, %s313
      %s315 = sphi 0, %s313
      %s316 = sphi 0, %s315
      %s330 = sphi 0, %s316
      %s334 = sphi 0, %s334
      %s336 = sphi 0, %s334
      %s337 = sphi 0, %s336
      %s351 = sphi 0, %s337
      %s355 = sphi 0, %s355
      %s357 = sphi 0, %s355
      %s358 = sphi 0, %s357
      %s372 = sphi 0, %s358
      %s376 = sphi 0, %s376
      %s378 = sphi 0, %s376
      %s379 = sphi 0, %s378
      %s393 = sphi 0, %s379
      %s397 = sphi 0, %s397
      %s399 = sphi 0, %s397
      %s400 = sphi 0, %s399
      %s414 = sphi 0, %s400
      %s420 = sphi 0, %s422
      %s423 = sphi 0, %s420
      %s424 = sphi 0, %s423
      %s440 = sphi 0, %s424
    $region4: #{tpu_custom_call.1} parent=1 // loop_header_branch
      %30 = sbr.rel (%p28) target = $region8
    $region5: #{tpu_custom_call.1} parent=1 // loop_body
      %s32 = ssub.s32 %s27, 1
      %s33 = ssub.s32 %s27, 2
      %s34 = sadd.s32 %s27, 1
      %s35 = ssub.s32 %s27, %s34
      %p36 = scmp.eq.s32.totalorder %s35, 0
      %s38 = sadd.s32 %s37, 1
      %s39 = scalar_select %p36, %s37, %s38
      %p42 = pneg %p36
      %p43 = scmp.eq.s32.totalorder %s27, 1
      %p44 = por %p42, %p43
      %p45 = scmp.ne.s32.totalorder %s37, %s40
      %p46 = scmp.eq.s32.totalorder %s27, 0
      %p47 = por %p45, %p46
      %p48 = scmp.ne.s32.totalorder %s37, %s40
      %p49 = scmp.eq.s32.totalorder %s32, 1
      %p50 = por %p48, %p49
      %p51 = scmp.ne.s32.totalorder %s40, %s41
      %p52 = scmp.eq.s32.totalorder %s32, 0
      %p53 = por %p51, %p52
      %p54 = scmp.ne.s32.totalorder %s40, %s41
      %p55 = scmp.eq.s32.totalorder %s33, 1
      %p56 = por %p54, %p55
      %p58 = scmp.ne.s32.totalorder %s41, %s57
      %p59 = scmp.eq.s32.totalorder %s33, 0
      %p60 = por %p58, %p59
      %s62 = sadd.s32 %s61, 1
      %p65 = scmp.eq.s32.totalorder %s27, 1
      %p66 = scmp.ne.s32.totalorder %s61, %s63
      %p67 = scmp.eq.s32.totalorder %s27, 0
      %p68 = por %p66, %p67
      %p69 = scmp.ne.s32.totalorder %s61, %s63
      %p70 = scmp.eq.s32.totalorder %s32, 1
      %p71 = por %p69, %p70
      %p72 = scmp.ne.s32.totalorder %s63, %s64
      %p73 = scmp.eq.s32.totalorder %s32, 0
      %p74 = por %p72, %p73
      %p75 = scmp.ne.s32.totalorder %s63, %s64
      %p76 = scmp.eq.s32.totalorder %s33, 1
      %p77 = por %p75, %p76
      %p79 = scmp.ne.s32.totalorder %s64, %s78
      %p80 = scmp.eq.s32.totalorder %s33, 0
      %p81 = por %p79, %p80
      %s83 = sadd.s32 %s82, 1
      %p86 = scmp.eq.s32.totalorder %s27, 1
      %p87 = scmp.ne.s32.totalorder %s82, %s84
      %p88 = scmp.eq.s32.totalorder %s27, 0
      %p89 = por %p87, %p88
      %p90 = scmp.ne.s32.totalorder %s82, %s84
      %p91 = scmp.eq.s32.totalorder %s32, 1
      %p92 = por %p90, %p91
      %p93 = scmp.ne.s32.totalorder %s84, %s85
      %p94 = scmp.eq.s32.totalorder %s32, 0
      %p95 = por %p93, %p94
      %p96 = scmp.ne.s32.totalorder %s84, %s85
      %p97 = scmp.eq.s32.totalorder %s33, 1
      %p98 = por %p96, %p97
      %p100 = scmp.ne.s32.totalorder %s85, %s99
      %p101 = scmp.eq.s32.totalorder %s33, 0
      %p102 = por %p100, %p101
      %s104 = sadd.s32 %s103, 1
      %p107 = scmp.eq.s32.totalorder %s27, 1
      %p108 = scmp.ne.s32.totalorder %s103, %s105
      %p109 = scmp.eq.s32.totalorder %s27, 0
      %p110 = por %p108, %p109
      %p111 = scmp.ne.s32.totalorder %s103, %s105
      %p112 = scmp.eq.s32.totalorder %s32, 1
      %p113 = por %p111, %p112
      %p114 = scmp.ne.s32.totalorder %s105, %s106
      %p115 = scmp.eq.s32.totalorder %s32, 0
      %p116 = por %p114, %p115
      %p117 = scmp.ne.s32.totalorder %s105, %s106
      %p118 = scmp.eq.s32.totalorder %s33, 1
      %p119 = por %p117, %p118
      %p121 = scmp.ne.s32.totalorder %s106, %s120
      %p122 = scmp.eq.s32.totalorder %s33, 0
      %p123 = por %p121, %p122
      %s125 = sadd.s32 %s124, 1
      %p128 = scmp.eq.s32.totalorder %s27, 1
      %p129 = scmp.ne.s32.totalorder %s124, %s126
      %p130 = scmp.eq.s32.totalorder %s27, 0
      %p131 = por %p129, %p130
      %p132 = scmp.ne.s32.totalorder %s124, %s126
      %p133 = scmp.eq.s32.totalorder %s32, 1
      %p134 = por %p132, %p133
      %p135 = scmp.ne.s32.totalorder %s126, %s127
      %p136 = scmp.eq.s32.totalorder %s32, 0
      %p137 = por %p135, %p136
      %p138 = scmp.ne.s32.totalorder %s126, %s127
      %p139 = scmp.eq.s32.totalorder %s33, 1
      %p140 = por %p138, %p139
      %p142 = scmp.ne.s32.totalorder %s127, %s141
      %p143 = scmp.eq.s32.totalorder %s33, 0
      %p144 = por %p142, %p143
      %s146 = sadd.s32 %s145, 1
      %p149 = scmp.eq.s32.totalorder %s27, 1
      %p150 = scmp.ne.s32.totalorder %s145, %s147
      %p151 = scmp.eq.s32.totalorder %s27, 0
      %p152 = por %p150, %p151
      %p153 = scmp.ne.s32.totalorder %s145, %s147
      %p154 = scmp.eq.s32.totalorder %s32, 1
      %p155 = por %p153, %p154
      %p156 = scmp.ne.s32.totalorder %s147, %s148
      %p157 = scmp.eq.s32.totalorder %s32, 0
      %p158 = por %p156, %p157
      %p159 = scmp.ne.s32.totalorder %s147, %s148
      %p160 = scmp.eq.s32.totalorder %s33, 1
      %p161 = por %p159, %p160
      %p163 = scmp.ne.s32.totalorder %s148, %s162
      %p164 = scmp.eq.s32.totalorder %s33, 0
      %p165 = por %p163, %p164
      %s167 = sadd.s32 %s166, 1
      %p170 = scmp.eq.s32.totalorder %s27, 1
      %p171 = scmp.ne.s32.totalorder %s166, %s168
      %p172 = scmp.eq.s32.totalorder %s27, 0
      %p173 = por %p171, %p172
      %p174 = scmp.ne.s32.totalorder %s166, %s168
      %p175 = scmp.eq.s32.totalorder %s32, 1
      %p176 = por %p174, %p175
      %p177 = scmp.ne.s32.totalorder %s168, %s169
      %p178 = scmp.eq.s32.totalorder %s32, 0
      %p179 = por %p177, %p178
      %p180 = scmp.ne.s32.totalorder %s168, %s169
      %p181 = scmp.eq.s32.totalorder %s33, 1
      %p182 = por %p180, %p181
      %p184 = scmp.ne.s32.totalorder %s169, %s183
      %p185 = scmp.eq.s32.totalorder %s33, 0
      %p186 = por %p184, %p185
      %s188 = sadd.s32 %s187, 1
      %p191 = scmp.eq.s32.totalorder %s27, 1
      %p192 = scmp.ne.s32.totalorder %s187, %s189
      %p193 = scmp.eq.s32.totalorder %s27, 0
      %p194 = por %p192, %p193
      %p195 = scmp.ne.s32.totalorder %s187, %s189
      %p196 = scmp.eq.s32.totalorder %s32, 1
      %p197 = por %p195, %p196
      %p198 = scmp.ne.s32.totalorder %s189, %s190
      %p199 = scmp.eq.s32.totalorder %s32, 0
      %p200 = por %p198, %p199
      %p201 = scmp.ne.s32.totalorder %s189, %s190
      %p202 = scmp.eq.s32.totalorder %s33, 1
      %p203 = por %p201, %p202
      %p205 = scmp.ne.s32.totalorder %s190, %s204
      %p206 = scmp.eq.s32.totalorder %s33, 0
      %p207 = por %p205, %p206
      %s209 = sadd.s32 %s208, 1
      %p212 = scmp.eq.s32.totalorder %s27, 1
      %p213 = scmp.ne.s32.totalorder %s208, %s210
      %p214 = scmp.eq.s32.totalorder %s27, 0
      %p215 = por %p213, %p214
      %p216 = scmp.ne.s32.totalorder %s208, %s210
      %p217 = scmp.eq.s32.totalorder %s32, 1
      %p218 = por %p216, %p217
      %p219 = scmp.ne.s32.totalorder %s210, %s211
      %p220 = scmp.eq.s32.totalorder %s32, 0
      %p221 = por %p219, %p220
      %p222 = scmp.ne.s32.totalorder %s210, %s211
      %p223 = scmp.eq.s32.totalorder %s33, 1
      %p224 = por %p222, %p223
      %p226 = scmp.ne.s32.totalorder %s211, %s225
      %p227 = scmp.eq.s32.totalorder %s33, 0
      %p228 = por %p226, %p227
      %s230 = sadd.s32 %s229, 1
      %p233 = scmp.eq.s32.totalorder %s27, 1
      %p234 = scmp.ne.s32.totalorder %s229, %s231
      %p235 = scmp.eq.s32.totalorder %s27, 0
      %p236 = por %p234, %p235
      %p237 = scmp.ne.s32.totalorder %s229, %s231
      %p238 = scmp.eq.s32.totalorder %s32, 1
      %p239 = por %p237, %p238
      %p240 = scmp.ne.s32.totalorder %s231, %s232
      %p241 = scmp.eq.s32.totalorder %s32, 0
      %p242 = por %p240, %p241
      %p243 = scmp.ne.s32.totalorder %s231, %s232
      %p244 = scmp.eq.s32.totalorder %s33, 1
      %p245 = por %p243, %p244
      %p247 = scmp.ne.s32.totalorder %s232, %s246
      %p248 = scmp.eq.s32.totalorder %s33, 0
      %p249 = por %p247, %p248
      %s251 = sadd.s32 %s250, 1
      %p254 = scmp.eq.s32.totalorder %s27, 1
      %p255 = scmp.ne.s32.totalorder %s250, %s252
      %p256 = scmp.eq.s32.totalorder %s27, 0
      %p257 = por %p255, %p256
      %p258 = scmp.ne.s32.totalorder %s250, %s252
      %p259 = scmp.eq.s32.totalorder %s32, 1
      %p260 = por %p258, %p259
      %p261 = scmp.ne.s32.totalorder %s252, %s253
      %p262 = scmp.eq.s32.totalorder %s32, 0
      %p263 = por %p261, %p262
      %p264 = scmp.ne.s32.totalorder %s252, %s253
      %p265 = scmp.eq.s32.totalorder %s33, 1
      %p266 = por %p264, %p265
      %p268 = scmp.ne.s32.totalorder %s253, %s267
      %p269 = scmp.eq.s32.totalorder %s33, 0
      %p270 = por %p268, %p269
      %s272 = sadd.s32 %s271, 1
      %p275 = scmp.eq.s32.totalorder %s27, 1
      %p276 = scmp.ne.s32.totalorder %s271, %s273
      %p277 = scmp.eq.s32.totalorder %s27, 0
      %p278 = por %p276, %p277
      %p279 = scmp.ne.s32.totalorder %s271, %s273
      %p280 = scmp.eq.s32.totalorder %s32, 1
      %p281 = por %p279, %p280
      %p282 = scmp.ne.s32.totalorder %s273, %s274
      %p283 = scmp.eq.s32.totalorder %s32, 0
      %p284 = por %p282, %p283
      %p285 = scmp.ne.s32.totalorder %s273, %s274
      %p286 = scmp.eq.s32.totalorder %s33, 1
      %p287 = por %p285, %p286
      %p289 = scmp.ne.s32.totalorder %s274, %s288
      %p290 = scmp.eq.s32.totalorder %s33, 0
      %p291 = por %p289, %p290
      %s293 = sadd.s32 %s292, 1
      %p296 = scmp.eq.s32.totalorder %s27, 1
      %p297 = scmp.ne.s32.totalorder %s292, %s294
      %p298 = scmp.eq.s32.totalorder %s27, 0
      %p299 = por %p297, %p298
      %p300 = scmp.ne.s32.totalorder %s292, %s294
      %p301 = scmp.eq.s32.totalorder %s32, 1
      %p302 = por %p300, %p301
      %p303 = scmp.ne.s32.totalorder %s294, %s295
      %p304 = scmp.eq.s32.totalorder %s32, 0
      %p305 = por %p303, %p304
      %p306 = scmp.ne.s32.totalorder %s294, %s295
      %p307 = scmp.eq.s32.totalorder %s33, 1
      %p308 = por %p306, %p307
      %p310 = scmp.ne.s32.totalorder %s295, %s309
      %p311 = scmp.eq.s32.totalorder %s33, 0
      %p312 = por %p310, %p311
      %s314 = sadd.s32 %s313, 1
      %p317 = scmp.eq.s32.totalorder %s27, 1
      %p318 = scmp.ne.s32.totalorder %s313, %s315
      %p319 = scmp.eq.s32.totalorder %s27, 0
      %p320 = por %p318, %p319
      %p321 = scmp.ne.s32.totalorder %s313, %s315
      %p322 = scmp.eq.s32.totalorder %s32, 1
      %p323 = por %p321, %p322
      %p324 = scmp.ne.s32.totalorder %s315, %s316
      %p325 = scmp.eq.s32.totalorder %s32, 0
      %p326 = por %p324, %p325
      %p327 = scmp.ne.s32.totalorder %s315, %s316
      %p328 = scmp.eq.s32.totalorder %s33, 1
      %p329 = por %p327, %p328
      %p331 = scmp.ne.s32.totalorder %s316, %s330
      %p332 = scmp.eq.s32.totalorder %s33, 0
      %p333 = por %p331, %p332
      %s335 = sadd.s32 %s334, 1
      %p338 = scmp.eq.s32.totalorder %s27, 1
      %p339 = scmp.ne.s32.totalorder %s334, %s336
      %p340 = scmp.eq.s32.totalorder %s27, 0
      %p341 = por %p339, %p340
      %p342 = scmp.ne.s32.totalorder %s334, %s336
      %p343 = scmp.eq.s32.totalorder %s32, 1
      %p344 = por %p342, %p343
      %p345 = scmp.ne.s32.totalorder %s336, %s337
      %p346 = scmp.eq.s32.totalorder %s32, 0
      %p347 = por %p345, %p346
      %p348 = scmp.ne.s32.totalorder %s336, %s337
      %p349 = scmp.eq.s32.totalorder %s33, 1
      %p350 = por %p348, %p349
      %p352 = scmp.ne.s32.totalorder %s337, %s351
      %p353 = scmp.eq.s32.totalorder %s33, 0
      %p354 = por %p352, %p353
      %s356 = sadd.s32 %s355, 1
      %p359 = scmp.eq.s32.totalorder %s27, 1
      %p360 = scmp.ne.s32.totalorder %s355, %s357
      %p361 = scmp.eq.s32.totalorder %s27, 0
      %p362 = por %p360, %p361
      %p363 = scmp.ne.s32.totalorder %s355, %s357
      %p364 = scmp.eq.s32.totalorder %s32, 1
      %p365 = por %p363, %p364
      %p366 = scmp.ne.s32.totalorder %s357, %s358
      %p367 = scmp.eq.s32.totalorder %s32, 0
      %p368 = por %p366, %p367
      %p369 = scmp.ne.s32.totalorder %s357, %s358
      %p370 = scmp.eq.s32.totalorder %s33, 1
      %p371 = por %p369, %p370
      %p373 = scmp.ne.s32.totalorder %s358, %s372
      %p374 = scmp.eq.s32.totalorder %s33, 0
      %p375 = por %p373, %p374
      %s377 = sadd.s32 %s376, 1
      %p380 = scmp.eq.s32.totalorder %s27, 1
      %p381 = scmp.ne.s32.totalorder %s376, %s378
      %p382 = scmp.eq.s32.totalorder %s27, 0
      %p383 = por %p381, %p382
      %p384 = scmp.ne.s32.totalorder %s376, %s378
      %p385 = scmp.eq.s32.totalorder %s32, 1
      %p386 = por %p384, %p385
      %p387 = scmp.ne.s32.totalorder %s378, %s379
      %p388 = scmp.eq.s32.totalorder %s32, 0
      %p389 = por %p387, %p388
      %p390 = scmp.ne.s32.totalorder %s378, %s379
      %p391 = scmp.eq.s32.totalorder %s33, 1
      %p392 = por %p390, %p391
      %p394 = scmp.ne.s32.totalorder %s379, %s393
      %p395 = scmp.eq.s32.totalorder %s33, 0
      %p396 = por %p394, %p395
      %s398 = sadd.s32 %s397, 1
      %p401 = scmp.eq.s32.totalorder %s27, 1
      %p402 = scmp.ne.s32.totalorder %s397, %s399
      %p403 = scmp.eq.s32.totalorder %s27, 0
      %p404 = por %p402, %p403
      %p405 = scmp.ne.s32.totalorder %s397, %s399
      %p406 = scmp.eq.s32.totalorder %s32, 1
      %p407 = por %p405, %p406
      %p408 = scmp.ne.s32.totalorder %s399, %s400
      %p409 = scmp.eq.s32.totalorder %s32, 0
      %p410 = por %p408, %p409
      %p411 = scmp.ne.s32.totalorder %s399, %s400
      %p412 = scmp.eq.s32.totalorder %s33, 1
      %p413 = por %p411, %p412
      %p415 = scmp.ne.s32.totalorder %s400, %s414
      %p416 = scmp.eq.s32.totalorder %s33, 0
      %p417 = por %p415, %p416
      %s418 = ssub.s32 %s27, %s34
      %p419 = scmp.eq.s32.totalorder %s418, 0
      %s421 = sadd.s32 %s420, 1
      %s422 = scalar_select %p419, %s420, %s421
      %p425 = pneg %p419
      %p426 = scmp.eq.s32.totalorder %s27, 1
      %p427 = por %p425, %p426
      %p428 = scmp.ne.s32.totalorder %s420, %s423
      %p429 = scmp.eq.s32.totalorder %s27, 0
      %p430 = por %p428, %p429
      %p431 = scmp.ne.s32.totalorder %s420, %s423
      %p432 = scmp.eq.s32.totalorder %s32, 1
      %p433 = por %p431, %p432
      %p434 = scmp.ne.s32.totalorder %s423, %s424
      %p435 = scmp.eq.s32.totalorder %s32, 0
      %p436 = por %p434, %p435
      %p437 = scmp.ne.s32.totalorder %s423, %s424
      %p438 = scmp.eq.s32.totalorder %s33, 1
      %p439 = por %p437, %p438
      %p441 = scmp.ne.s32.totalorder %s424, %s440
      %p442 = scmp.eq.s32.totalorder %s33, 0
      %p443 = por %p441, %p442
      %p444 = scmp.le.s32.totalorder 1, %s27
      %p445 = scmp.lt.s32.totalorder %s27, 3
      %p446 = pnand %p444, %p445
      %p447 = pneg %p446
      // Predicated region
      $region9: #{tpu_custom_call.1} parent=5 // pred_check
        _
      $region10: #{tpu_custom_call.1} parent=5 // pred_check_branch
        %449 = sbr.rel (%p446) target = $region12
      $region11: #{tpu_custom_call.1} parent=5 // pred_region
        %s450 = ssub.s32 %s27, 1
        // Predicated region
        $region13: #{tpu_custom_call.1} parent=11 // pred_check
          %p451 = pneg %p74
        $region14: #{tpu_custom_call.1} parent=11 // pred_check_branch
          %453 = sbr.rel (%p451) target = $region16
        $region15: #{tpu_custom_call.1} parent=11 // pred_region
          _
        $region16: #{tpu_custom_call.1} parent=11 // pred_fallthru
          _
        // Predicated region
        $region17: #{tpu_custom_call.1} parent=11 // pred_check
          %p454 = pneg %p95
        $region18: #{tpu_custom_call.1} parent=11 // pred_check_branch
          %456 = sbr.rel (%p454) target = $region20
        $region19: #{tpu_custom_call.1} parent=11 // pred_region
          _
        $region20: #{tpu_custom_call.1} parent=11 // pred_fallthru
          _
        // Predicated region
        $region21: #{tpu_custom_call.1} parent=11 // pred_check
          %p457 = pneg %p116
        $region22: #{tpu_custom_call.1} parent=11 // pred_check_branch
          %459 = sbr.rel (%p457) target = $region24
        $region23: #{tpu_custom_call.1} parent=11 // pred_region
          _
        $region24: #{tpu_custom_call.1} parent=11 // pred_fallthru
          _
        // Predicated region
        $region25: #{tpu_custom_call.1} parent=11 // pred_check
          %p460 = pneg %p137
        $region26: #{tpu_custom_call.1} parent=11 // pred_check_branch
          %462 = sbr.rel (%p460) target = $region28
        $region27: #{tpu_custom_call.1} parent=11 // pred_region
          _
        $region28: #{tpu_custom_call.1} parent=11 // pred_fallthru
          _
        // Predicated region
        $region29: #{tpu_custom_call.1} parent=11 // pred_check
          %p463 = pneg %p158
        $region30: #{tpu_custom_call.1} parent=11 // pred_check_branch
          %465 = sbr.rel (%p463) target = $region32
        $region31: #{tpu_custom_call.1} parent=11 // pred_region
          _
        $region32: #{tpu_custom_call.1} parent=11 // pred_fallthru
          _
        // Predicated region
        $region33: #{tpu_custom_call.1} parent=11 // pred_check
          %p466 = pneg %p179
        $region34: #{tpu_custom_call.1} parent=11 // pred_check_branch
          %468 = sbr.rel (%p466) target = $region36
        $region35: #{tpu_custom_call.1} parent=11 // pred_region
          _
        $region36: #{tpu_custom_call.1} parent=11 // pred_fallthru
          _
        // Predicated region
        $region37: #{tpu_custom_call.1} parent=11 // pred_check
          %p469 = pneg %p200
        $region38: #{tpu_custom_call.1} parent=11 // pred_check_branch
          %471 = sbr.rel (%p469) target = $region40
        $region39: #{tpu_custom_call.1} parent=11 // pred_region
          _
        $region40: #{tpu_custom_call.1} parent=11 // pred_fallthru
          _
        // Predicated region
        $region41: #{tpu_custom_call.1} parent=11 // pred_check
          %p472 = pneg %p221
        $region42: #{tpu_custom_call.1} parent=11 // pred_check_branch
          %474 = sbr.rel (%p472) target = $region44
        $region43: #{tpu_custom_call.1} parent=11 // pred_region
          _
        $region44: #{tpu_custom_call.1} parent=11 // pred_fallthru
          _
        // Predicated region
        $region45: #{tpu_custom_call.1} parent=11 // pred_check
          %p475 = pneg %p242
        $region46: #{tpu_custom_call.1} parent=11 // pred_check_branch
          %477 = sbr.rel (%p475) target = $region48
        $region47: #{tpu_custom_call.1} parent=11 // pred_region
          _
        $region48: #{tpu_custom_call.1} parent=11 // pred_fallthru
          _
        // Predicated region
        $region49: #{tpu_custom_call.1} parent=11 // pred_check
          %p478 = pneg %p263
        $region50: #{tpu_custom_call.1} parent=11 // pred_check_branch
          %480 = sbr.rel (%p478) target = $region52
        $region51: #{tpu_custom_call.1} parent=11 // pred_region
          _
        $region52: #{tpu_custom_call.1} parent=11 // pred_fallthru
          _
        // Predicated region
        $region53: #{tpu_custom_call.1} parent=11 // pred_check
          %p481 = pneg %p284
        $region54: #{tpu_custom_call.1} parent=11 // pred_check_branch
          %483 = sbr.rel (%p481) target = $region56
        $region55: #{tpu_custom_call.1} parent=11 // pred_region
          _
        $region56: #{tpu_custom_call.1} parent=11 // pred_fallthru
          _
        // Predicated region
        $region57: #{tpu_custom_call.1} parent=11 // pred_check
          %p484 = pneg %p305
        $region58: #{tpu_custom_call.1} parent=11 // pred_check_branch
          %486 = sbr.rel (%p484) target = $region60
        $region59: #{tpu_custom_call.1} parent=11 // pred_region
          _
        $region60: #{tpu_custom_call.1} parent=11 // pred_fallthru
          _
        // Predicated region
        $region61: #{tpu_custom_call.1} parent=11 // pred_check
          %p487 = pneg %p326
        $region62: #{tpu_custom_call.1} parent=11 // pred_check_branch
          %489 = sbr.rel (%p487) target = $region64
        $region63: #{tpu_custom_call.1} parent=11 // pred_region
          _
        $region64: #{tpu_custom_call.1} parent=11 // pred_fallthru
          _
        // Predicated region
        $region65: #{tpu_custom_call.1} parent=11 // pred_check
          %p490 = pneg %p347
        $region66: #{tpu_custom_call.1} parent=11 // pred_check_branch
          %492 = sbr.rel (%p490) target = $region68
        $region67: #{tpu_custom_call.1} parent=11 // pred_region
          _
        $region68: #{tpu_custom_call.1} parent=11 // pred_fallthru
          _
        // Predicated region
        $region69: #{tpu_custom_call.1} parent=11 // pred_check
          %p493 = pneg %p368
        $region70: #{tpu_custom_call.1} parent=11 // pred_check_branch
          %495 = sbr.rel (%p493) target = $region72
        $region71: #{tpu_custom_call.1} parent=11 // pred_region
          _
        $region72: #{tpu_custom_call.1} parent=11 // pred_fallthru
          _
        // Predicated region
        $region73: #{tpu_custom_call.1} parent=11 // pred_check
          %p496 = pneg %p389
        $region74: #{tpu_custom_call.1} parent=11 // pred_check_branch
          %498 = sbr.rel (%p496) target = $region76
        $region75: #{tpu_custom_call.1} parent=11 // pred_region
          _
        $region76: #{tpu_custom_call.1} parent=11 // pred_fallthru
          _
        // Predicated region
        $region77: #{tpu_custom_call.1} parent=11 // pred_check
          %p499 = pneg %p410
        $region78: #{tpu_custom_call.1} parent=11 // pred_check_branch
          %501 = sbr.rel (%p499) target = $region80
        $region79: #{tpu_custom_call.1} parent=11 // pred_region
          _
        $region80: #{tpu_custom_call.1} parent=11 // pred_fallthru
          _
      $region12: #{tpu_custom_call.1} parent=5 // pred_fallthru
        _
      %p502 = scmp.lt.s32.totalorder %s27, 2
      // Predicated region
      $region81: #{tpu_custom_call.1} parent=5 // pred_check
        %p503 = pneg %p502
      $region82: #{tpu_custom_call.1} parent=5 // pred_check_branch
        %505 = sbr.rel (%p503) target = $region84
      $region83: #{tpu_custom_call.1} parent=5 // pred_region
        // Predicated region
        $region85: #{tpu_custom_call.1} parent=83 // pred_check
          %p506 = pneg %p47
        $region86: #{tpu_custom_call.1} parent=83 // pred_check_branch
          %508 = sbr.rel (%p506) target = $region88
        $region87: #{tpu_custom_call.1} parent=83 // pred_region
          %p509 = scmp.lt.s32.totalorder %s27, 1
          %s510 = scalar_select %p509, %s27, 1
          %s511 = smul.addr %s510, 8
          %s512 = scalar_lea.vmem %s0, %s511
        $region88: #{tpu_custom_call.1} parent=83 // pred_fallthru
          _
      $region84: #{tpu_custom_call.1} parent=5 // pred_fallthru
        _
      %p513 = scmp.le.s32.totalorder 1, %s27
      %p514 = scmp.lt.s32.totalorder %s27, 3
      %p515 = pnand %p513, %p514
      %p516 = pneg %p515
      // Predicated region
      $region89: #{tpu_custom_call.1} parent=5 // pred_check
        _
      $region90: #{tpu_custom_call.1} parent=5 // pred_check_branch
        %518 = sbr.rel (%p515) target = $region92
      $region91: #{tpu_custom_call.1} parent=5 // pred_region
        %s519 = ssub.s32 %s27, 1
        %p520 = scmp.lt.s32.totalorder %s32, 1
        %s521 = scalar_select %p520, %s32, 1
        %s522 = smul.addr %s521, 8
        %s523 = scalar_lea.vmem %s0, %s522
        %p524 = pneg %p53
        %p525 = pneg %p50
        %p526 = pneg %p74
        %p527 = pneg %p71
        %p528 = pneg %p95
        %p529 = pneg %p92
        %p530 = pneg %p116
        %p531 = pneg %p113
        %p532 = pneg %p137
        %p533 = pneg %p134
        %p534 = pneg %p158
        %p535 = pneg %p155
        %p536 = pneg %p179
        %p537 = pneg %p176
        %p538 = pneg %p200
        %p539 = pneg %p197
        %p540 = pneg %p221
        %p541 = pneg %p218
        %p542 = pneg %p242
        %p543 = pneg %p239
        %p544 = pneg %p263
        %p545 = pneg %p260
        %p546 = pneg %p284
        %p547 = pneg %p281
        %p548 = pneg %p305
        %p549 = pneg %p302
        %p550 = pneg %p326
        %p551 = pneg %p323
        %p552 = pneg %p347
        %p553 = pneg %p344
        %p554 = pneg %p368
        %p555 = pneg %p365
        %p556 = pneg %p389
        %p557 = pneg %p386
        %p558 = pneg %p410
        %p559 = pneg %p407
        %p560 = pneg %p436
        %p561 = pneg %p433
        %s562 = sand.u32 %s423, 1
        %s563 = scalar_lea.sflag [#allocation3], %s562
        %s564 = sand.u32 %s423, 1
        %s565 = scalar_lea.vmem [#allocation2], %s564
        %p566 = scmp.lt.s32.totalorder %s32, 1
        %s567 = scalar_select %p566, %s32, 1
        %s568 = smul.addr %s567, 8
        %s569 = scalar_lea.vmem %s0, %s568
        %v570 = vld [vmem:[%s569] sm:$0xff]
        %v571 = vld [vmem:[%s1] sm:$0xff]
        %v572 = vld [vmem:[%s1 + $0x8] sm:$0xff]
        %v573 = vld [vmem:[%s2] sm:$0x1]
        %v575 = vlaneseq
        %v576 = vshrl.u32 %v575, 7
        %v577 = vsub.s32 0, %v576
        %v578 = vrot.slane %v573, %v577
        %vm580 = vcmask 130048
        %v582 = vsel %vm580, %v570, 0
        %584 = vmatprep.subr.mxu0 0.0
        %585 = vmatpush1.msra.mxu0 %v571
        %586 = vmatprep.subr.mxu0 0.0
        %587 = vmatpush1.msra.mxu0 %v572
        %588 = vmatprep.subr.mxu0 0.0
        %589 = vmatpush1.msra.mxu0 0.0
        %590 = vmatprep.subr.mxu0 0.0
        %591 = vmatpush1.msra.mxu0 0.0
        %592 = vmatprep.subr.mxu0 0.0
        %593 = vmatpush1.msra.mxu0 0.0
        %594 = vmatprep.subr.mxu0 0.0
        %595 = vmatpush1.msra.mxu0 0.0
        %596 = vmatprep.subr.mxu0 0.0
        %597 = vmatpush1.msra.mxu0 0.0
        %598 = vmatprep.subr.mxu0 0.0
        %599 = vmatpush1.msra.mxu0 0.0
        %600 = vmatprep.subr.mxu0 0.0
        %601 = vmatpush1.msra.mxu0 0.0
        %602 = vmatprep.subr.mxu0 0.0
        %603 = vmatpush1.msra.mxu0 0.0
        %604 = vmatprep.subr.mxu0 0.0
        %605 = vmatpush1.msra.mxu0 0.0
        %606 = vmatprep.subr.mxu0 0.0
        %607 = vmatpush1.msra.mxu0 0.0
        %608 = vmatprep.subr.mxu0 0.0
        %609 = vmatpush1.msra.mxu0 0.0
        %610 = vmatprep.subr.mxu0 0.0
        %611 = vmatpush1.msra.mxu0 0.0
        %612 = vmatprep.subr.mxu0 0.0
        %613 = vmatpush1.msra.mxu0 0.0
        %614 = vmatprep.subr.mxu0 0.0
        %615 = vmatpush1.msra.mxu0 0.0
        %616 = vmatprep.subr.mxu0 0.0
        %617 = vmatpush1.msra.mxu0 0.0
        %618 = vmatprep.subr.mxu0 0.0
        %619 = vmatpush1.msra.mxu0 0.0
        %620 = vmatprep.subr.mxu0 0.0
        %621 = vmatpush1.msra.mxu0 0.0
        %622 = vmatprep.subr.mxu0 0.0
        %623 = vmatpush1.msra.mxu0 0.0
        %624 = vmatprep.subr.mxu0 0.0
        %625 = vmatpush1.msra.mxu0 0.0
        %626 = vmatprep.subr.mxu0 0.0
        %627 = vmatpush1.msra.mxu0 0.0
        %628 = vmatprep.subr.mxu0 0.0
        %629 = vmatpush1.msra.mxu0 0.0
        %630 = vmatprep.subr.mxu0 0.0
        %631 = vmatpush1.msra.mxu0 0.0
        %632 = vmatprep.subr.mxu0 0.0
        %633 = vmatpush1.msra.mxu0 0.0
        %634 = vmatprep.subr.mxu0 0.0
        %635 = vmatpush1.msra.mxu0 0.0
        %636 = vmatprep.subr.mxu0 0.0
        %637 = vmatpush1.msra.mxu0 0.0
        %638 = vmatprep.subr.mxu0 0.0
        %639 = vmatpush1.msra.mxu0 0.0
        %640 = vmatprep.subr.mxu0 0.0
        %641 = vmatpush1.msra.mxu0 0.0
        %642 = vmatprep.subr.mxu0 0.0
        %643 = vmatpush1.msra.mxu0 0.0
        %644 = vmatprep.subr.mxu0 0.0
        %645 = vmatpush1.msra.mxu0 0.0
        %646 = vmatprep.subr.mxu0 0.0
        %647 = vmatpush1.msra.mxu0 0.0
        %648 = vmatprep.mubr.f32.mxu0 0.0
        %649 = vmatmul.mubr.f32.gmra.mrb[0].mxu0 %v582
        %v650 = vpop.f32.mrb[0].mxu0
        %v651 = vadd.f32 %v578, %v650
        %v652 = vpop.f32.mrb[0].mxu0
        %653 = vdwg.mxu0
        %v654 = vld [vmem:[%s3] sm:$0x1]
        %v655 = vld [vmem:[%s4] sm:$0x1]
        %vm656 = vcmask 261120
        %v657 = vsel %vm656, %v651, 0.0
        %658 = vadd.xlane.f32.xlu0 %v657
        %v659 = vpop.xlane.xlu0 %658
        %v660 = vrcp.pop 32.0
        %v661 = vmul.f32 %v659, %v660
        %v662 = vsub.f32 %v651, %v661
        %v663 = vmul.f32 %v662, %v662
        %v664 = vsel %vm656, %v663, 0.0
        %665 = vadd.xlane.f32.xlu0 %v664
        %v666 = vpop.xlane.xlu0 %665
        %v667 = vmul.f32 %v666, %v660
        %v668 = vadd.f32 %v667, 1e-05
        %v669 = vrsqrt.pop %v668
        %v670 = vmul.f32 %v662, %v669
        %v672 = vlaneseq
        %v673 = vshrl.u32 %v672, 7
        %v674 = vsub.s32 0, %v673
        %v675 = vrot.slane %v654, %v674
        %v677 = vmul.f32 %v670, %v675
        %v679 = vlaneseq
        %v680 = vshrl.u32 %v679, 7
        %v681 = vsub.s32 0, %v680
        %v682 = vrot.slane %v655, %v681
        %v684 = vadd.f32 %v677, %v682
        %v685 = vld [vmem:[%s5] sm:$0xff]
        %v686 = vld [vmem:[%s5 + $0x8] sm:$0xff]
        %v687 = vld [vmem:[%s5 + $0x10] sm:$0xff]
        %v688 = vld [vmem:[%s5 + $0x18] sm:$0xff]
        %v690 = vsel %vm656, %v684, 0
        %692 = vmatprep.subr.mxu0 0.0
        %693 = vmatpush1.msra.mxu0 %v685
        %694 = vmatprep.subr.mxu0 0.0
        %695 = vmatpush1.msra.mxu0 %v686
        %696 = vmatprep.subr.mxu0 0.0
        %697 = vmatpush1.msra.mxu0 %v687
        %698 = vmatprep.subr.mxu0 0.0
        %699 = vmatpush1.msra.mxu0 %v688
        %700 = vmatprep.subr.mxu0 0.0
        %701 = vmatpush1.msra.mxu0 0.0
        %702 = vmatprep.subr.mxu0 0.0
        %703 = vmatpush1.msra.mxu0 0.0
        %704 = vmatprep.subr.mxu0 0.0
        %705 = vmatpush1.msra.mxu0 0.0
        %706 = vmatprep.subr.mxu0 0.0
        %707 = vmatpush1.msra.mxu0 0.0
        %708 = vmatprep.subr.mxu0 0.0
        %709 = vmatpush1.msra.mxu0 0.0
        %710 = vmatprep.subr.mxu0 0.0
        %711 = vmatpush1.msra.mxu0 0.0
        %712 = vmatprep.subr.mxu0 0.0
        %713 = vmatpush1.msra.mxu0 0.0
        %714 = vmatprep.subr.mxu0 0.0
        %715 = vmatpush1.msra.mxu0 0.0
        %716 = vmatprep.subr.mxu0 0.0
        %717 = vmatpush1.msra.mxu0 0.0
        %718 = vmatprep.subr.mxu0 0.0
        %719 = vmatpush1.msra.mxu0 0.0
        %720 = vmatprep.subr.mxu0 0.0
        %721 = vmatpush1.msra.mxu0 0.0
        %722 = vmatprep.subr.mxu0 0.0
        %723 = vmatpush1.msra.mxu0 0.0
        %724 = vmatprep.subr.mxu0 0.0
        %725 = vmatpush1.msra.mxu0 0.0
        %726 = vmatprep.subr.mxu0 0.0
        %727 = vmatpush1.msra.mxu0 0.0
        %728 = vmatprep.subr.mxu0 0.0
        %729 = vmatpush1.msra.mxu0 0.0
        %730 = vmatprep.subr.mxu0 0.0
        %731 = vmatpush1.msra.mxu0 0.0
        %732 = vmatprep.subr.mxu0 0.0
        %733 = vmatpush1.msra.mxu0 0.0
        %734 = vmatprep.subr.mxu0 0.0
        %735 = vmatpush1.msra.mxu0 0.0
        %736 = vmatprep.subr.mxu0 0.0
        %737 = vmatpush1.msra.mxu0 0.0
        %738 = vmatprep.subr.mxu0 0.0
        %739 = vmatpush1.msra.mxu0 0.0
        %740 = vmatprep.subr.mxu0 0.0
        %741 = vmatpush1.msra.mxu0 0.0
        %742 = vmatprep.subr.mxu0 0.0
        %743 = vmatpush1.msra.mxu0 0.0
        %744 = vmatprep.subr.mxu0 0.0
        %745 = vmatpush1.msra.mxu0 0.0
        %746 = vmatprep.subr.mxu0 0.0
        %747 = vmatpush1.msra.mxu0 0.0
        %748 = vmatprep.subr.mxu0 0.0
        %749 = vmatpush1.msra.mxu0 0.0
        %750 = vmatprep.subr.mxu0 0.0
        %751 = vmatpush1.msra.mxu0 0.0
        %752 = vmatprep.subr.mxu0 0.0
        %753 = vmatpush1.msra.mxu0 0.0
        %754 = vmatprep.subr.mxu0 0.0
        %755 = vmatpush1.msra.mxu0 0.0
        %756 = vmatprep.mubr.f32.mxu0 0.0
        %757 = vmatmul.mubr.f32.gmra.mrb[0].mxu0 %v690
        %v758 = vpop.f32.mrb[0].mxu0
        %v759 = vadd.f32 0.0, %v758
        %v760 = vpop.f32.mrb[0].mxu0
        %761 = vdwg.mxu0
        %763 = vrot.lane.b32.xlu0 %v759, 96
        %v764 = vpop.permute.xlu0 %763
        %vm765 = vcmask 64512
        %v766 = vsel %vm765, %v759, 0
        %v768 = vsel %vm765, %v764, 0
        %770 = vmatprep.subr.mxu0 0.0
        %771 = vmatpush1.xpose.msra.mxu0 %v768
        %772 = vmatprep.subr.mxu0 0.0
        %773 = vmatpush1.xpose.msra.mxu0 0.0
        %774 = vmatprep.subr.mxu0 0.0
        %775 = vmatpush1.xpose.msra.mxu0 0.0
        %776 = vmatprep.subr.mxu0 0.0
        %777 = vmatpush1.xpose.msra.mxu0 0.0
        %778 = vmatprep.subr.mxu0 0.0
        %779 = vmatpush1.xpose.msra.mxu0 0.0
        %780 = vmatprep.subr.mxu0 0.0
        %781 = vmatpush1.xpose.msra.mxu0 0.0
        %782 = vmatprep.subr.mxu0 0.0
        %783 = vmatpush1.xpose.msra.mxu0 0.0
        %784 = vmatprep.subr.mxu0 0.0
        %785 = vmatpush1.xpose.msra.mxu0 0.0
        %786 = vmatprep.subr.mxu0 0.0
        %787 = vmatpush1.xpose.msra.mxu0 0.0
        %788 = vmatprep.subr.mxu0 0.0
        %789 = vmatpush1.xpose.msra.mxu0 0.0
        %790 = vmatprep.subr.mxu0 0.0
        %791 = vmatpush1.xpose.msra.mxu0 0.0
        %792 = vmatprep.subr.mxu0 0.0
        %793 = vmatpush1.xpose.msra.mxu0 0.0
        %794 = vmatprep.subr.mxu0 0.0
        %795 = vmatpush1.xpose.msra.mxu0 0.0
        %796 = vmatprep.subr.mxu0 0.0
        %797 = vmatpush1.xpose.msra.mxu0 0.0
        %798 = vmatprep.subr.mxu0 0.0
        %799 = vmatpush1.xpose.msra.mxu0 0.0
        %800 = vmatprep.subr.mxu0 0.0
        %801 = vmatpush1.xpose.msra.mxu0 0.0
        %802 = vmatprep.subr.mxu0 0.0
        %803 = vmatpush1.xpose.msra.mxu0 0.0
        %804 = vmatprep.subr.mxu0 0.0
        %805 = vmatpush1.xpose.msra.mxu0 0.0
        %806 = vmatprep.subr.mxu0 0.0
        %807 = vmatpush1.xpose.msra.mxu0 0.0
        %808 = vmatprep.subr.mxu0 0.0
        %809 = vmatpush1.xpose.msra.mxu0 0.0
        %810 = vmatprep.subr.mxu0 0.0
        %811 = vmatpush1.xpose.msra.mxu0 0.0
        %812 = vmatprep.subr.mxu0 0.0
        %813 = vmatpush1.xpose.msra.mxu0 0.0
        %814 = vmatprep.subr.mxu0 0.0
        %815 = vmatpush1.xpose.msra.mxu0 0.0
        %816 = vmatprep.subr.mxu0 0.0
        %817 = vmatpush1.xpose.msra.mxu0 0.0
        %818 = vmatprep.subr.mxu0 0.0
        %819 = vmatpush1.xpose.msra.mxu0 0.0
        %820 = vmatprep.subr.mxu0 0.0
        %821 = vmatpush1.xpose.msra.mxu0 0.0
        %822 = vmatprep.subr.mxu0 0.0
        %823 = vmatpush1.xpose.msra.mxu0 0.0
        %824 = vmatprep.subr.mxu0 0.0
        %825 = vmatpush1.xpose.msra.mxu0 0.0
        %826 = vmatprep.subr.mxu0 0.0
        %827 = vmatpush1.xpose.msra.mxu0 0.0
        %828 = vmatprep.subr.mxu0 0.0
        %829 = vmatpush1.xpose.msra.mxu0 0.0
        %830 = vmatprep.subr.mxu0 0.0
        %831 = vmatpush1.xpose.msra.mxu0 0.0
        %832 = vmatprep.subr.mxu0 0.0
        %833 = vmatpush1.xpose.msra.mxu0 0.0
        %834 = vmatprep.mubr.f32.mxu0 0.0
        %835 = vmatmul.mubr.f32.gmra.mrb[0].mxu0 %v766
        %v836 = vpop.f32.mrb[0].mxu0
        %v837 = vadd.f32 0.0, %v836
        %v838 = vpop.f32.mrb[0].mxu0
        %839 = vdwg.mxu0
        %v840 = vsel %vm765, %v837, -inf
        %841 = vmax.xlane.f32.xlu0 %v840
        %v842 = vpop.xlane.xlu0 %841
        %v843 = vsub.f32 %v837, %v842
        %v844 = vmul.f32 %v843, 1.442695
        %v845 = vpow.pop %v844
        %v846 = vsel %vm765, %v845, 0.0
        %847 = vadd.xlane.f32.xlu0 %v846
        %v848 = vpop.xlane.xlu0 %847
        %v849 = vrcp.pop %v848
        %v850 = vmul.f32 %v845, %v849
        %851 = vrot.lane.b32.xlu0 %v759, 64
        %v852 = vpop.permute.xlu0 %851
        %v855 = vsel %vm765, %v850, 0
        %857 = vmatprep.subr.mxu0 0.0
        %858 = vmatpush1.msra.mxu0 %v852
        %859 = vmatprep.subr.mxu0 0.0
        %860 = vmatpush1.msra.mxu0 0.0
        %861 = vmatprep.subr.mxu0 0.0
        %862 = vmatpush1.msra.mxu0 0.0
        %863 = vmatprep.subr.mxu0 0.0
        %864 = vmatpush1.msra.mxu0 0.0
        %865 = vmatprep.subr.mxu0 0.0
        %866 = vmatpush1.msra.mxu0 0.0
        %867 = vmatprep.subr.mxu0 0.0
        %868 = vmatpush1.msra.mxu0 0.0
        %869 = vmatprep.subr.mxu0 0.0
        %870 = vmatpush1.msra.mxu0 0.0
        %871 = vmatprep.subr.mxu0 0.0
        %872 = vmatpush1.msra.mxu0 0.0
        %873 = vmatprep.subr.mxu0 0.0
        %874 = vmatpush1.msra.mxu0 0.0
        %875 = vmatprep.subr.mxu0 0.0
        %876 = vmatpush1.msra.mxu0 0.0
        %877 = vmatprep.subr.mxu0 0.0
        %878 = vmatpush1.msra.mxu0 0.0
        %879 = vmatprep.subr.mxu0 0.0
        %880 = vmatpush1.msra.mxu0 0.0
        %881 = vmatprep.subr.mxu0 0.0
        %882 = vmatpush1.msra.mxu0 0.0
        %883 = vmatprep.subr.mxu0 0.0
        %884 = vmatpush1.msra.mxu0 0.0
        %885 = vmatprep.subr.mxu0 0.0
        %886 = vmatpush1.msra.mxu0 0.0
        %887 = vmatprep.subr.mxu0 0.0
        %888 = vmatpush1.msra.mxu0 0.0
        %889 = vmatprep.subr.mxu0 0.0
        %890 = vmatpush1.msra.mxu0 0.0
        %891 = vmatprep.subr.mxu0 0.0
        %892 = vmatpush1.msra.mxu0 0.0
        %893 = vmatprep.subr.mxu0 0.0
        %894 = vmatpush1.msra.mxu0 0.0
        %895 = vmatprep.subr.mxu0 0.0
        %896 = vmatpush1.msra.mxu0 0.0
        %897 = vmatprep.subr.mxu0 0.0
        %898 = vmatpush1.msra.mxu0 0.0
        %899 = vmatprep.subr.mxu0 0.0
        %900 = vmatpush1.msra.mxu0 0.0
        %901 = vmatprep.subr.mxu0 0.0
        %902 = vmatpush1.msra.mxu0 0.0
        %903 = vmatprep.subr.mxu0 0.0
        %904 = vmatpush1.msra.mxu0 0.0
        %905 = vmatprep.subr.mxu0 0.0
        %906 = vmatpush1.msra.mxu0 0.0
        %907 = vmatprep.subr.mxu0 0.0
        %908 = vmatpush1.msra.mxu0 0.0
        %909 = vmatprep.subr.mxu0 0.0
        %910 = vmatpush1.msra.mxu0 0.0
        %911 = vmatprep.subr.mxu0 0.0
        %912 = vmatpush1.msra.mxu0 0.0
        %913 = vmatprep.subr.mxu0 0.0
        %914 = vmatpush1.msra.mxu0 0.0
        %915 = vmatprep.subr.mxu0 0.0
        %916 = vmatpush1.msra.mxu0 0.0
        %917 = vmatprep.subr.mxu0 0.0
        %918 = vmatpush1.msra.mxu0 0.0
        %919 = vmatprep.subr.mxu0 0.0
        %920 = vmatpush1.msra.mxu0 0.0
        %921 = vmatprep.mubr.f32.mxu0 0.0
        %922 = vmatmul.mubr.f32.gmra.mrb[0].mxu0 %v855
        %v923 = vpop.f32.mrb[0].mxu0
        %v924 = vadd.f32 0.0, %v923
        %v925 = vpop.f32.mrb[0].mxu0
        %926 = vdwg.mxu0
        %927 = vrot.lane.b32.xlu0 %v759, 120
        %v928 = vpop.permute.xlu0 %927
        %929 = vrot.lane.b32.xlu0 %v759, 88
        %v930 = vpop.permute.xlu0 %929
        %v931 = vsel %vm765, %v928, 0
        %v933 = vsel %vm765, %v930, 0
        %935 = vmatprep.subr.mxu0 0.0
        %936 = vmatpush1.xpose.msra.mxu0 %v933
        %937 = vmatprep.subr.mxu0 0.0
        %938 = vmatpush1.xpose.msra.mxu0 0.0
        %939 = vmatprep.subr.mxu0 0.0
        %940 = vmatpush1.xpose.msra.mxu0 0.0
        %941 = vmatprep.subr.mxu0 0.0
        %942 = vmatpush1.xpose.msra.mxu0 0.0
        %943 = vmatprep.subr.mxu0 0.0
        %944 = vmatpush1.xpose.msra.mxu0 0.0
        %945 = vmatprep.subr.mxu0 0.0
        %946 = vmatpush1.xpose.msra.mxu0 0.0
        %947 = vmatprep.subr.mxu0 0.0
        %948 = vmatpush1.xpose.msra.mxu0 0.0
        %949 = vmatprep.subr.mxu0 0.0
        %950 = vmatpush1.xpose.msra.mxu0 0.0
        %951 = vmatprep.subr.mxu0 0.0
        %952 = vmatpush1.xpose.msra.mxu0 0.0
        %953 = vmatprep.subr.mxu0 0.0
        %954 = vmatpush1.xpose.msra.mxu0 0.0
        %955 = vmatprep.subr.mxu0 0.0
        %956 = vmatpush1.xpose.msra.mxu0 0.0
        %957 = vmatprep.subr.mxu0 0.0
        %958 = vmatpush1.xpose.msra.mxu0 0.0
        %959 = vmatprep.subr.mxu0 0.0
        %960 = vmatpush1.xpose.msra.mxu0 0.0
        %961 = vmatprep.subr.mxu0 0.0
        %962 = vmatpush1.xpose.msra.mxu0 0.0
        %963 = vmatprep.subr.mxu0 0.0
        %964 = vmatpush1.xpose.msra.mxu0 0.0
        %965 = vmatprep.subr.mxu0 0.0
        %966 = vmatpush1.xpose.msra.mxu0 0.0
        %967 = vmatprep.subr.mxu0 0.0
        %968 = vmatpush1.xpose.msra.mxu0 0.0
        %969 = vmatprep.subr.mxu0 0.0
        %970 = vmatpush1.xpose.msra.mxu0 0.0
        %971 = vmatprep.subr.mxu0 0.0
        %972 = vmatpush1.xpose.msra.mxu0 0.0
        %973 = vmatprep.subr.mxu0 0.0
        %974 = vmatpush1.xpose.msra.mxu0 0.0
        %975 = vmatprep.subr.mxu0 0.0
        %976 = vmatpush1.xpose.msra.mxu0 0.0
        %977 = vmatprep.subr.mxu0 0.0
        %978 = vmatpush1.xpose.msra.mxu0 0.0
        %979 = vmatprep.subr.mxu0 0.0
        %980 = vmatpush1.xpose.msra.mxu0 0.0
        %981 = vmatprep.subr.mxu0 0.0
        %982 = vmatpush1.xpose.msra.mxu0 0.0
        %983 = vmatprep.subr.mxu0 0.0
        %984 = vmatpush1.xpose.msra.mxu0 0.0
        %985 = vmatprep.subr.mxu0 0.0
        %986 = vmatpush1.xpose.msra.mxu0 0.0
        %987 = vmatprep.subr.mxu0 0.0
        %988 = vmatpush1.xpose.msra.mxu0 0.0
        %989 = vmatprep.subr.mxu0 0.0
        %990 = vmatpush1.xpose.msra.mxu0 0.0
        %991 = vmatprep.subr.mxu0 0.0
        %992 = vmatpush1.xpose.msra.mxu0 0.0
        %993 = vmatprep.subr.mxu0 0.0
        %994 = vmatpush1.xpose.msra.mxu0 0.0
        %995 = vmatprep.subr.mxu0 0.0
        %996 = vmatpush1.xpose.msra.mxu0 0.0
        %997 = vmatprep.subr.mxu0 0.0
        %998 = vmatpush1.xpose.msra.mxu0 0.0
        %999 = vmatprep.mubr.f32.mxu0 0.0
        %1000 = vmatmul.mubr.f32.gmra.mrb[0].mxu0 %v931
        %v1001 = vpop.f32.mrb[0].mxu0
        %v1002 = vadd.f32 0.0, %v1001
        %v1003 = vpop.f32.mrb[0].mxu0
        %1004 = vdwg.mxu0
        %v1005 = vsel %vm765, %v1002, -inf
        %1006 = vmax.xlane.f32.xlu0 %v1005
        %v1007 = vpop.xlane.xlu0 %1006
        %v1008 = vsub.f32 %v1002, %v1007
        %v1009 = vmul.f32 %v1008, 1.442695
        %v1010 = vpow.pop %v1009
        %v1011 = vsel %vm765, %v1010, 0.0
        %1012 = vadd.xlane.f32.xlu0 %v1011
        %v1013 = vpop.xlane.xlu0 %1012
        %v1014 = vrcp.pop %v1013
        %v1015 = vmul.f32 %v1010, %v1014
        %1016 = vrot.lane.b32.xlu0 %v759, 56
        %v1017 = vpop.permute.xlu0 %1016
        %v1020 = vsel %vm765, %v1015, 0
        %1022 = vmatprep.subr.mxu0 0.0
        %1023 = vmatpush1.msra.mxu0 %v1017
        %1024 = vmatprep.subr.mxu0 0.0
        %1025 = vmatpush1.msra.mxu0 0.0
        %1026 = vmatprep.subr.mxu0 0.0
        %1027 = vmatpush1.msra.mxu0 0.0
        %1028 = vmatprep.subr.mxu0 0.0
        %1029 = vmatpush1.msra.mxu0 0.0
        %1030 = vmatprep.subr.mxu0 0.0
        %1031 = vmatpush1.msra.mxu0 0.0
        %1032 = vmatprep.subr.mxu0 0.0
        %1033 = vmatpush1.msra.mxu0 0.0
        %1034 = vmatprep.subr.mxu0 0.0
        %1035 = vmatpush1.msra.mxu0 0.0
        %1036 = vmatprep.subr.mxu0 0.0
        %1037 = vmatpush1.msra.mxu0 0.0
        %1038 = vmatprep.subr.mxu0 0.0
        %1039 = vmatpush1.msra.mxu0 0.0
        %1040 = vmatprep.subr.mxu0 0.0
        %1041 = vmatpush1.msra.mxu0 0.0
        %1042 = vmatprep.subr.mxu0 0.0
        %1043 = vmatpush1.msra.mxu0 0.0
        %1044 = vmatprep.subr.mxu0 0.0
        %1045 = vmatpush1.msra.mxu0 0.0
        %1046 = vmatprep.subr.mxu0 0.0
        %1047 = vmatpush1.msra.mxu0 0.0
        %1048 = vmatprep.subr.mxu0 0.0
        %1049 = vmatpush1.msra.mxu0 0.0
        %1050 = vmatprep.subr.mxu0 0.0
        %1051 = vmatpush1.msra.mxu0 0.0
        %1052 = vmatprep.subr.mxu0 0.0
        %1053 = vmatpush1.msra.mxu0 0.0
        %1054 = vmatprep.subr.mxu0 0.0
        %1055 = vmatpush1.msra.mxu0 0.0
        %1056 = vmatprep.subr.mxu0 0.0
        %1057 = vmatpush1.msra.mxu0 0.0
        %1058 = vmatprep.subr.mxu0 0.0
        %1059 = vmatpush1.msra.mxu0 0.0
        %1060 = vmatprep.subr.mxu0 0.0
        %1061 = vmatpush1.msra.mxu0 0.0
        %1062 = vmatprep.subr.mxu0 0.0
        %1063 = vmatpush1.msra.mxu0 0.0
        %1064 = vmatprep.subr.mxu0 0.0
        %1065 = vmatpush1.msra.mxu0 0.0
        %1066 = vmatprep.subr.mxu0 0.0
        %1067 = vmatpush1.msra.mxu0 0.0
        %1068 = vmatprep.subr.mxu0 0.0
        %1069 = vmatpush1.msra.mxu0 0.0
        %1070 = vmatprep.subr.mxu0 0.0
        %1071 = vmatpush1.msra.mxu0 0.0
        %1072 = vmatprep.subr.mxu0 0.0
        %1073 = vmatpush1.msra.mxu0 0.0
        %1074 = vmatprep.subr.mxu0 0.0
        %1075 = vmatpush1.msra.mxu0 0.0
        %1076 = vmatprep.subr.mxu0 0.0
        %1077 = vmatpush1.msra.mxu0 0.0
        %1078 = vmatprep.subr.mxu0 0.0
        %1079 = vmatpush1.msra.mxu0 0.0
        %1080 = vmatprep.subr.mxu0 0.0
        %1081 = vmatpush1.msra.mxu0 0.0
        %1082 = vmatprep.subr.mxu0 0.0
        %1083 = vmatpush1.msra.mxu0 0.0
        %1084 = vmatprep.subr.mxu0 0.0
        %1085 = vmatpush1.msra.mxu0 0.0
        %1086 = vmatprep.mubr.f32.mxu0 0.0
        %1087 = vmatmul.mubr.f32.gmra.mrb[0].mxu0 %v1020
        %v1088 = vpop.f32.mrb[0].mxu0
        %v1089 = vadd.f32 0.0, %v1088
        %v1090 = vpop.f32.mrb[0].mxu0
        %1091 = vdwg.mxu0
        %1092 = vrot.lane.b32.xlu0 %v759, 112
        %v1093 = vpop.permute.xlu0 %1092
        %1094 = vrot.lane.b32.xlu0 %v759, 80
        %v1095 = vpop.permute.xlu0 %1094
        %v1096 = vsel %vm765, %v1093, 0
        %v1098 = vsel %vm765, %v1095, 0
        %1100 = vmatprep.subr.mxu0 0.0
        %1101 = vmatpush1.xpose.msra.mxu0 %v1098
        %1102 = vmatprep.subr.mxu0 0.0
        %1103 = vmatpush1.xpose.msra.mxu0 0.0
        %1104 = vmatprep.subr.mxu0 0.0
        %1105 = vmatpush1.xpose.msra.mxu0 0.0
        %1106 = vmatprep.subr.mxu0 0.0
        %1107 = vmatpush1.xpose.msra.mxu0 0.0
        %1108 = vmatprep.subr.mxu0 0.0
        %1109 = vmatpush1.xpose.msra.mxu0 0.0
        %1110 = vmatprep.subr.mxu0 0.0
        %1111 = vmatpush1.xpose.msra.mxu0 0.0
        %1112 = vmatprep.subr.mxu0 0.0
        %1113 = vmatpush1.xpose.msra.mxu0 0.0
        %1114 = vmatprep.subr.mxu0 0.0
        %1115 = vmatpush1.xpose.msra.mxu0 0.0
        %1116 = vmatprep.subr.mxu0 0.0
        %1117 = vmatpush1.xpose.msra.mxu0 0.0
        %1118 = vmatprep.subr.mxu0 0.0
        %1119 = vmatpush1.xpose.msra.mxu0 0.0
        %1120 = vmatprep.subr.mxu0 0.0
        %1121 = vmatpush1.xpose.msra.mxu0 0.0
        %1122 = vmatprep.subr.mxu0 0.0
        %1123 = vmatpush1.xpose.msra.mxu0 0.0
        %1124 = vmatprep.subr.mxu0 0.0
        %1125 = vmatpush1.xpose.msra.mxu0 0.0
        %1126 = vmatprep.subr.mxu0 0.0
        %1127 = vmatpush1.xpose.msra.mxu0 0.0
        %1128 = vmatprep.subr.mxu0 0.0
        %1129 = vmatpush1.xpose.msra.mxu0 0.0
        %1130 = vmatprep.subr.mxu0 0.0
        %1131 = vmatpush1.xpose.msra.mxu0 0.0
        %1132 = vmatprep.subr.mxu0 0.0
        %1133 = vmatpush1.xpose.msra.mxu0 0.0
        %1134 = vmatprep.subr.mxu0 0.0
        %1135 = vmatpush1.xpose.msra.mxu0 0.0
        %1136 = vmatprep.subr.mxu0 0.0
        %1137 = vmatpush1.xpose.msra.mxu0 0.0
        %1138 = vmatprep.subr.mxu0 0.0
        %1139 = vmatpush1.xpose.msra.mxu0 0.0
        %1140 = vmatprep.subr.mxu0 0.0
        %1141 = vmatpush1.xpose.msra.mxu0 0.0
        %1142 = vmatprep.subr.mxu0 0.0
        %1143 = vmatpush1.xpose.msra.mxu0 0.0
        %1144 = vmatprep.subr.mxu0 0.0
        %1145 = vmatpush1.xpose.msra.mxu0 0.0
        %1146 = vmatprep.subr.mxu0 0.0
        %1147 = vmatpush1.xpose.msra.mxu0 0.0
        %1148 = vmatprep.subr.mxu0 0.0
        %1149 = vmatpush1.xpose.msra.mxu0 0.0
        %1150 = vmatprep.subr.mxu0 0.0
        %1151 = vmatpush1.xpose.msra.mxu0 0.0
        %1152 = vmatprep.subr.mxu0 0.0
        %1153 = vmatpush1.xpose.msra.mxu0 0.0
        %1154 = vmatprep.subr.mxu0 0.0
        %1155 = vmatpush1.xpose.msra.mxu0 0.0
        %1156 = vmatprep.subr.mxu0 0.0
        %1157 = vmatpush1.xpose.msra.mxu0 0.0
        %1158 = vmatprep.subr.mxu0 0.0
        %1159 = vmatpush1.xpose.msra.mxu0 0.0
        %1160 = vmatprep.subr.mxu0 0.0
        %1161 = vmatpush1.xpose.msra.mxu0 0.0
        %1162 = vmatprep.subr.mxu0 0.0
        %1163 = vmatpush1.xpose.msra.mxu0 0.0
        %1164 = vmatprep.mubr.f32.mxu0 0.0
        %1165 = vmatmul.mubr.f32.gmra.mrb[0].mxu0 %v1096
        %v1166 = vpop.f32.mrb[0].mxu0
        %v1167 = vadd.f32 0.0, %v1166
        %v1168 = vpop.f32.mrb[0].mxu0
        %1169 = vdwg.mxu0
        %v1170 = vsel %vm765, %v1167, -inf
        %1171 = vmax.xlane.f32.xlu0 %v1170
        %v1172 = vpop.xlane.xlu0 %1171
        %v1173 = vsub.f32 %v1167, %v1172
        %v1174 = vmul.f32 %v1173, 1.442695
        %v1175 = vpow.pop %v1174
        %v1176 = vsel %vm765, %v1175, 0.0
        %1177 = vadd.xlane.f32.xlu0 %v1176
        %v1178 = vpop.xlane.xlu0 %1177
        %v1179 = vrcp.pop %v1178
        %v1180 = vmul.f32 %v1175, %v1179
        %1181 = vrot.lane.b32.xlu0 %v759, 48
        %v1182 = vpop.permute.xlu0 %1181
        %v1185 = vsel %vm765, %v1180, 0
        %1187 = vmatprep.subr.mxu0 0.0
        %1188 = vmatpush1.msra.mxu0 %v1182
        %1189 = vmatprep.subr.mxu0 0.0
        %1190 = vmatpush1.msra.mxu0 0.0
        %1191 = vmatprep.subr.mxu0 0.0
        %1192 = vmatpush1.msra.mxu0 0.0
        %1193 = vmatprep.subr.mxu0 0.0
        %1194 = vmatpush1.msra.mxu0 0.0
        %1195 = vmatprep.subr.mxu0 0.0
        %1196 = vmatpush1.msra.mxu0 0.0
        %1197 = vmatprep.subr.mxu0 0.0
        %1198 = vmatpush1.msra.mxu0 0.0
        %1199 = vmatprep.subr.mxu0 0.0
        %1200 = vmatpush1.msra.mxu0 0.0
        %1201 = vmatprep.subr.mxu0 0.0
        %1202 = vmatpush1.msra.mxu0 0.0
        %1203 = vmatprep.subr.mxu0 0.0
        %1204 = vmatpush1.msra.mxu0 0.0
        %1205 = vmatprep.subr.mxu0 0.0
        %1206 = vmatpush1.msra.mxu0 0.0
        %1207 = vmatprep.subr.mxu0 0.0
        %1208 = vmatpush1.msra.mxu0 0.0
        %1209 = vmatprep.subr.mxu0 0.0
        %1210 = vmatpush1.msra.mxu0 0.0
        %1211 = vmatprep.subr.mxu0 0.0
        %1212 = vmatpush1.msra.mxu0 0.0
        %1213 = vmatprep.subr.mxu0 0.0
        %1214 = vmatpush1.msra.mxu0 0.0
        %1215 = vmatprep.subr.mxu0 0.0
        %1216 = vmatpush1.msra.mxu0 0.0
        %1217 = vmatprep.subr.mxu0 0.0
        %1218 = vmatpush1.msra.mxu0 0.0
        %1219 = vmatprep.subr.mxu0 0.0
        %1220 = vmatpush1.msra.mxu0 0.0
        %1221 = vmatprep.subr.mxu0 0.0
        %1222 = vmatpush1.msra.mxu0 0.0
        %1223 = vmatprep.subr.mxu0 0.0
        %1224 = vmatpush1.msra.mxu0 0.0
        %1225 = vmatprep.subr.mxu0 0.0
        %1226 = vmatpush1.msra.mxu0 0.0
        %1227 = vmatprep.subr.mxu0 0.0
        %1228 = vmatpush1.msra.mxu0 0.0
        %1229 = vmatprep.subr.mxu0 0.0
        %1230 = vmatpush1.msra.mxu0 0.0
        %1231 = vmatprep.subr.mxu0 0.0
        %1232 = vmatpush1.msra.mxu0 0.0
        %1233 = vmatprep.subr.mxu0 0.0
        %1234 = vmatpush1.msra.mxu0 0.0
        %1235 = vmatprep.subr.mxu0 0.0
        %1236 = vmatpush1.msra.mxu0 0.0
        %1237 = vmatprep.subr.mxu0 0.0
        %1238 = vmatpush1.msra.mxu0 0.0
        %1239 = vmatprep.subr.mxu0 0.0
        %1240 = vmatpush1.msra.mxu0 0.0
        %1241 = vmatprep.subr.mxu0 0.0
        %1242 = vmatpush1.msra.mxu0 0.0
        %1243 = vmatprep.subr.mxu0 0.0
        %1244 = vmatpush1.msra.mxu0 0.0
        %1245 = vmatprep.subr.mxu0 0.0
        %1246 = vmatpush1.msra.mxu0 0.0
        %1247 = vmatprep.subr.mxu0 0.0
        %1248 = vmatpush1.msra.mxu0 0.0
        %1249 = vmatprep.subr.mxu0 0.0
        %1250 = vmatpush1.msra.mxu0 0.0
        %1251 = vmatprep.mubr.f32.mxu0 0.0
        %1252 = vmatmul.mubr.f32.gmra.mrb[0].mxu0 %v1185
        %v1253 = vpop.f32.mrb[0].mxu0
        %v1254 = vadd.f32 0.0, %v1253
        %v1255 = vpop.f32.mrb[0].mxu0
        %1256 = vdwg.mxu0
        %1257 = vrot.lane.b32.xlu0 %v759, 104
        %v1258 = vpop.permute.xlu0 %1257
        %1259 = vrot.lane.b32.xlu0 %v759, 72
        %v1260 = vpop.permute.xlu0 %1259
        %v1261 = vsel %vm765, %v1258, 0
        %v1263 = vsel %vm765, %v1260, 0
        %1265 = vmatprep.subr.mxu0 0.0
        %1266 = vmatpush1.xpose.msra.mxu0 %v1263
        %1267 = vmatprep.subr.mxu0 0.0
        %1268 = vmatpush1.xpose.msra.mxu0 0.0
        %1269 = vmatprep.subr.mxu0 0.0
        %1270 = vmatpush1.xpose.msra.mxu0 0.0
        %1271 = vmatprep.subr.mxu0 0.0
        %1272 = vmatpush1.xpose.msra.mxu0 0.0
        %1273 = vmatprep.subr.mxu0 0.0
        %1274 = vmatpush1.xpose.msra.mxu0 0.0
        %1275 = vmatprep.subr.mxu0 0.0
        %1276 = vmatpush1.xpose.msra.mxu0 0.0
        %1277 = vmatprep.subr.mxu0 0.0
        %1278 = vmatpush1.xpose.msra.mxu0 0.0
        %1279 = vmatprep.subr.mxu0 0.0
        %1280 = vmatpush1.xpose.msra.mxu0 0.0
        %1281 = vmatprep.subr.mxu0 0.0
        %1282 = vmatpush1.xpose.msra.mxu0 0.0
        %1283 = vmatprep.subr.mxu0 0.0
        %1284 = vmatpush1.xpose.msra.mxu0 0.0
        %1285 = vmatprep.subr.mxu0 0.0
        %1286 = vmatpush1.xpose.msra.mxu0 0.0
        %1287 = vmatprep.subr.mxu0 0.0
        %1288 = vmatpush1.xpose.msra.mxu0 0.0
        %1289 = vmatprep.subr.mxu0 0.0
        %1290 = vmatpush1.xpose.msra.mxu0 0.0
        %1291 = vmatprep.subr.mxu0 0.0
        %1292 = vmatpush1.xpose.msra.mxu0 0.0
        %1293 = vmatprep.subr.mxu0 0.0
        %1294 = vmatpush1.xpose.msra.mxu0 0.0
        %1295 = vmatprep.subr.mxu0 0.0
        %1296 = vmatpush1.xpose.msra.mxu0 0.0
        %1297 = vmatprep.subr.mxu0 0.0
        %1298 = vmatpush1.xpose.msra.mxu0 0.0
        %1299 = vmatprep.subr.mxu0 0.0
        %1300 = vmatpush1.xpose.msra.mxu0 0.0
        %1301 = vmatprep.subr.mxu0 0.0
        %1302 = vmatpush1.xpose.msra.mxu0 0.0
        %1303 = vmatprep.subr.mxu0 0.0
        %1304 = vmatpush1.xpose.msra.mxu0 0.0
        %1305 = vmatprep.subr.mxu0 0.0
        %1306 = vmatpush1.xpose.msra.mxu0 0.0
        %1307 = vmatprep.subr.mxu0 0.0
        %1308 = vmatpush1.xpose.msra.mxu0 0.0
        %1309 = vmatprep.subr.mxu0 0.0
        %1310 = vmatpush1.xpose.msra.mxu0 0.0
        %1311 = vmatprep.subr.mxu0 0.0
        %1312 = vmatpush1.xpose.msra.mxu0 0.0
        %1313 = vmatprep.subr.mxu0 0.0
        %1314 = vmatpush1.xpose.msra.mxu0 0.0
        %1315 = vmatprep.subr.mxu0 0.0
        %1316 = vmatpush1.xpose.msra.mxu0 0.0
        %1317 = vmatprep.subr.mxu0 0.0
        %1318 = vmatpush1.xpose.msra.mxu0 0.0
        %1319 = vmatprep.subr.mxu0 0.0
        %1320 = vmatpush1.xpose.msra.mxu0 0.0
        %1321 = vmatprep.subr.mxu0 0.0
        %1322 = vmatpush1.xpose.msra.mxu0 0.0
        %1323 = vmatprep.subr.mxu0 0.0
        %1324 = vmatpush1.xpose.msra.mxu0 0.0
        %1325 = vmatprep.subr.mxu0 0.0
        %1326 = vmatpush1.xpose.msra.mxu0 0.0
        %1327 = vmatprep.subr.mxu0 0.0
        %1328 = vmatpush1.xpose.msra.mxu0 0.0
        %1329 = vmatprep.mubr.f32.mxu0 0.0
        %1330 = vmatmul.mubr.f32.gmra.mrb[0].mxu0 %v1261
        %v1331 = vpop.f32.mrb[0].mxu0
        %v1332 = vadd.f32 0.0, %v1331
        %v1333 = vpop.f32.mrb[0].mxu0
        %1334 = vdwg.mxu0
        %v1335 = vsel %vm765, %v1332, -inf
        %1336 = vmax.xlane.f32.xlu0 %v1335
        %v1337 = vpop.xlane.xlu0 %1336
        %v1338 = vsub.f32 %v1332, %v1337
        %v1339 = vmul.f32 %v1338, 1.442695
        %v1340 = vpow.pop %v1339
        %v1341 = vsel %vm765, %v1340, 0.0
        %1342 = vadd.xlane.f32.xlu0 %v1341
        %v1343 = vpop.xlane.xlu0 %1342
        %v1344 = vrcp.pop %v1343
        %v1345 = vmul.f32 %v1340, %v1344
        %1346 = vrot.lane.b32.xlu0 %v759, 40
        %v1347 = vpop.permute.xlu0 %1346
        %v1350 = vsel %vm765, %v1345, 0
        %1352 = vmatprep.subr.mxu0 0.0
        %1353 = vmatpush1.msra.mxu0 %v1347
        %1354 = vmatprep.subr.mxu0 0.0
        %1355 = vmatpush1.msra.mxu0 0.0
        %1356 = vmatprep.subr.mxu0 0.0
        %1357 = vmatpush1.msra.mxu0 0.0
        %1358 = vmatprep.subr.mxu0 0.0
        %1359 = vmatpush1.msra.mxu0 0.0
        %1360 = vmatprep.subr.mxu0 0.0
        %1361 = vmatpush1.msra.mxu0 0.0
        %1362 = vmatprep.subr.mxu0 0.0
        %1363 = vmatpush1.msra.mxu0 0.0
        %1364 = vmatprep.subr.mxu0 0.0
        %1365 = vmatpush1.msra.mxu0 0.0
        %1366 = vmatprep.subr.mxu0 0.0
        %1367 = vmatpush1.msra.mxu0 0.0
        %1368 = vmatprep.subr.mxu0 0.0
        %1369 = vmatpush1.msra.mxu0 0.0
        %1370 = vmatprep.subr.mxu0 0.0
        %1371 = vmatpush1.msra.mxu0 0.0
        %1372 = vmatprep.subr.mxu0 0.0
        %1373 = vmatpush1.msra.mxu0 0.0
        %1374 = vmatprep.subr.mxu0 0.0
        %1375 = vmatpush1.msra.mxu0 0.0
        %1376 = vmatprep.subr.mxu0 0.0
        %1377 = vmatpush1.msra.mxu0 0.0
        %1378 = vmatprep.subr.mxu0 0.0
        %1379 = vmatpush1.msra.mxu0 0.0
        %1380 = vmatprep.subr.mxu0 0.0
        %1381 = vmatpush1.msra.mxu0 0.0
        %1382 = vmatprep.subr.mxu0 0.0
        %1383 = vmatpush1.msra.mxu0 0.0
        %1384 = vmatprep.subr.mxu0 0.0
        %1385 = vmatpush1.msra.mxu0 0.0
        %1386 = vmatprep.subr.mxu0 0.0
        %1387 = vmatpush1.msra.mxu0 0.0
        %1388 = vmatprep.subr.mxu0 0.0
        %1389 = vmatpush1.msra.mxu0 0.0
        %1390 = vmatprep.subr.mxu0 0.0
        %1391 = vmatpush1.msra.mxu0 0.0
        %1392 = vmatprep.subr.mxu0 0.0
        %1393 = vmatpush1.msra.mxu0 0.0
        %1394 = vmatprep.subr.mxu0 0.0
        %1395 = vmatpush1.msra.mxu0 0.0
        %1396 = vmatprep.subr.mxu0 0.0
        %1397 = vmatpush1.msra.mxu0 0.0
        %1398 = vmatprep.subr.mxu0 0.0
        %1399 = vmatpush1.msra.mxu0 0.0
        %1400 = vmatprep.subr.mxu0 0.0
        %1401 = vmatpush1.msra.mxu0 0.0
        %1402 = vmatprep.subr.mxu0 0.0
        %1403 = vmatpush1.msra.mxu0 0.0
        %1404 = vmatprep.subr.mxu0 0.0
        %1405 = vmatpush1.msra.mxu0 0.0
        %1406 = vmatprep.subr.mxu0 0.0
        %1407 = vmatpush1.msra.mxu0 0.0
        %1408 = vmatprep.subr.mxu0 0.0
        %1409 = vmatpush1.msra.mxu0 0.0
        %1410 = vmatprep.subr.mxu0 0.0
        %1411 = vmatpush1.msra.mxu0 0.0
        %1412 = vmatprep.subr.mxu0 0.0
        %1413 = vmatpush1.msra.mxu0 0.0
        %1414 = vmatprep.subr.mxu0 0.0
        %1415 = vmatpush1.msra.mxu0 0.0
        %1416 = vmatprep.mubr.f32.mxu0 0.0
        %1417 = vmatmul.mubr.f32.gmra.mrb[0].mxu0 %v1350
        %v1418 = vpop.f32.mrb[0].mxu0
        %v1419 = vadd.f32 0.0, %v1418
        %v1420 = vpop.f32.mrb[0].mxu0
        %1421 = vdwg.mxu0
        %1423 = vrot.lane.b32.xlu0 %v1089, 8
        %v1424 = vpop.permute.xlu0 %1423
        %1427 = vrot.lane.b32.xlu0 %v1254, 16
        %v1428 = vpop.permute.xlu0 %1427
        %1431 = vrot.lane.b32.xlu0 %v1419, 24
        %v1432 = vpop.permute.xlu0 %1431
        %v1434 = vsel %vm765, %v924, %v1424
        %v1435 = vsel %vm580, %v1434, %v1428
        %vm1436 = vcmask 195584
        %v1437 = vsel %vm1436, %v1435, %v1432
        %v1438 = vld [vmem:[%s6] sm:$0xff]
        %v1439 = vld [vmem:[%s6 + $0x8] sm:$0xff]
        %v1440 = vld [vmem:[%s6 + $0x10] sm:$0xff]
        %v1441 = vld [vmem:[%s6 + $0x18] sm:$0xff]
        %v1443 = vsel %vm656, %v1437, 0
        %1445 = vmatprep.subr.mxu0 0.0
        %1446 = vmatpush1.msra.mxu0 %v1438
        %1447 = vmatprep.subr.mxu0 0.0
        %1448 = vmatpush1.msra.mxu0 %v1439
        %1449 = vmatprep.subr.mxu0 0.0
        %1450 = vmatpush1.msra.mxu0 %v1440
        %1451 = vmatprep.subr.mxu0 0.0
        %1452 = vmatpush1.msra.mxu0 %v1441
        %1453 = vmatprep.subr.mxu0 0.0
        %1454 = vmatpush1.msra.mxu0 0.0
        %1455 = vmatprep.subr.mxu0 0.0
        %1456 = vmatpush1.msra.mxu0 0.0
        %1457 = vmatprep.subr.mxu0 0.0
        %1458 = vmatpush1.msra.mxu0 0.0
        %1459 = vmatprep.subr.mxu0 0.0
        %1460 = vmatpush1.msra.mxu0 0.0
        %1461 = vmatprep.subr.mxu0 0.0
        %1462 = vmatpush1.msra.mxu0 0.0
        %1463 = vmatprep.subr.mxu0 0.0
        %1464 = vmatpush1.msra.mxu0 0.0
        %1465 = vmatprep.subr.mxu0 0.0
        %1466 = vmatpush1.msra.mxu0 0.0
        %1467 = vmatprep.subr.mxu0 0.0
        %1468 = vmatpush1.msra.mxu0 0.0
        %1469 = vmatprep.subr.mxu0 0.0
        %1470 = vmatpush1.msra.mxu0 0.0
        %1471 = vmatprep.subr.mxu0 0.0
        %1472 = vmatpush1.msra.mxu0 0.0
        %1473 = vmatprep.subr.mxu0 0.0
        %1474 = vmatpush1.msra.mxu0 0.0
        %1475 = vmatprep.subr.mxu0 0.0
        %1476 = vmatpush1.msra.mxu0 0.0
        %1477 = vmatprep.subr.mxu0 0.0
        %1478 = vmatpush1.msra.mxu0 0.0
        %1479 = vmatprep.subr.mxu0 0.0
        %1480 = vmatpush1.msra.mxu0 0.0
        %1481 = vmatprep.subr.mxu0 0.0
        %1482 = vmatpush1.msra.mxu0 0.0
        %1483 = vmatprep.subr.mxu0 0.0
        %1484 = vmatpush1.msra.mxu0 0.0
        %1485 = vmatprep.subr.mxu0 0.0
        %1486 = vmatpush1.msra.mxu0 0.0
        %1487 = vmatprep.subr.mxu0 0.0
        %1488 = vmatpush1.msra.mxu0 0.0
        %1489 = vmatprep.subr.mxu0 0.0
        %1490 = vmatpush1.msra.mxu0 0.0
        %1491 = vmatprep.subr.mxu0 0.0
        %1492 = vmatpush1.msra.mxu0 0.0
        %1493 = vmatprep.subr.mxu0 0.0
        %1494 = vmatpush1.msra.mxu0 0.0
        %1495 = vmatprep.subr.mxu0 0.0
        %1496 = vmatpush1.msra.mxu0 0.0
        %1497 = vmatprep.subr.mxu0 0.0
        %1498 = vmatpush1.msra.mxu0 0.0
        %1499 = vmatprep.subr.mxu0 0.0
        %1500 = vmatpush1.msra.mxu0 0.0
        %1501 = vmatprep.subr.mxu0 0.0
        %1502 = vmatpush1.msra.mxu0 0.0
        %1503 = vmatprep.subr.mxu0 0.0
        %1504 = vmatpush1.msra.mxu0 0.0
        %1505 = vmatprep.subr.mxu0 0.0
        %1506 = vmatpush1.msra.mxu0 0.0
        %1507 = vmatprep.subr.mxu0 0.0
        %1508 = vmatpush1.msra.mxu0 0.0
        %1509 = vmatprep.mubr.f32.mxu0 0.0
        %1510 = vmatmul.mubr.f32.gmra.mrb[0].mxu0 %v1443
        %v1511 = vpop.f32.mrb[0].mxu0
        %v1512 = vadd.f32 0.0, %v1511
        %v1513 = vpop.f32.mrb[0].mxu0
        %1514 = vdwg.mxu0
        %v1515 = vadd.f32 %v651, %v1512
        %v1516 = vld [vmem:[%s7] sm:$0x1]
        %v1518 = vlaneseq
        %v1519 = vshrl.u32 %v1518, 7
        %v1520 = vsub.s32 0, %v1519
        %v1521 = vrot.slane %v1516, %v1520
        %v1523 = vadd.f32 %v1515, %v1521
        %v1524 = vld [vmem:[%s8] sm:$0x1]
        %v1525 = vld [vmem:[%s9] sm:$0x1]
        %v1526 = vsel %vm656, %v1523, 0.0
        %1527 = vadd.xlane.f32.xlu0 %v1526
        %v1528 = vpop.xlane.xlu0 %1527
        %v1529 = vmul.f32 %v1528, %v660
        %v1530 = vsub.f32 %v1523, %v1529
        %v1531 = vmul.f32 %v1530, %v1530
        %v1532 = vsel %vm656, %v1531, 0.0
        %1533 = vadd.xlane.f32.xlu0 %v1532
        %v1534 = vpop.xlane.xlu0 %1533
        %v1535 = vmul.f32 %v1534, %v660
        %v1536 = vadd.f32 %v1535, 1e-05
        %v1537 = vrsqrt.pop %v1536
        %v1538 = vmul.f32 %v1530, %v1537
        %v1540 = vlaneseq
        %v1541 = vshrl.u32 %v1540, 7
        %v1542 = vsub.s32 0, %v1541
        %v1543 = vrot.slane %v1524, %v1542
        %v1545 = vmul.f32 %v1538, %v1543
        %v1547 = vlaneseq
        %v1548 = vshrl.u32 %v1547, 7
        %v1549 = vsub.s32 0, %v1548
        %v1550 = vrot.slane %v1525, %v1549
        %v1552 = vadd.f32 %v1545, %v1550
        %v1553 = vld [vmem:[%s10] sm:$0xff]
        %v1554 = vld [vmem:[%s10 + $0x8] sm:$0xff]
        %v1555 = vld [vmem:[%s10 + $0x10] sm:$0xff]
        %v1556 = vld [vmem:[%s10 + $0x18] sm:$0xff]
        %v1557 = vld [vmem:[%s11] sm:$0x1]
        %v1559 = vlaneseq
        %v1560 = vshrl.u32 %v1559, 7
        %v1561 = vsub.s32 0, %v1560
        %v1562 = vrot.slane %v1557, %v1561
        %v1565 = vsel %vm656, %v1552, 0
        %1567 = vmatprep.subr.mxu0 0.0
        %1568 = vmatpush1.msra.mxu0 %v1553
        %1569 = vmatprep.subr.mxu0 0.0
        %1570 = vmatpush1.msra.mxu0 %v1554
        %1571 = vmatprep.subr.mxu0 0.0
        %1572 = vmatpush1.msra.mxu0 %v1555
        %1573 = vmatprep.subr.mxu0 0.0
        %1574 = vmatpush1.msra.mxu0 %v1556
        %1575 = vmatprep.subr.mxu0 0.0
        %1576 = vmatpush1.msra.mxu0 0.0
        %1577 = vmatprep.subr.mxu0 0.0
        %1578 = vmatpush1.msra.mxu0 0.0
        %1579 = vmatprep.subr.mxu0 0.0
        %1580 = vmatpush1.msra.mxu0 0.0
        %1581 = vmatprep.subr.mxu0 0.0
        %1582 = vmatpush1.msra.mxu0 0.0
        %1583 = vmatprep.subr.mxu0 0.0
        %1584 = vmatpush1.msra.mxu0 0.0
        %1585 = vmatprep.subr.mxu0 0.0
        %1586 = vmatpush1.msra.mxu0 0.0
        %1587 = vmatprep.subr.mxu0 0.0
        %1588 = vmatpush1.msra.mxu0 0.0
        %1589 = vmatprep.subr.mxu0 0.0
        %1590 = vmatpush1.msra.mxu0 0.0
        %1591 = vmatprep.subr.mxu0 0.0
        %1592 = vmatpush1.msra.mxu0 0.0
        %1593 = vmatprep.subr.mxu0 0.0
        %1594 = vmatpush1.msra.mxu0 0.0
        %1595 = vmatprep.subr.mxu0 0.0
        %1596 = vmatpush1.msra.mxu0 0.0
        %1597 = vmatprep.subr.mxu0 0.0
        %1598 = vmatpush1.msra.mxu0 0.0
        %1599 = vmatprep.subr.mxu0 0.0
        %1600 = vmatpush1.msra.mxu0 0.0
        %1601 = vmatprep.subr.mxu0 0.0
        %1602 = vmatpush1.msra.mxu0 0.0
        %1603 = vmatprep.subr.mxu0 0.0
        %1604 = vmatpush1.msra.mxu0 0.0
        %1605 = vmatprep.subr.mxu0 0.0
        %1606 = vmatpush1.msra.mxu0 0.0
        %1607 = vmatprep.subr.mxu0 0.0
        %1608 = vmatpush1.msra.mxu0 0.0
        %1609 = vmatprep.subr.mxu0 0.0
        %1610 = vmatpush1.msra.mxu0 0.0
        %1611 = vmatprep.subr.mxu0 0.0
        %1612 = vmatpush1.msra.mxu0 0.0
        %1613 = vmatprep.subr.mxu0 0.0
        %1614 = vmatpush1.msra.mxu0 0.0
        %1615 = vmatprep.subr.mxu0 0.0
        %1616 = vmatpush1.msra.mxu0 0.0
        %1617 = vmatprep.subr.mxu0 0.0
        %1618 = vmatpush1.msra.mxu0 0.0
        %1619 = vmatprep.subr.mxu0 0.0
        %1620 = vmatpush1.msra.mxu0 0.0
        %1621 = vmatprep.subr.mxu0 0.0
        %1622 = vmatpush1.msra.mxu0 0.0
        %1623 = vmatprep.subr.mxu0 0.0
        %1624 = vmatpush1.msra.mxu0 0.0
        %1625 = vmatprep.subr.mxu0 0.0
        %1626 = vmatpush1.msra.mxu0 0.0
        %1627 = vmatprep.subr.mxu0 0.0
        %1628 = vmatpush1.msra.mxu0 0.0
        %1629 = vmatprep.subr.mxu0 0.0
        %1630 = vmatpush1.msra.mxu0 0.0
        %1631 = vmatprep.mubr.f32.mxu0 0.0
        %1632 = vmatmul.mubr.f32.gmra.mrb[0].mxu0 %v1565
        %v1633 = vpop.f32.mrb[0].mxu0
        %v1634 = vadd.f32 %v1562, %v1633
        %v1635 = vpop.f32.mrb[0].mxu0
        %1636 = vdwg.mxu0
        %v1637 = vmax.f32 %v1634, 0.0
        %v1638 = vld [vmem:[%s12] sm:$0xff]
        %v1639 = vld [vmem:[%s12 + $0x8] sm:$0xff]
        %v1640 = vld [vmem:[%s12 + $0x10] sm:$0xff]
        %v1641 = vld [vmem:[%s12 + $0x18] sm:$0xff]
        %v1642 = vld [vmem:[%s12 + $0x20] sm:$0xff]
        %v1643 = vld [vmem:[%s12 + $0x28] sm:$0xff]
        %v1644 = vld [vmem:[%s12 + $0x30] sm:$0xff]
        %v1645 = vld [vmem:[%s12 + $0x38] sm:$0xff]
        %v1646 = vld [vmem:[%s12 + $0x40] sm:$0xff]
        %v1647 = vld [vmem:[%s12 + $0x48] sm:$0xff]
        %v1648 = vld [vmem:[%s12 + $0x50] sm:$0xff]
        %v1649 = vld [vmem:[%s12 + $0x58] sm:$0xff]
        %v1650 = vld [vmem:[%s12 + $0x60] sm:$0xff]
        %v1651 = vld [vmem:[%s12 + $0x68] sm:$0xff]
        %v1652 = vld [vmem:[%s12 + $0x70] sm:$0xff]
        %v1653 = vld [vmem:[%s12 + $0x78] sm:$0xff]
        %v1654 = vld [vmem:[%s13] sm:$0x1]
        %v1656 = vlaneseq
        %v1657 = vshrl.u32 %v1656, 7
        %v1658 = vsub.s32 0, %v1657
        %v1659 = vrot.slane %v1654, %v1658
        %1661 = vmatprep.subr.mxu0 0.0
        %1662 = vmatpush1.msra.mxu0 %v1638
        %1663 = vmatprep.subr.mxu0 0.0
        %1664 = vmatpush1.msra.mxu0 %v1639
        %1665 = vmatprep.subr.mxu0 0.0
        %1666 = vmatpush1.msra.mxu0 %v1640
        %1667 = vmatprep.subr.mxu0 0.0
        %1668 = vmatpush1.msra.mxu0 %v1641
        %1669 = vmatprep.subr.mxu0 0.0
        %1670 = vmatpush1.msra.mxu0 %v1642
        %1671 = vmatprep.subr.mxu0 0.0
        %1672 = vmatpush1.msra.mxu0 %v1643
        %1673 = vmatprep.subr.mxu0 0.0
        %1674 = vmatpush1.msra.mxu0 %v1644
        %1675 = vmatprep.subr.mxu0 0.0
        %1676 = vmatpush1.msra.mxu0 %v1645
        %1677 = vmatprep.subr.mxu0 0.0
        %1678 = vmatpush1.msra.mxu0 %v1646
        %1679 = vmatprep.subr.mxu0 0.0
        %1680 = vmatpush1.msra.mxu0 %v1647
        %1681 = vmatprep.subr.mxu0 0.0
        %1682 = vmatpush1.msra.mxu0 %v1648
        %1683 = vmatprep.subr.mxu0 0.0
        %1684 = vmatpush1.msra.mxu0 %v1649
        %1685 = vmatprep.subr.mxu0 0.0
        %1686 = vmatpush1.msra.mxu0 %v1650
        %1687 = vmatprep.subr.mxu0 0.0
        %1688 = vmatpush1.msra.mxu0 %v1651
        %1689 = vmatprep.subr.mxu0 0.0
        %1690 = vmatpush1.msra.mxu0 %v1652
        %1691 = vmatprep.subr.mxu0 0.0
        %1692 = vmatpush1.msra.mxu0 %v1653
        %1693 = vmatprep.subr.mxu0 0.0
        %1694 = vmatpush1.msra.mxu0 0.0
        %1695 = vmatprep.subr.mxu0 0.0
        %1696 = vmatpush1.msra.mxu0 0.0
        %1697 = vmatprep.subr.mxu0 0.0
        %1698 = vmatpush1.msra.mxu0 0.0
        %1699 = vmatprep.subr.mxu0 0.0
        %1700 = vmatpush1.msra.mxu0 0.0
        %1701 = vmatprep.subr.mxu0 0.0
        %1702 = vmatpush1.msra.mxu0 0.0
        %1703 = vmatprep.subr.mxu0 0.0
        %1704 = vmatpush1.msra.mxu0 0.0
        %1705 = vmatprep.subr.mxu0 0.0
        %1706 = vmatpush1.msra.mxu0 0.0
        %1707 = vmatprep.subr.mxu0 0.0
        %1708 = vmatpush1.msra.mxu0 0.0
        %1709 = vmatprep.subr.mxu0 0.0
        %1710 = vmatpush1.msra.mxu0 0.0
        %1711 = vmatprep.subr.mxu0 0.0
        %1712 = vmatpush1.msra.mxu0 0.0
        %1713 = vmatprep.subr.mxu0 0.0
        %1714 = vmatpush1.msra.mxu0 0.0
        %1715 = vmatprep.subr.mxu0 0.0
        %1716 = vmatpush1.msra.mxu0 0.0
        %1717 = vmatprep.subr.mxu0 0.0
        %1718 = vmatpush1.msra.mxu0 0.0
        %1719 = vmatprep.subr.mxu0 0.0
        %1720 = vmatpush1.msra.mxu0 0.0
        %1721 = vmatprep.subr.mxu0 0.0
        %1722 = vmatpush1.msra.mxu0 0.0
        %1723 = vmatprep.subr.mxu0 0.0
        %1724 = vmatpush1.msra.mxu0 0.0
        %1725 = vmatprep.mubr.f32.mxu0 0.0
        %1726 = vmatmul.mubr.f32.gmra.mrb[0].mxu0 %v1637
        %v1727 = vpop.f32.mrb[0].mxu0
        %v1728 = vadd.f32 %v1659, %v1727
        %v1729 = vpop.f32.mrb[0].mxu0
        %1730 = vdwg.mxu0
        %v1731 = vadd.f32 %v1523, %v1728
        %s1732 = scalar_lea.vmem %s3, 1
        %v1733 = vld [vmem:[%s1732] sm:$0x1]
        %s1734 = scalar_lea.vmem %s4, 1
        %v1735 = vld [vmem:[%s1734] sm:$0x1]
        %v1736 = vsel %vm656, %v1731, 0.0
        %1737 = vadd.xlane.f32.xlu0 %v1736
        %v1738 = vpop.xlane.xlu0 %1737
        %v1739 = vmul.f32 %v1738, %v660
        %v1740 = vsub.f32 %v1731, %v1739
        %v1741 = vmul.f32 %v1740, %v1740
        %v1742 = vsel %vm656, %v1741, 0.0
        %1743 = vadd.xlane.f32.xlu0 %v1742
        %v1744 = vpop.xlane.xlu0 %1743
        %v1745 = vmul.f32 %v1744, %v660
        %v1746 = vadd.f32 %v1745, 1e-05
        %v1747 = vrsqrt.pop %v1746
        %v1748 = vmul.f32 %v1740, %v1747
        %v1750 = vlaneseq
        %v1751 = vshrl.u32 %v1750, 7
        %v1752 = vsub.s32 0, %v1751
        %v1753 = vrot.slane %v1733, %v1752
        %v1755 = vmul.f32 %v1748, %v1753
        %v1757 = vlaneseq
        %v1758 = vshrl.u32 %v1757, 7
        %v1759 = vsub.s32 0, %v1758
        %v1760 = vrot.slane %v1735, %v1759
        %v1762 = vadd.f32 %v1755, %v1760
        %s1763 = scalar_lea.vmem %s5, 32
        %v1764 = vld [vmem:[%s1763] sm:$0xff]
        %v1765 = vld [vmem:[%s1763 + $0x8] sm:$0xff]
        %v1766 = vld [vmem:[%s1763 + $0x10] sm:$0xff]
        %v1767 = vld [vmem:[%s1763 + $0x18] sm:$0xff]
        %v1769 = vsel %vm656, %v1762, 0
        %1771 = vmatprep.subr.mxu0 0.0
        %1772 = vmatpush1.msra.mxu0 %v1764
        %1773 = vmatprep.subr.mxu0 0.0
        %1774 = vmatpush1.msra.mxu0 %v1765
        %1775 = vmatprep.subr.mxu0 0.0
        %1776 = vmatpush1.msra.mxu0 %v1766
        %1777 = vmatprep.subr.mxu0 0.0
        %1778 = vmatpush1.msra.mxu0 %v1767
        %1779 = vmatprep.subr.mxu0 0.0
        %1780 = vmatpush1.msra.mxu0 0.0
        %1781 = vmatprep.subr.mxu0 0.0
        %1782 = vmatpush1.msra.mxu0 0.0
        %1783 = vmatprep.subr.mxu0 0.0
        %1784 = vmatpush1.msra.mxu0 0.0
        %1785 = vmatprep.subr.mxu0 0.0
        %1786 = vmatpush1.msra.mxu0 0.0
        %1787 = vmatprep.subr.mxu0 0.0
        %1788 = vmatpush1.msra.mxu0 0.0
        %1789 = vmatprep.subr.mxu0 0.0
        %1790 = vmatpush1.msra.mxu0 0.0
        %1791 = vmatprep.subr.mxu0 0.0
        %1792 = vmatpush1.msra.mxu0 0.0
        %1793 = vmatprep.subr.mxu0 0.0
        %1794 = vmatpush1.msra.mxu0 0.0
        %1795 = vmatprep.subr.mxu0 0.0
        %1796 = vmatpush1.msra.mxu0 0.0
        %1797 = vmatprep.subr.mxu0 0.0
        %1798 = vmatpush1.msra.mxu0 0.0
        %1799 = vmatprep.subr.mxu0 0.0
        %1800 = vmatpush1.msra.mxu0 0.0
        %1801 = vmatprep.subr.mxu0 0.0
        %1802 = vmatpush1.msra.mxu0 0.0
        %1803 = vmatprep.subr.mxu0 0.0
        %1804 = vmatpush1.msra.mxu0 0.0
        %1805 = vmatprep.subr.mxu0 0.0
        %1806 = vmatpush1.msra.mxu0 0.0
        %1807 = vmatprep.subr.mxu0 0.0
        %1808 = vmatpush1.msra.mxu0 0.0
        %1809 = vmatprep.subr.mxu0 0.0
        %1810 = vmatpush1.msra.mxu0 0.0
        %1811 = vmatprep.subr.mxu0 0.0
        %1812 = vmatpush1.msra.mxu0 0.0
        %1813 = vmatprep.subr.mxu0 0.0
        %1814 = vmatpush1.msra.mxu0 0.0
        %1815 = vmatprep.subr.mxu0 0.0
        %1816 = vmatpush1.msra.mxu0 0.0
        %1817 = vmatprep.subr.mxu0 0.0
        %1818 = vmatpush1.msra.mxu0 0.0
        %1819 = vmatprep.subr.mxu0 0.0
        %1820 = vmatpush1.msra.mxu0 0.0
        %1821 = vmatprep.subr.mxu0 0.0
        %1822 = vmatpush1.msra.mxu0 0.0
        %1823 = vmatprep.subr.mxu0 0.0
        %1824 = vmatpush1.msra.mxu0 0.0
        %1825 = vmatprep.subr.mxu0 0.0
        %1826 = vmatpush1.msra.mxu0 0.0
        %1827 = vmatprep.subr.mxu0 0.0
        %1828 = vmatpush1.msra.mxu0 0.0
        %1829 = vmatprep.subr.mxu0 0.0
        %1830 = vmatpush1.msra.mxu0 0.0
        %1831 = vmatprep.subr.mxu0 0.0
        %1832 = vmatpush1.msra.mxu0 0.0
        %1833 = vmatprep.subr.mxu0 0.0
        %1834 = vmatpush1.msra.mxu0 0.0
        %1835 = vmatprep.mubr.f32.mxu0 0.0
        %1836 = vmatmul.mubr.f32.gmra.mrb[0].mxu0 %v1769
        %v1837 = vpop.f32.mrb[0].mxu0
        %v1838 = vadd.f32 0.0, %v1837
        %v1839 = vpop.f32.mrb[0].mxu0
        %1840 = vdwg.mxu0
        %1842 = vrot.lane.b32.xlu0 %v1838, 96
        %v1843 = vpop.permute.xlu0 %1842
        %v1844 = vsel %vm765, %v1838, 0
        %v1846 = vsel %vm765, %v1843, 0
        %1848 = vmatprep.subr.mxu0 0.0
        %1849 = vmatpush1.xpose.msra.mxu0 %v1846
        %1850 = vmatprep.subr.mxu0 0.0
        %1851 = vmatpush1.xpose.msra.mxu0 0.0
        %1852 = vmatprep.subr.mxu0 0.0
        %1853 = vmatpush1.xpose.msra.mxu0 0.0
        %1854 = vmatprep.subr.mxu0 0.0
        %1855 = vmatpush1.xpose.msra.mxu0 0.0
        %1856 = vmatprep.subr.mxu0 0.0
        %1857 = vmatpush1.xpose.msra.mxu0 0.0
        %1858 = vmatprep.subr.mxu0 0.0
        %1859 = vmatpush1.xpose.msra.mxu0 0.0
        %1860 = vmatprep.subr.mxu0 0.0
        %1861 = vmatpush1.xpose.msra.mxu0 0.0
        %1862 = vmatprep.subr.mxu0 0.0
        %1863 = vmatpush1.xpose.msra.mxu0 0.0
        %1864 = vmatprep.subr.mxu0 0.0
        %1865 = vmatpush1.xpose.msra.mxu0 0.0
        %1866 = vmatprep.subr.mxu0 0.0
        %1867 = vmatpush1.xpose.msra.mxu0 0.0
        %1868 = vmatprep.subr.mxu0 0.0
        %1869 = vmatpush1.xpose.msra.mxu0 0.0
        %1870 = vmatprep.subr.mxu0 0.0
        %1871 = vmatpush1.xpose.msra.mxu0 0.0
        %1872 = vmatprep.subr.mxu0 0.0
        %1873 = vmatpush1.xpose.msra.mxu0 0.0
        %1874 = vmatprep.subr.mxu0 0.0
        %1875 = vmatpush1.xpose.msra.mxu0 0.0
        %1876 = vmatprep.subr.mxu0 0.0
        %1877 = vmatpush1.xpose.msra.mxu0 0.0
        %1878 = vmatprep.subr.mxu0 0.0
        %1879 = vmatpush1.xpose.msra.mxu0 0.0
        %1880 = vmatprep.subr.mxu0 0.0
        %1881 = vmatpush1.xpose.msra.mxu0 0.0
        %1882 = vmatprep.subr.mxu0 0.0
        %1883 = vmatpush1.xpose.msra.mxu0 0.0
        %1884 = vmatprep.subr.mxu0 0.0
        %1885 = vmatpush1.xpose.msra.mxu0 0.0
        %1886 = vmatprep.subr.mxu0 0.0
        %1887 = vmatpush1.xpose.msra.mxu0 0.0
        %1888 = vmatprep.subr.mxu0 0.0
        %1889 = vmatpush1.xpose.msra.mxu0 0.0
        %1890 = vmatprep.subr.mxu0 0.0
        %1891 = vmatpush1.xpose.msra.mxu0 0.0
        %1892 = vmatprep.subr.mxu0 0.0
        %1893 = vmatpush1.xpose.msra.mxu0 0.0
        %1894 = vmatprep.subr.mxu0 0.0
        %1895 = vmatpush1.xpose.msra.mxu0 0.0
        %1896 = vmatprep.subr.mxu0 0.0
        %1897 = vmatpush1.xpose.msra.mxu0 0.0
        %1898 = vmatprep.subr.mxu0 0.0
        %1899 = vmatpush1.xpose.msra.mxu0 0.0
        %1900 = vmatprep.subr.mxu0 0.0
        %1901 = vmatpush1.xpose.msra.mxu0 0.0
        %1902 = vmatprep.subr.mxu0 0.0
        %1903 = vmatpush1.xpose.msra.mxu0 0.0
        %1904 = vmatprep.subr.mxu0 0.0
        %1905 = vmatpush1.xpose.msra.mxu0 0.0
        %1906 = vmatprep.subr.mxu0 0.0
        %1907 = vmatpush1.xpose.msra.mxu0 0.0
        %1908 = vmatprep.subr.mxu0 0.0
        %1909 = vmatpush1.xpose.msra.mxu0 0.0
        %1910 = vmatprep.subr.mxu0 0.0
        %1911 = vmatpush1.xpose.msra.mxu0 0.0
        %1912 = vmatprep.mubr.f32.mxu0 0.0
        %1913 = vmatmul.mubr.f32.gmra.mrb[0].mxu0 %v1844
        %v1914 = vpop.f32.mrb[0].mxu0
        %v1915 = vadd.f32 0.0, %v1914
        %v1916 = vpop.f32.mrb[0].mxu0
        %1917 = vdwg.mxu0
        %v1918 = vsel %vm765, %v1915, -inf
        %1919 = vmax.xlane.f32.xlu0 %v1918
        %v1920 = vpop.xlane.xlu0 %1919
        %v1921 = vsub.f32 %v1915, %v1920
        %v1922 = vmul.f32 %v1921, 1.442695
        %v1923 = vpow.pop %v1922
        %v1924 = vsel %vm765, %v1923, 0.0
        %1925 = vadd.xlane.f32.xlu0 %v1924
        %v1926 = vpop.xlane.xlu0 %1925
        %v1927 = vrcp.pop %v1926
        %v1928 = vmul.f32 %v1923, %v1927
        %1929 = vrot.lane.b32.xlu0 %v1838, 64
        %v1930 = vpop.permute.xlu0 %1929
        %v1933 = vsel %vm765, %v1928, 0
        %1935 = vmatprep.subr.mxu0 0.0
        %1936 = vmatpush1.msra.mxu0 %v1930
        %1937 = vmatprep.subr.mxu0 0.0
        %1938 = vmatpush1.msra.mxu0 0.0
        %1939 = vmatprep.subr.mxu0 0.0
        %1940 = vmatpush1.msra.mxu0 0.0
        %1941 = vmatprep.subr.mxu0 0.0
        %1942 = vmatpush1.msra.mxu0 0.0
        %1943 = vmatprep.subr.mxu0 0.0
        %1944 = vmatpush1.msra.mxu0 0.0
        %1945 = vmatprep.subr.mxu0 0.0
        %1946 = vmatpush1.msra.mxu0 0.0
        %1947 = vmatprep.subr.mxu0 0.0
        %1948 = vmatpush1.msra.mxu0 0.0
        %1949 = vmatprep.subr.mxu0 0.0
        %1950 = vmatpush1.msra.mxu0 0.0
        %1951 = vmatprep.subr.mxu0 0.0
        %1952 = vmatpush1.msra.mxu0 0.0
        %1953 = vmatprep.subr.mxu0 0.0
        %1954 = vmatpush1.msra.mxu0 0.0
        %1955 = vmatprep.subr.mxu0 0.0
        %1956 = vmatpush1.msra.mxu0 0.0
        %1957 = vmatprep.subr.mxu0 0.0
        %1958 = vmatpush1.msra.mxu0 0.0
        %1959 = vmatprep.subr.mxu0 0.0
        %1960 = vmatpush1.msra.mxu0 0.0
        %1961 = vmatprep.subr.mxu0 0.0
        %1962 = vmatpush1.msra.mxu0 0.0
        %1963 = vmatprep.subr.mxu0 0.0
        %1964 = vmatpush1.msra.mxu0 0.0
        %1965 = vmatprep.subr.mxu0 0.0
        %1966 = vmatpush1.msra.mxu0 0.0
        %1967 = vmatprep.subr.mxu0 0.0
        %1968 = vmatpush1.msra.mxu0 0.0
        %1969 = vmatprep.subr.mxu0 0.0
        %1970 = vmatpush1.msra.mxu0 0.0
        %1971 = vmatprep.subr.mxu0 0.0
        %1972 = vmatpush1.msra.mxu0 0.0
        %1973 = vmatprep.subr.mxu0 0.0
        %1974 = vmatpush1.msra.mxu0 0.0
        %1975 = vmatprep.subr.mxu0 0.0
        %1976 = vmatpush1.msra.mxu0 0.0
        %1977 = vmatprep.subr.mxu0 0.0
        %1978 = vmatpush1.msra.mxu0 0.0
        %1979 = vmatprep.subr.mxu0 0.0
        %1980 = vmatpush1.msra.mxu0 0.0
        %1981 = vmatprep.subr.mxu0 0.0
        %1982 = vmatpush1.msra.mxu0 0.0
        %1983 = vmatprep.subr.mxu0 0.0
        %1984 = vmatpush1.msra.mxu0 0.0
        %1985 = vmatprep.subr.mxu0 0.0
        %1986 = vmatpush1.msra.mxu0 0.0
        %1987 = vmatprep.subr.mxu0 0.0
        %1988 = vmatpush1.msra.mxu0 0.0
        %1989 = vmatprep.subr.mxu0 0.0
        %1990 = vmatpush1.msra.mxu0 0.0
        %1991 = vmatprep.subr.mxu0 0.0
        %1992 = vmatpush1.msra.mxu0 0.0
        %1993 = vmatprep.subr.mxu0 0.0
        %1994 = vmatpush1.msra.mxu0 0.0
        %1995 = vmatprep.subr.mxu0 0.0
        %1996 = vmatpush1.msra.mxu0 0.0
        %1997 = vmatprep.subr.mxu0 0.0
        %1998 = vmatpush1.msra.mxu0 0.0
        %1999 = vmatprep.mubr.f32.mxu0 0.0
        %2000 = vmatmul.mubr.f32.gmra.mrb[0].mxu0 %v1933
        %v2001 = vpop.f32.mrb[0].mxu0
        %v2002 = vadd.f32 0.0, %v2001
        %v2003 = vpop.f32.mrb[0].mxu0
        %2004 = vdwg.mxu0
        %2005 = vrot.lane.b32.xlu0 %v1838, 120
        %v2006 = vpop.permute.xlu0 %2005
        %2007 = vrot.lane.b32.xlu0 %v1838, 88
        %v2008 = vpop.permute.xlu0 %2007
        %v2009 = vsel %vm765, %v2006, 0
        %v2011 = vsel %vm765, %v2008, 0
        %2013 = vmatprep.subr.mxu0 0.0
        %2014 = vmatpush1.xpose.msra.mxu0 %v2011
        %2015 = vmatprep.subr.mxu0 0.0
        %2016 = vmatpush1.xpose.msra.mxu0 0.0
        %2017 = vmatprep.subr.mxu0 0.0
        %2018 = vmatpush1.xpose.msra.mxu0 0.0
        %2019 = vmatprep.subr.mxu0 0.0
        %2020 = vmatpush1.xpose.msra.mxu0 0.0
        %2021 = vmatprep.subr.mxu0 0.0
        %2022 = vmatpush1.xpose.msra.mxu0 0.0
        %2023 = vmatprep.subr.mxu0 0.0
        %2024 = vmatpush1.xpose.msra.mxu0 0.0
        %2025 = vmatprep.subr.mxu0 0.0
        %2026 = vmatpush1.xpose.msra.mxu0 0.0
        %2027 = vmatprep.subr.mxu0 0.0
        %2028 = vmatpush1.xpose.msra.mxu0 0.0
        %2029 = vmatprep.subr.mxu0 0.0
        %2030 = vmatpush1.xpose.msra.mxu0 0.0
        %2031 = vmatprep.subr.mxu0 0.0
        %2032 = vmatpush1.xpose.msra.mxu0 0.0
        %2033 = vmatprep.subr.mxu0 0.0
        %2034 = vmatpush1.xpose.msra.mxu0 0.0
        %2035 = vmatprep.subr.mxu0 0.0
        %2036 = vmatpush1.xpose.msra.mxu0 0.0
        %2037 = vmatprep.subr.mxu0 0.0
        %2038 = vmatpush1.xpose.msra.mxu0 0.0
        %2039 = vmatprep.subr.mxu0 0.0
        %2040 = vmatpush1.xpose.msra.mxu0 0.0
        %2041 = vmatprep.subr.mxu0 0.0
        %2042 = vmatpush1.xpose.msra.mxu0 0.0
        %2043 = vmatprep.subr.mxu0 0.0
        %2044 = vmatpush1.xpose.msra.mxu0 0.0
        %2045 = vmatprep.subr.mxu0 0.0
        %2046 = vmatpush1.xpose.msra.mxu0 0.0
        %2047 = vmatprep.subr.mxu0 0.0
        %2048 = vmatpush1.xpose.msra.mxu0 0.0
        %2049 = vmatprep.subr.mxu0 0.0
        %2050 = vmatpush1.xpose.msra.mxu0 0.0
        %2051 = vmatprep.subr.mxu0 0.0
        %2052 = vmatpush1.xpose.msra.mxu0 0.0
        %2053 = vmatprep.subr.mxu0 0.0
        %2054 = vmatpush1.xpose.msra.mxu0 0.0
        %2055 = vmatprep.subr.mxu0 0.0
        %2056 = vmatpush1.xpose.msra.mxu0 0.0
        %2057 = vmatprep.subr.mxu0 0.0
        %2058 = vmatpush1.xpose.msra.mxu0 0.0
        %2059 = vmatprep.subr.mxu0 0.0
        %2060 = vmatpush1.xpose.msra.mxu0 0.0
        %2061 = vmatprep.subr.mxu0 0.0
        %2062 = vmatpush1.xpose.msra.mxu0 0.0
        %2063 = vmatprep.subr.mxu0 0.0
        %2064 = vmatpush1.xpose.msra.mxu0 0.0
        %2065 = vmatprep.subr.mxu0 0.0
        %2066 = vmatpush1.xpose.msra.mxu0 0.0
        %2067 = vmatprep.subr.mxu0 0.0
        %2068 = vmatpush1.xpose.msra.mxu0 0.0
        %2069 = vmatprep.subr.mxu0 0.0
        %2070 = vmatpush1.xpose.msra.mxu0 0.0
        %2071 = vmatprep.subr.mxu0 0.0
        %2072 = vmatpush1.xpose.msra.mxu0 0.0
        %2073 = vmatprep.subr.mxu0 0.0
        %2074 = vmatpush1.xpose.msra.mxu0 0.0
        %2075 = vmatprep.subr.mxu0 0.0
        %2076 = vmatpush1.xpose.msra.mxu0 0.0
        %2077 = vmatprep.mubr.f32.mxu0 0.0
        %2078 = vmatmul.mubr.f32.gmra.mrb[0].mxu0 %v2009
        %v2079 = vpop.f32.mrb[0].mxu0
        %v2080 = vadd.f32 0.0, %v2079
        %v2081 = vpop.f32.mrb[0].mxu0
        %2082 = vdwg.mxu0
        %v2083 = vsel %vm765, %v2080, -inf
        %2084 = vmax.xlane.f32.xlu0 %v2083
        %v2085 = vpop.xlane.xlu0 %2084
        %v2086 = vsub.f32 %v2080, %v2085
        %v2087 = vmul.f32 %v2086, 1.442695
        %v2088 = vpow.pop %v2087
        %v2089 = vsel %vm765, %v2088, 0.0
        %2090 = vadd.xlane.f32.xlu0 %v2089
        %v2091 = vpop.xlane.xlu0 %2090
        %v2092 = vrcp.pop %v2091
        %v2093 = vmul.f32 %v2088, %v2092
        %2094 = vrot.lane.b32.xlu0 %v1838, 56
        %v2095 = vpop.permute.xlu0 %2094
        %v2098 = vsel %vm765, %v2093, 0
        %2100 = vmatprep.subr.mxu0 0.0
        %2101 = vmatpush1.msra.mxu0 %v2095
        %2102 = vmatprep.subr.mxu0 0.0
        %2103 = vmatpush1.msra.mxu0 0.0
        %2104 = vmatprep.subr.mxu0 0.0
        %2105 = vmatpush1.msra.mxu0 0.0
        %2106 = vmatprep.subr.mxu0 0.0
        %2107 = vmatpush1.msra.mxu0 0.0
        %2108 = vmatprep.subr.mxu0 0.0
        %2109 = vmatpush1.msra.mxu0 0.0
        %2110 = vmatprep.subr.mxu0 0.0
        %2111 = vmatpush1.msra.mxu0 0.0
        %2112 = vmatprep.subr.mxu0 0.0
        %2113 = vmatpush1.msra.mxu0 0.0
        %2114 = vmatprep.subr.mxu0 0.0
        %2115 = vmatpush1.msra.mxu0 0.0
        %2116 = vmatprep.subr.mxu0 0.0
        %2117 = vmatpush1.msra.mxu0 0.0
        %2118 = vmatprep.subr.mxu0 0.0
        %2119 = vmatpush1.msra.mxu0 0.0
        %2120 = vmatprep.subr.mxu0 0.0
        %2121 = vmatpush1.msra.mxu0 0.0
        %2122 = vmatprep.subr.mxu0 0.0
        %2123 = vmatpush1.msra.mxu0 0.0
        %2124 = vmatprep.subr.mxu0 0.0
        %2125 = vmatpush1.msra.mxu0 0.0
        %2126 = vmatprep.subr.mxu0 0.0
        %2127 = vmatpush1.msra.mxu0 0.0
        %2128 = vmatprep.subr.mxu0 0.0
        %2129 = vmatpush1.msra.mxu0 0.0
        %2130 = vmatprep.subr.mxu0 0.0
        %2131 = vmatpush1.msra.mxu0 0.0
        %2132 = vmatprep.subr.mxu0 0.0
        %2133 = vmatpush1.msra.mxu0 0.0
        %2134 = vmatprep.subr.mxu0 0.0
        %2135 = vmatpush1.msra.mxu0 0.0
        %2136 = vmatprep.subr.mxu0 0.0
        %2137 = vmatpush1.msra.mxu0 0.0
        %2138 = vmatprep.subr.mxu0 0.0
        %2139 = vmatpush1.msra.mxu0 0.0
        %2140 = vmatprep.subr.mxu0 0.0
        %2141 = vmatpush1.msra.mxu0 0.0
        %2142 = vmatprep.subr.mxu0 0.0
        %2143 = vmatpush1.msra.mxu0 0.0
        %2144 = vmatprep.subr.mxu0 0.0
        %2145 = vmatpush1.msra.mxu0 0.0
        %2146 = vmatprep.subr.mxu0 0.0
        %2147 = vmatpush1.msra.mxu0 0.0
        %2148 = vmatprep.subr.mxu0 0.0
        %2149 = vmatpush1.msra.mxu0 0.0
        %2150 = vmatprep.subr.mxu0 0.0
        %2151 = vmatpush1.msra.mxu0 0.0
        %2152 = vmatprep.subr.mxu0 0.0
        %2153 = vmatpush1.msra.mxu0 0.0
        %2154 = vmatprep.subr.mxu0 0.0
        %2155 = vmatpush1.msra.mxu0 0.0
        %2156 = vmatprep.subr.mxu0 0.0
        %2157 = vmatpush1.msra.mxu0 0.0
        %2158 = vmatprep.subr.mxu0 0.0
        %2159 = vmatpush1.msra.mxu0 0.0
        %2160 = vmatprep.subr.mxu0 0.0
        %2161 = vmatpush1.msra.mxu0 0.0
        %2162 = vmatprep.subr.mxu0 0.0
        %2163 = vmatpush1.msra.mxu0 0.0
        %2164 = vmatprep.mubr.f32.mxu0 0.0
        %2165 = vmatmul.mubr.f32.gmra.mrb[0].mxu0 %v2098
        %v2166 = vpop.f32.mrb[0].mxu0
        %v2167 = vadd.f32 0.0, %v2166
        %v2168 = vpop.f32.mrb[0].mxu0
        %2169 = vdwg.mxu0
        %2170 = vrot.lane.b32.xlu0 %v1838, 112
        %v2171 = vpop.permute.xlu0 %2170
        %2172 = vrot.lane.b32.xlu0 %v1838, 80
        %v2173 = vpop.permute.xlu0 %2172
        %v2174 = vsel %vm765, %v2171, 0
        %v2176 = vsel %vm765, %v2173, 0
        %2178 = vmatprep.subr.mxu0 0.0
        %2179 = vmatpush1.xpose.msra.mxu0 %v2176
        %2180 = vmatprep.subr.mxu0 0.0
        %2181 = vmatpush1.xpose.msra.mxu0 0.0
        %2182 = vmatprep.subr.mxu0 0.0
        %2183 = vmatpush1.xpose.msra.mxu0 0.0
        %2184 = vmatprep.subr.mxu0 0.0
        %2185 = vmatpush1.xpose.msra.mxu0 0.0
        %2186 = vmatprep.subr.mxu0 0.0
        %2187 = vmatpush1.xpose.msra.mxu0 0.0
        %2188 = vmatprep.subr.mxu0 0.0
        %2189 = vmatpush1.xpose.msra.mxu0 0.0
        %2190 = vmatprep.subr.mxu0 0.0
        %2191 = vmatpush1.xpose.msra.mxu0 0.0
        %2192 = vmatprep.subr.mxu0 0.0
        %2193 = vmatpush1.xpose.msra.mxu0 0.0
        %2194 = vmatprep.subr.mxu0 0.0
        %2195 = vmatpush1.xpose.msra.mxu0 0.0
        %2196 = vmatprep.subr.mxu0 0.0
        %2197 = vmatpush1.xpose.msra.mxu0 0.0
        %2198 = vmatprep.subr.mxu0 0.0
        %2199 = vmatpush1.xpose.msra.mxu0 0.0
        %2200 = vmatprep.subr.mxu0 0.0
        %2201 = vmatpush1.xpose.msra.mxu0 0.0
        %2202 = vmatprep.subr.mxu0 0.0
        %2203 = vmatpush1.xpose.msra.mxu0 0.0
        %2204 = vmatprep.subr.mxu0 0.0
        %2205 = vmatpush1.xpose.msra.mxu0 0.0
        %2206 = vmatprep.subr.mxu0 0.0
        %2207 = vmatpush1.xpose.msra.mxu0 0.0
        %2208 = vmatprep.subr.mxu0 0.0
        %2209 = vmatpush1.xpose.msra.mxu0 0.0
        %2210 = vmatprep.subr.mxu0 0.0
        %2211 = vmatpush1.xpose.msra.mxu0 0.0
        %2212 = vmatprep.subr.mxu0 0.0
        %2213 = vmatpush1.xpose.msra.mxu0 0.0
        %2214 = vmatprep.subr.mxu0 0.0
        %2215 = vmatpush1.xpose.msra.mxu0 0.0
        %2216 = vmatprep.subr.mxu0 0.0
        %2217 = vmatpush1.xpose.msra.mxu0 0.0
        %2218 = vmatprep.subr.mxu0 0.0
        %2219 = vmatpush1.xpose.msra.mxu0 0.0
        %2220 = vmatprep.subr.mxu0 0.0
        %2221 = vmatpush1.xpose.msra.mxu0 0.0
        %2222 = vmatprep.subr.mxu0 0.0
        %2223 = vmatpush1.xpose.msra.mxu0 0.0
        %2224 = vmatprep.subr.mxu0 0.0
        %2225 = vmatpush1.xpose.msra.mxu0 0.0
        %2226 = vmatprep.subr.mxu0 0.0
        %2227 = vmatpush1.xpose.msra.mxu0 0.0
        %2228 = vmatprep.subr.mxu0 0.0
        %2229 = vmatpush1.xpose.msra.mxu0 0.0
        %2230 = vmatprep.subr.mxu0 0.0
        %2231 = vmatpush1.xpose.msra.mxu0 0.0
        %2232 = vmatprep.subr.mxu0 0.0
        %2233 = vmatpush1.xpose.msra.mxu0 0.0
        %2234 = vmatprep.subr.mxu0 0.0
        %2235 = vmatpush1.xpose.msra.mxu0 0.0
        %2236 = vmatprep.subr.mxu0 0.0
        %2237 = vmatpush1.xpose.msra.mxu0 0.0
        %2238 = vmatprep.subr.mxu0 0.0
        %2239 = vmatpush1.xpose.msra.mxu0 0.0
        %2240 = vmatprep.subr.mxu0 0.0
        %2241 = vmatpush1.xpose.msra.mxu0 0.0
        %2242 = vmatprep.mubr.f32.mxu0 0.0
        %2243 = vmatmul.mubr.f32.gmra.mrb[0].mxu0 %v2174
        %v2244 = vpop.f32.mrb[0].mxu0
        %v2245 = vadd.f32 0.0, %v2244
        %v2246 = vpop.f32.mrb[0].mxu0
        %2247 = vdwg.mxu0
        %v2248 = vsel %vm765, %v2245, -inf
        %2249 = vmax.xlane.f32.xlu0 %v2248
        %v2250 = vpop.xlane.xlu0 %2249
        %v2251 = vsub.f32 %v2245, %v2250
        %v2252 = vmul.f32 %v2251, 1.442695
        %v2253 = vpow.pop %v2252
        %v2254 = vsel %vm765, %v2253, 0.0
        %2255 = vadd.xlane.f32.xlu0 %v2254
        %v2256 = vpop.xlane.xlu0 %2255
        %v2257 = vrcp.pop %v2256
        %v2258 = vmul.f32 %v2253, %v2257
        %2259 = vrot.lane.b32.xlu0 %v1838, 48
        %v2260 = vpop.permute.xlu0 %2259
        %v2263 = vsel %vm765, %v2258, 0
        %2265 = vmatprep.subr.mxu0 0.0
        %2266 = vmatpush1.msra.mxu0 %v2260
        %2267 = vmatprep.subr.mxu0 0.0
        %2268 = vmatpush1.msra.mxu0 0.0
        %2269 = vmatprep.subr.mxu0 0.0
        %2270 = vmatpush1.msra.mxu0 0.0
        %2271 = vmatprep.subr.mxu0 0.0
        %2272 = vmatpush1.msra.mxu0 0.0
        %2273 = vmatprep.subr.mxu0 0.0
        %2274 = vmatpush1.msra.mxu0 0.0
        %2275 = vmatprep.subr.mxu0 0.0
        %2276 = vmatpush1.msra.mxu0 0.0
        %2277 = vmatprep.subr.mxu0 0.0
        %2278 = vmatpush1.msra.mxu0 0.0
        %2279 = vmatprep.subr.mxu0 0.0
        %2280 = vmatpush1.msra.mxu0 0.0
        %2281 = vmatprep.subr.mxu0 0.0
        %2282 = vmatpush1.msra.mxu0 0.0
        %2283 = vmatprep.subr.mxu0 0.0
        %2284 = vmatpush1.msra.mxu0 0.0
        %2285 = vmatprep.subr.mxu0 0.0
        %2286 = vmatpush1.msra.mxu0 0.0
        %2287 = vmatprep.subr.mxu0 0.0
        %2288 = vmatpush1.msra.mxu0 0.0
        %2289 = vmatprep.subr.mxu0 0.0
        %2290 = vmatpush1.msra.mxu0 0.0
        %2291 = vmatprep.subr.mxu0 0.0
        %2292 = vmatpush1.msra.mxu0 0.0
        %2293 = vmatprep.subr.mxu0 0.0
        %2294 = vmatpush1.msra.mxu0 0.0
        %2295 = vmatprep.subr.mxu0 0.0
        %2296 = vmatpush1.msra.mxu0 0.0
        %2297 = vmatprep.subr.mxu0 0.0
        %2298 = vmatpush1.msra.mxu0 0.0
        %2299 = vmatprep.subr.mxu0 0.0
        %2300 = vmatpush1.msra.mxu0 0.0
        %2301 = vmatprep.subr.mxu0 0.0
        %2302 = vmatpush1.msra.mxu0 0.0
        %2303 = vmatprep.subr.mxu0 0.0
        %2304 = vmatpush1.msra.mxu0 0.0
        %2305 = vmatprep.subr.mxu0 0.0
        %2306 = vmatpush1.msra.mxu0 0.0
        %2307 = vmatprep.subr.mxu0 0.0
        %2308 = vmatpush1.msra.mxu0 0.0
        %2309 = vmatprep.subr.mxu0 0.0
        %2310 = vmatpush1.msra.mxu0 0.0
        %2311 = vmatprep.subr.mxu0 0.0
        %2312 = vmatpush1.msra.mxu0 0.0
        %2313 = vmatprep.subr.mxu0 0.0
        %2314 = vmatpush1.msra.mxu0 0.0
        %2315 = vmatprep.subr.mxu0 0.0
        %2316 = vmatpush1.msra.mxu0 0.0
        %2317 = vmatprep.subr.mxu0 0.0
        %2318 = vmatpush1.msra.mxu0 0.0
        %2319 = vmatprep.subr.mxu0 0.0
        %2320 = vmatpush1.msra.mxu0 0.0
        %2321 = vmatprep.subr.mxu0 0.0
        %2322 = vmatpush1.msra.mxu0 0.0
        %2323 = vmatprep.subr.mxu0 0.0
        %2324 = vmatpush1.msra.mxu0 0.0
        %2325 = vmatprep.subr.mxu0 0.0
        %2326 = vmatpush1.msra.mxu0 0.0
        %2327 = vmatprep.subr.mxu0 0.0
        %2328 = vmatpush1.msra.mxu0 0.0
        %2329 = vmatprep.mubr.f32.mxu0 0.0
        %2330 = vmatmul.mubr.f32.gmra.mrb[0].mxu0 %v2263
        %v2331 = vpop.f32.mrb[0].mxu0
        %v2332 = vadd.f32 0.0, %v2331
        %v2333 = vpop.f32.mrb[0].mxu0
        %2334 = vdwg.mxu0
        %2335 = vrot.lane.b32.xlu0 %v1838, 104
        %v2336 = vpop.permute.xlu0 %2335
        %2337 = vrot.lane.b32.xlu0 %v1838, 72
        %v2338 = vpop.permute.xlu0 %2337
        %v2339 = vsel %vm765, %v2336, 0
        %v2341 = vsel %vm765, %v2338, 0
        %2343 = vmatprep.subr.mxu0 0.0
        %2344 = vmatpush1.xpose.msra.mxu0 %v2341
        %2345 = vmatprep.subr.mxu0 0.0
        %2346 = vmatpush1.xpose.msra.mxu0 0.0
        %2347 = vmatprep.subr.mxu0 0.0
        %2348 = vmatpush1.xpose.msra.mxu0 0.0
        %2349 = vmatprep.subr.mxu0 0.0
        %2350 = vmatpush1.xpose.msra.mxu0 0.0
        %2351 = vmatprep.subr.mxu0 0.0
        %2352 = vmatpush1.xpose.msra.mxu0 0.0
        %2353 = vmatprep.subr.mxu0 0.0
        %2354 = vmatpush1.xpose.msra.mxu0 0.0
        %2355 = vmatprep.subr.mxu0 0.0
        %2356 = vmatpush1.xpose.msra.mxu0 0.0
        %2357 = vmatprep.subr.mxu0 0.0
        %2358 = vmatpush1.xpose.msra.mxu0 0.0
        %2359 = vmatprep.subr.mxu0 0.0
        %2360 = vmatpush1.xpose.msra.mxu0 0.0
        %2361 = vmatprep.subr.mxu0 0.0
        %2362 = vmatpush1.xpose.msra.mxu0 0.0
        %2363 = vmatprep.subr.mxu0 0.0
        %2364 = vmatpush1.xpose.msra.mxu0 0.0
        %2365 = vmatprep.subr.mxu0 0.0
        %2366 = vmatpush1.xpose.msra.mxu0 0.0
        %2367 = vmatprep.subr.mxu0 0.0
        %2368 = vmatpush1.xpose.msra.mxu0 0.0
        %2369 = vmatprep.subr.mxu0 0.0
        %2370 = vmatpush1.xpose.msra.mxu0 0.0
        %2371 = vmatprep.subr.mxu0 0.0
        %2372 = vmatpush1.xpose.msra.mxu0 0.0
        %2373 = vmatprep.subr.mxu0 0.0
        %2374 = vmatpush1.xpose.msra.mxu0 0.0
        %2375 = vmatprep.subr.mxu0 0.0
        %2376 = vmatpush1.xpose.msra.mxu0 0.0
        %2377 = vmatprep.subr.mxu0 0.0
        %2378 = vmatpush1.xpose.msra.mxu0 0.0
        %2379 = vmatprep.subr.mxu0 0.0
        %2380 = vmatpush1.xpose.msra.mxu0 0.0
        %2381 = vmatprep.subr.mxu0 0.0
        %2382 = vmatpush1.xpose.msra.mxu0 0.0
        %2383 = vmatprep.subr.mxu0 0.0
        %2384 = vmatpush1.xpose.msra.mxu0 0.0
        %2385 = vmatprep.subr.mxu0 0.0
        %2386 = vmatpush1.xpose.msra.mxu0 0.0
        %2387 = vmatprep.subr.mxu0 0.0
        %2388 = vmatpush1.xpose.msra.mxu0 0.0
        %2389 = vmatprep.subr.mxu0 0.0
        %2390 = vmatpush1.xpose.msra.mxu0 0.0
        %2391 = vmatprep.subr.mxu0 0.0
        %2392 = vmatpush1.xpose.msra.mxu0 0.0
        %2393 = vmatprep.subr.mxu0 0.0
        %2394 = vmatpush1.xpose.msra.mxu0 0.0
        %2395 = vmatprep.subr.mxu0 0.0
        %2396 = vmatpush1.xpose.msra.mxu0 0.0
        %2397 = vmatprep.subr.mxu0 0.0
        %2398 = vmatpush1.xpose.msra.mxu0 0.0
        %2399 = vmatprep.subr.mxu0 0.0
        %2400 = vmatpush1.xpose.msra.mxu0 0.0
        %2401 = vmatprep.subr.mxu0 0.0
        %2402 = vmatpush1.xpose.msra.mxu0 0.0
        %2403 = vmatprep.subr.mxu0 0.0
        %2404 = vmatpush1.xpose.msra.mxu0 0.0
        %2405 = vmatprep.subr.mxu0 0.0
        %2406 = vmatpush1.xpose.msra.mxu0 0.0
        %2407 = vmatprep.mubr.f32.mxu0 0.0
        %2408 = vmatmul.mubr.f32.gmra.mrb[0].mxu0 %v2339
        %v2409 = vpop.f32.mrb[0].mxu0
        %v2410 = vadd.f32 0.0, %v2409
        %v2411 = vpop.f32.mrb[0].mxu0
        %2412 = vdwg.mxu0
        %v2413 = vsel %vm765, %v2410, -inf
        %2414 = vmax.xlane.f32.xlu0 %v2413
        %v2415 = vpop.xlane.xlu0 %2414
        %v2416 = vsub.f32 %v2410, %v2415
        %v2417 = vmul.f32 %v2416, 1.442695
        %v2418 = vpow.pop %v2417
        %v2419 = vsel %vm765, %v2418, 0.0
        %2420 = vadd.xlane.f32.xlu0 %v2419
        %v2421 = vpop.xlane.xlu0 %2420
        %v2422 = vrcp.pop %v2421
        %v2423 = vmul.f32 %v2418, %v2422
        %2424 = vrot.lane.b32.xlu0 %v1838, 40
        %v2425 = vpop.permute.xlu0 %2424
        %v2428 = vsel %vm765, %v2423, 0
        %2430 = vmatprep.subr.mxu0 0.0
        %2431 = vmatpush1.msra.mxu0 %v2425
        %2432 = vmatprep.subr.mxu0 0.0
        %2433 = vmatpush1.msra.mxu0 0.0
        %2434 = vmatprep.subr.mxu0 0.0
        %2435 = vmatpush1.msra.mxu0 0.0
        %2436 = vmatprep.subr.mxu0 0.0
        %2437 = vmatpush1.msra.mxu0 0.0
        %2438 = vmatprep.subr.mxu0 0.0
        %2439 = vmatpush1.msra.mxu0 0.0
        %2440 = vmatprep.subr.mxu0 0.0
        %2441 = vmatpush1.msra.mxu0 0.0
        %2442 = vmatprep.subr.mxu0 0.0
        %2443 = vmatpush1.msra.mxu0 0.0
        %2444 = vmatprep.subr.mxu0 0.0
        %2445 = vmatpush1.msra.mxu0 0.0
        %2446 = vmatprep.subr.mxu0 0.0
        %2447 = vmatpush1.msra.mxu0 0.0
        %2448 = vmatprep.subr.mxu0 0.0
        %2449 = vmatpush1.msra.mxu0 0.0
        %2450 = vmatprep.subr.mxu0 0.0
        %2451 = vmatpush1.msra.mxu0 0.0
        %2452 = vmatprep.subr.mxu0 0.0
        %2453 = vmatpush1.msra.mxu0 0.0
        %2454 = vmatprep.subr.mxu0 0.0
        %2455 = vmatpush1.msra.mxu0 0.0
        %2456 = vmatprep.subr.mxu0 0.0
        %2457 = vmatpush1.msra.mxu0 0.0
        %2458 = vmatprep.subr.mxu0 0.0
        %2459 = vmatpush1.msra.mxu0 0.0
        %2460 = vmatprep.subr.mxu0 0.0
        %2461 = vmatpush1.msra.mxu0 0.0
        %2462 = vmatprep.subr.mxu0 0.0
        %2463 = vmatpush1.msra.mxu0 0.0
        %2464 = vmatprep.subr.mxu0 0.0
        %2465 = vmatpush1.msra.mxu0 0.0
        %2466 = vmatprep.subr.mxu0 0.0
        %2467 = vmatpush1.msra.mxu0 0.0
        %2468 = vmatprep.subr.mxu0 0.0
        %2469 = vmatpush1.msra.mxu0 0.0
        %2470 = vmatprep.subr.mxu0 0.0
        %2471 = vmatpush1.msra.mxu0 0.0
        %2472 = vmatprep.subr.mxu0 0.0
        %2473 = vmatpush1.msra.mxu0 0.0
        %2474 = vmatprep.subr.mxu0 0.0
        %2475 = vmatpush1.msra.mxu0 0.0
        %2476 = vmatprep.subr.mxu0 0.0
        %2477 = vmatpush1.msra.mxu0 0.0
        %2478 = vmatprep.subr.mxu0 0.0
        %2479 = vmatpush1.msra.mxu0 0.0
        %2480 = vmatprep.subr.mxu0 0.0
        %2481 = vmatpush1.msra.mxu0 0.0
        %2482 = vmatprep.subr.mxu0 0.0
        %2483 = vmatpush1.msra.mxu0 0.0
        %2484 = vmatprep.subr.mxu0 0.0
        %2485 = vmatpush1.msra.mxu0 0.0
        %2486 = vmatprep.subr.mxu0 0.0
        %2487 = vmatpush1.msra.mxu0 0.0
        %2488 = vmatprep.subr.mxu0 0.0
        %2489 = vmatpush1.msra.mxu0 0.0
        %2490 = vmatprep.subr.mxu0 0.0
        %2491 = vmatpush1.msra.mxu0 0.0
        %2492 = vmatprep.subr.mxu0 0.0
        %2493 = vmatpush1.msra.mxu0 0.0
        %2494 = vmatprep.mubr.f32.mxu0 0.0
        %2495 = vmatmul.mubr.f32.gmra.mrb[0].mxu0 %v2428
        %v2496 = vpop.f32.mrb[0].mxu0
        %v2497 = vadd.f32 0.0, %v2496
        %v2498 = vpop.f32.mrb[0].mxu0
        %2499 = vdwg.mxu0
        %2501 = vrot.lane.b32.xlu0 %v2167, 8
        %v2502 = vpop.permute.xlu0 %2501
        %2505 = vrot.lane.b32.xlu0 %v2332, 16
        %v2506 = vpop.permute.xlu0 %2505
        %2509 = vrot.lane.b32.xlu0 %v2497, 24
        %v2510 = vpop.permute.xlu0 %2509
        %v2512 = vsel %vm765, %v2002, %v2502
        %v2513 = vsel %vm580, %v2512, %v2506
        %v2514 = vsel %vm1436, %v2513, %v2510
        %s2515 = scalar_lea.vmem %s6, 32
        %v2516 = vld [vmem:[%s2515] sm:$0xff]
        %v2517 = vld [vmem:[%s2515 + $0x8] sm:$0xff]
        %v2518 = vld [vmem:[%s2515 + $0x10] sm:$0xff]
        %v2519 = vld [vmem:[%s2515 + $0x18] sm:$0xff]
        %v2521 = vsel %vm656, %v2514, 0
        %2523 = vmatprep.subr.mxu0 0.0
        %2524 = vmatpush1.msra.mxu0 %v2516
        %2525 = vmatprep.subr.mxu0 0.0
        %2526 = vmatpush1.msra.mxu0 %v2517
        %2527 = vmatprep.subr.mxu0 0.0
        %2528 = vmatpush1.msra.mxu0 %v2518
        %2529 = vmatprep.subr.mxu0 0.0
        %2530 = vmatpush1.msra.mxu0 %v2519
        %2531 = vmatprep.subr.mxu0 0.0
        %2532 = vmatpush1.msra.mxu0 0.0
        %2533 = vmatprep.subr.mxu0 0.0
        %2534 = vmatpush1.msra.mxu0 0.0
        %2535 = vmatprep.subr.mxu0 0.0
        %2536 = vmatpush1.msra.mxu0 0.0
        %2537 = vmatprep.subr.mxu0 0.0
        %2538 = vmatpush1.msra.mxu0 0.0
        %2539 = vmatprep.subr.mxu0 0.0
        %2540 = vmatpush1.msra.mxu0 0.0
        %2541 = vmatprep.subr.mxu0 0.0
        %2542 = vmatpush1.msra.mxu0 0.0
        %2543 = vmatprep.subr.mxu0 0.0
        %2544 = vmatpush1.msra.mxu0 0.0
        %2545 = vmatprep.subr.mxu0 0.0
        %2546 = vmatpush1.msra.mxu0 0.0
        %2547 = vmatprep.subr.mxu0 0.0
        %2548 = vmatpush1.msra.mxu0 0.0
        %2549 = vmatprep.subr.mxu0 0.0
        %2550 = vmatpush1.msra.mxu0 0.0
        %2551 = vmatprep.subr.mxu0 0.0
        %2552 = vmatpush1.msra.mxu0 0.0
        %2553 = vmatprep.subr.mxu0 0.0
        %2554 = vmatpush1.msra.mxu0 0.0
        %2555 = vmatprep.subr.mxu0 0.0
        %2556 = vmatpush1.msra.mxu0 0.0
        %2557 = vmatprep.subr.mxu0 0.0
        %2558 = vmatpush1.msra.mxu0 0.0
        %2559 = vmatprep.subr.mxu0 0.0
        %2560 = vmatpush1.msra.mxu0 0.0
        %2561 = vmatprep.subr.mxu0 0.0
        %2562 = vmatpush1.msra.mxu0 0.0
        %2563 = vmatprep.subr.mxu0 0.0
        %2564 = vmatpush1.msra.mxu0 0.0
        %2565 = vmatprep.subr.mxu0 0.0
        %2566 = vmatpush1.msra.mxu0 0.0
        %2567 = vmatprep.subr.mxu0 0.0
        %2568 = vmatpush1.msra.mxu0 0.0
        %2569 = vmatprep.subr.mxu0 0.0
        %2570 = vmatpush1.msra.mxu0 0.0
        %2571 = vmatprep.subr.mxu0 0.0
        %2572 = vmatpush1.msra.mxu0 0.0
        %2573 = vmatprep.subr.mxu0 0.0
        %2574 = vmatpush1.msra.mxu0 0.0
        %2575 = vmatprep.subr.mxu0 0.0
        %2576 = vmatpush1.msra.mxu0 0.0
        %2577 = vmatprep.subr.mxu0 0.0
        %2578 = vmatpush1.msra.mxu0 0.0
        %2579 = vmatprep.subr.mxu0 0.0
        %2580 = vmatpush1.msra.mxu0 0.0
        %2581 = vmatprep.subr.mxu0 0.0
        %2582 = vmatpush1.msra.mxu0 0.0
        %2583 = vmatprep.subr.mxu0 0.0
        %2584 = vmatpush1.msra.mxu0 0.0
        %2585 = vmatprep.subr.mxu0 0.0
        %2586 = vmatpush1.msra.mxu0 0.0
        %2587 = vmatprep.mubr.f32.mxu0 0.0
        %2588 = vmatmul.mubr.f32.gmra.mrb[0].mxu0 %v2521
        %v2589 = vpop.f32.mrb[0].mxu0
        %v2590 = vadd.f32 0.0, %v2589
        %v2591 = vpop.f32.mrb[0].mxu0
        %2592 = vdwg.mxu0
        %v2593 = vadd.f32 %v1731, %v2590
        %s2594 = scalar_lea.vmem %s7, 1
        %v2595 = vld [vmem:[%s2594] sm:$0x1]
        %v2597 = vlaneseq
        %v2598 = vshrl.u32 %v2597, 7
        %v2599 = vsub.s32 0, %v2598
        %v2600 = vrot.slane %v2595, %v2599
        %v2602 = vadd.f32 %v2593, %v2600
        %s2603 = scalar_lea.vmem %s8, 1
        %v2604 = vld [vmem:[%s2603] sm:$0x1]
        %s2605 = scalar_lea.vmem %s9, 1
        %v2606 = vld [vmem:[%s2605] sm:$0x1]
        %v2607 = vsel %vm656, %v2602, 0.0
        %2608 = vadd.xlane.f32.xlu0 %v2607
        %v2609 = vpop.xlane.xlu0 %2608
        %v2610 = vmul.f32 %v2609, %v660
        %v2611 = vsub.f32 %v2602, %v2610
        %v2612 = vmul.f32 %v2611, %v2611
        %v2613 = vsel %vm656, %v2612, 0.0
        %2614 = vadd.xlane.f32.xlu0 %v2613
        %v2615 = vpop.xlane.xlu0 %2614
        %v2616 = vmul.f32 %v2615, %v660
        %v2617 = vadd.f32 %v2616, 1e-05
        %v2618 = vrsqrt.pop %v2617
        %v2619 = vmul.f32 %v2611, %v2618
        %v2621 = vlaneseq
        %v2622 = vshrl.u32 %v2621, 7
        %v2623 = vsub.s32 0, %v2622
        %v2624 = vrot.slane %v2604, %v2623
        %v2626 = vmul.f32 %v2619, %v2624
        %v2628 = vlaneseq
        %v2629 = vshrl.u32 %v2628, 7
        %v2630 = vsub.s32 0, %v2629
        %v2631 = vrot.slane %v2606, %v2630
        %v2633 = vadd.f32 %v2626, %v2631
        %s2634 = scalar_lea.vmem %s10, 32
        %v2635 = vld [vmem:[%s2634] sm:$0xff]
        %v2636 = vld [vmem:[%s2634 + $0x8] sm:$0xff]
        %v2637 = vld [vmem:[%s2634 + $0x10] sm:$0xff]
        %v2638 = vld [vmem:[%s2634 + $0x18] sm:$0xff]
        %s2639 = scalar_lea.vmem %s11, 1
        %v2640 = vld [vmem:[%s2639] sm:$0x1]
        %v2642 = vlaneseq
        %v2643 = vshrl.u32 %v2642, 7
        %v2644 = vsub.s32 0, %v2643
        %v2645 = vrot.slane %v2640, %v2644
        %v2648 = vsel %vm656, %v2633, 0
        %2650 = vmatprep.subr.mxu0 0.0
        %2651 = vmatpush1.msra.mxu0 %v2635
        %2652 = vmatprep.subr.mxu0 0.0
        %2653 = vmatpush1.msra.mxu0 %v2636
        %2654 = vmatprep.subr.mxu0 0.0
        %2655 = vmatpush1.msra.mxu0 %v2637
        %2656 = vmatprep.subr.mxu0 0.0
        %2657 = vmatpush1.msra.mxu0 %v2638
        %2658 = vmatprep.subr.mxu0 0.0
        %2659 = vmatpush1.msra.mxu0 0.0
        %2660 = vmatprep.subr.mxu0 0.0
        %2661 = vmatpush1.msra.mxu0 0.0
        %2662 = vmatprep.subr.mxu0 0.0
        %2663 = vmatpush1.msra.mxu0 0.0
        %2664 = vmatprep.subr.mxu0 0.0
        %2665 = vmatpush1.msra.mxu0 0.0
        %2666 = vmatprep.subr.mxu0 0.0
        %2667 = vmatpush1.msra.mxu0 0.0
        %2668 = vmatprep.subr.mxu0 0.0
        %2669 = vmatpush1.msra.mxu0 0.0
        %2670 = vmatprep.subr.mxu0 0.0
        %2671 = vmatpush1.msra.mxu0 0.0
        %2672 = vmatprep.subr.mxu0 0.0
        %2673 = vmatpush1.msra.mxu0 0.0
        %2674 = vmatprep.subr.mxu0 0.0
        %2675 = vmatpush1.msra.mxu0 0.0
        %2676 = vmatprep.subr.mxu0 0.0
        %2677 = vmatpush1.msra.mxu0 0.0
        %2678 = vmatprep.subr.mxu0 0.0
        %2679 = vmatpush1.msra.mxu0 0.0
        %2680 = vmatprep.subr.mxu0 0.0
        %2681 = vmatpush1.msra.mxu0 0.0
        %2682 = vmatprep.subr.mxu0 0.0
        %2683 = vmatpush1.msra.mxu0 0.0
        %2684 = vmatprep.subr.mxu0 0.0
        %2685 = vmatpush1.msra.mxu0 0.0
        %2686 = vmatprep.subr.mxu0 0.0
        %2687 = vmatpush1.msra.mxu0 0.0
        %2688 = vmatprep.subr.mxu0 0.0
        %2689 = vmatpush1.msra.mxu0 0.0
        %2690 = vmatprep.subr.mxu0 0.0
        %2691 = vmatpush1.msra.mxu0 0.0
        %2692 = vmatprep.subr.mxu0 0.0
        %2693 = vmatpush1.msra.mxu0 0.0
        %2694 = vmatprep.subr.mxu0 0.0
        %2695 = vmatpush1.msra.mxu0 0.0
        %2696 = vmatprep.subr.mxu0 0.0
        %2697 = vmatpush1.msra.mxu0 0.0
        %2698 = vmatprep.subr.mxu0 0.0
        %2699 = vmatpush1.msra.mxu0 0.0
        %2700 = vmatprep.subr.mxu0 0.0
        %2701 = vmatpush1.msra.mxu0 0.0
        %2702 = vmatprep.subr.mxu0 0.0
        %2703 = vmatpush1.msra.mxu0 0.0
        %2704 = vmatprep.subr.mxu0 0.0
        %2705 = vmatpush1.msra.mxu0 0.0
        %2706 = vmatprep.subr.mxu0 0.0
        %2707 = vmatpush1.msra.mxu0 0.0
        %2708 = vmatprep.subr.mxu0 0.0
        %2709 = vmatpush1.msra.mxu0 0.0
        %2710 = vmatprep.subr.mxu0 0.0
        %2711 = vmatpush1.msra.mxu0 0.0
        %2712 = vmatprep.subr.mxu0 0.0
        %2713 = vmatpush1.msra.mxu0 0.0
        %2714 = vmatprep.mubr.f32.mxu0 0.0
        %2715 = vmatmul.mubr.f32.gmra.mrb[0].mxu0 %v2648
        %v2716 = vpop.f32.mrb[0].mxu0
        %v2717 = vadd.f32 %v2645, %v2716
        %v2718 = vpop.f32.mrb[0].mxu0
        %2719 = vdwg.mxu0
        %v2720 = vmax.f32 %v2717, 0.0
        %s2721 = scalar_lea.vmem %s12, 128
        %v2722 = vld [vmem:[%s2721] sm:$0xff]
        %v2723 = vld [vmem:[%s2721 + $0x8] sm:$0xff]
        %v2724 = vld [vmem:[%s2721 + $0x10] sm:$0xff]
        %v2725 = vld [vmem:[%s2721 + $0x18] sm:$0xff]
        %v2726 = vld [vmem:[%s2721 + $0x20] sm:$0xff]
        %v2727 = vld [vmem:[%s2721 + $0x28] sm:$0xff]
        %v2728 = vld [vmem:[%s2721 + $0x30] sm:$0xff]
        %v2729 = vld [vmem:[%s2721 + $0x38] sm:$0xff]
        %v2730 = vld [vmem:[%s2721 + $0x40] sm:$0xff]
        %v2731 = vld [vmem:[%s2721 + $0x48] sm:$0xff]
        %v2732 = vld [vmem:[%s2721 + $0x50] sm:$0xff]
        %v2733 = vld [vmem:[%s2721 + $0x58] sm:$0xff]
        %v2734 = vld [vmem:[%s2721 + $0x60] sm:$0xff]
        %v2735 = vld [vmem:[%s2721 + $0x68] sm:$0xff]
        %v2736 = vld [vmem:[%s2721 + $0x70] sm:$0xff]
        %v2737 = vld [vmem:[%s2721 + $0x78] sm:$0xff]
        %s2738 = scalar_lea.vmem %s13, 1
        %v2739 = vld [vmem:[%s2738] sm:$0x1]
        %v2741 = vlaneseq
        %v2742 = vshrl.u32 %v2741, 7
        %v2743 = vsub.s32 0, %v2742
        %v2744 = vrot.slane %v2739, %v2743
        %2746 = vmatprep.subr.mxu0 0.0
        %2747 = vmatpush1.msra.mxu0 %v2722
        %2748 = vmatprep.subr.mxu0 0.0
        %2749 = vmatpush1.msra.mxu0 %v2723
        %2750 = vmatprep.subr.mxu0 0.0
        %2751 = vmatpush1.msra.mxu0 %v2724
        %2752 = vmatprep.subr.mxu0 0.0
        %2753 = vmatpush1.msra.mxu0 %v2725
        %2754 = vmatprep.subr.mxu0 0.0
        %2755 = vmatpush1.msra.mxu0 %v2726
        %2756 = vmatprep.subr.mxu0 0.0
        %2757 = vmatpush1.msra.mxu0 %v2727
        %2758 = vmatprep.subr.mxu0 0.0
        %2759 = vmatpush1.msra.mxu0 %v2728
        %2760 = vmatprep.subr.mxu0 0.0
        %2761 = vmatpush1.msra.mxu0 %v2729
        %2762 = vmatprep.subr.mxu0 0.0
        %2763 = vmatpush1.msra.mxu0 %v2730
        %2764 = vmatprep.subr.mxu0 0.0
        %2765 = vmatpush1.msra.mxu0 %v2731
        %2766 = vmatprep.subr.mxu0 0.0
        %2767 = vmatpush1.msra.mxu0 %v2732
        %2768 = vmatprep.subr.mxu0 0.0
        %2769 = vmatpush1.msra.mxu0 %v2733
        %2770 = vmatprep.subr.mxu0 0.0
        %2771 = vmatpush1.msra.mxu0 %v2734
        %2772 = vmatprep.subr.mxu0 0.0
        %2773 = vmatpush1.msra.mxu0 %v2735
        %2774 = vmatprep.subr.mxu0 0.0
        %2775 = vmatpush1.msra.mxu0 %v2736
        %2776 = vmatprep.subr.mxu0 0.0
        %2777 = vmatpush1.msra.mxu0 %v2737
        %2778 = vmatprep.subr.mxu0 0.0
        %2779 = vmatpush1.msra.mxu0 0.0
        %2780 = vmatprep.subr.mxu0 0.0
        %2781 = vmatpush1.msra.mxu0 0.0
        %2782 = vmatprep.subr.mxu0 0.0
        %2783 = vmatpush1.msra.mxu0 0.0
        %2784 = vmatprep.subr.mxu0 0.0
        %2785 = vmatpush1.msra.mxu0 0.0
        %2786 = vmatprep.subr.mxu0 0.0
        %2787 = vmatpush1.msra.mxu0 0.0
        %2788 = vmatprep.subr.mxu0 0.0
        %2789 = vmatpush1.msra.mxu0 0.0
        %2790 = vmatprep.subr.mxu0 0.0
        %2791 = vmatpush1.msra.mxu0 0.0
        %2792 = vmatprep.subr.mxu0 0.0
        %2793 = vmatpush1.msra.mxu0 0.0
        %2794 = vmatprep.subr.mxu0 0.0
        %2795 = vmatpush1.msra.mxu0 0.0
        %2796 = vmatprep.subr.mxu0 0.0
        %2797 = vmatpush1.msra.mxu0 0.0
        %2798 = vmatprep.subr.mxu0 0.0
        %2799 = vmatpush1.msra.mxu0 0.0
        %2800 = vmatprep.subr.mxu0 0.0
        %2801 = vmatpush1.msra.mxu0 0.0
        %2802 = vmatprep.subr.mxu0 0.0
        %2803 = vmatpush1.msra.mxu0 0.0
        %2804 = vmatprep.subr.mxu0 0.0
        %2805 = vmatpush1.msra.mxu0 0.0
        %2806 = vmatprep.subr.mxu0 0.0
        %2807 = vmatpush1.msra.mxu0 0.0
        %2808 = vmatprep.subr.mxu0 0.0
        %2809 = vmatpush1.msra.mxu0 0.0
        %2810 = vmatprep.mubr.f32.mxu0 0.0
        %2811 = vmatmul.mubr.f32.gmra.mrb[0].mxu0 %v2720
        %v2812 = vpop.f32.mrb[0].mxu0
        %v2813 = vadd.f32 %v2744, %v2812
        %v2814 = vpop.f32.mrb[0].mxu0
        %2815 = vdwg.mxu0
        %v2816 = vadd.f32 %v2602, %v2813
        %v2817 = vld [vmem:[%s14] sm:$0x1]
        %v2818 = vld [vmem:[%s15] sm:$0x1]
        %v2819 = vsel %vm656, %v2816, 0.0
        %2820 = vadd.xlane.f32.xlu0 %v2819
        %v2821 = vpop.xlane.xlu0 %2820
        %v2822 = vmul.f32 %v2821, %v660
        %v2823 = vsub.f32 %v2816, %v2822
        %v2824 = vmul.f32 %v2823, %v2823
        %v2825 = vsel %vm656, %v2824, 0.0
        %2826 = vadd.xlane.f32.xlu0 %v2825
        %v2827 = vpop.xlane.xlu0 %2826
        %v2828 = vmul.f32 %v2827, %v660
        %v2829 = vadd.f32 %v2828, 1e-05
        %v2830 = vrsqrt.pop %v2829
        %v2831 = vmul.f32 %v2823, %v2830
        %v2833 = vlaneseq
        %v2834 = vshrl.u32 %v2833, 7
        %v2835 = vsub.s32 0, %v2834
        %v2836 = vrot.slane %v2817, %v2835
        %v2838 = vmul.f32 %v2831, %v2836
        %v2840 = vlaneseq
        %v2841 = vshrl.u32 %v2840, 7
        %v2842 = vsub.s32 0, %v2841
        %v2843 = vrot.slane %v2818, %v2842
        %v2845 = vadd.f32 %v2838, %v2843
        %v2846 = vsel %vm656, %v2845, 0.0
        %v2847 = vrot.slane %v2846, 4
        %v2848 = vadd.f32 %v2846, %v2847
        %v2849 = vrot.slane %v2848, 2
        %v2850 = vadd.f32 %v2848, %v2849
        %v2851 = vrot.slane %v2850, 1
        %v2852 = vadd.f32 %v2850, %v2851
        %v2853 = vrcp.pop 8.0
        %v2854 = vmul.f32 %v2852, %v2853
        %v2855 = vld [vmem:[%s16] sm:$0xff]
        %v2856 = vld [vmem:[%s16 + $0x8] sm:$0xff]
        %v2857 = vld [vmem:[%s16 + $0x10] sm:$0xff]
        %v2858 = vld [vmem:[%s16 + $0x18] sm:$0xff]
        %v2859 = vld [vmem:[%s17] sm:$0x1]
        %v2861 = vsel %vm656, %v2854, 0
        %2863 = vmatprep.subr.mxu0 0.0
        %2864 = vmatpush1.msra.mxu0 %v2855
        %2865 = vmatprep.subr.mxu0 0.0
        %2866 = vmatpush1.msra.mxu0 %v2856
        %2867 = vmatprep.subr.mxu0 0.0
        %2868 = vmatpush1.msra.mxu0 %v2857
        %2869 = vmatprep.subr.mxu0 0.0
        %2870 = vmatpush1.msra.mxu0 %v2858
        %2871 = vmatprep.subr.mxu0 0.0
        %2872 = vmatpush1.msra.mxu0 0.0
        %2873 = vmatprep.subr.mxu0 0.0
        %2874 = vmatpush1.msra.mxu0 0.0
        %2875 = vmatprep.subr.mxu0 0.0
        %2876 = vmatpush1.msra.mxu0 0.0
        %2877 = vmatprep.subr.mxu0 0.0
        %2878 = vmatpush1.msra.mxu0 0.0
        %2879 = vmatprep.subr.mxu0 0.0
        %2880 = vmatpush1.msra.mxu0 0.0
        %2881 = vmatprep.subr.mxu0 0.0
        %2882 = vmatpush1.msra.mxu0 0.0
        %2883 = vmatprep.subr.mxu0 0.0
        %2884 = vmatpush1.msra.mxu0 0.0
        %2885 = vmatprep.subr.mxu0 0.0
        %2886 = vmatpush1.msra.mxu0 0.0
        %2887 = vmatprep.subr.mxu0 0.0
        %2888 = vmatpush1.msra.mxu0 0.0
        %2889 = vmatprep.subr.mxu0 0.0
        %2890 = vmatpush1.msra.mxu0 0.0
        %2891 = vmatprep.subr.mxu0 0.0
        %2892 = vmatpush1.msra.mxu0 0.0
        %2893 = vmatprep.subr.mxu0 0.0
        %2894 = vmatpush1.msra.mxu0 0.0
        %2895 = vmatprep.subr.mxu0 0.0
        %2896 = vmatpush1.msra.mxu0 0.0
        %2897 = vmatprep.subr.mxu0 0.0
        %2898 = vmatpush1.msra.mxu0 0.0
        %2899 = vmatprep.subr.mxu0 0.0
        %2900 = vmatpush1.msra.mxu0 0.0
        %2901 = vmatprep.subr.mxu0 0.0
        %2902 = vmatpush1.msra.mxu0 0.0
        %2903 = vmatprep.subr.mxu0 0.0
        %2904 = vmatpush1.msra.mxu0 0.0
        %2905 = vmatprep.subr.mxu0 0.0
        %2906 = vmatpush1.msra.mxu0 0.0
        %2907 = vmatprep.subr.mxu0 0.0
        %2908 = vmatpush1.msra.mxu0 0.0
        %2909 = vmatprep.subr.mxu0 0.0
        %2910 = vmatpush1.msra.mxu0 0.0
        %2911 = vmatprep.subr.mxu0 0.0
        %2912 = vmatpush1.msra.mxu0 0.0
        %2913 = vmatprep.subr.mxu0 0.0
        %2914 = vmatpush1.msra.mxu0 0.0
        %2915 = vmatprep.subr.mxu0 0.0
        %2916 = vmatpush1.msra.mxu0 0.0
        %2917 = vmatprep.subr.mxu0 0.0
        %2918 = vmatpush1.msra.mxu0 0.0
        %2919 = vmatprep.subr.mxu0 0.0
        %2920 = vmatpush1.msra.mxu0 0.0
        %2921 = vmatprep.subr.mxu0 0.0
        %2922 = vmatpush1.msra.mxu0 0.0
        %2923 = vmatprep.subr.mxu0 0.0
        %2924 = vmatpush1.msra.mxu0 0.0
        %2925 = vmatprep.subr.mxu0 0.0
        %2926 = vmatpush1.msra.mxu0 0.0
        %2927 = vmatprep.mubr.f32.mxu0 0.0
        %2928 = vmatmul.mubr.f32.gmra.mrb[0].mxu0 %v2861
        %v2929 = vpop.f32.mrb[0].mxu0
        %v2930 = vadd.f32 %v2859, %v2929
        %v2931 = vpop.f32.mrb[0].mxu0
        %2932 = vdwg.mxu0
        %2933 = vst [vmem:[%s565] sm:$0x1] %v2930
        %s2934 = sand.u32 %s423, 1
        %s2935 = scalar_lea.sflag [#allocation3], %s2934
        %s2936 = sand.u32 %s423, 1
        %s2937 = scalar_lea.vmem [#allocation2], %s2936
        // Predicated region
        $region93: #{tpu_custom_call.1} parent=91 // pred_check
          %p2938 = pneg %p433
        $region94: #{tpu_custom_call.1} parent=91 // pred_check_branch
          %2940 = sbr.rel (%p2938) target = $region96
        $region95: #{tpu_custom_call.1} parent=91 // pred_region
          %s2942 = ssub.s32 16, 16
          %2943 = vsyncadd %s2935, %s2942
          %s2944 = smul.addr %s32, 16
          %s2945 = scalar_lea.hbm %s18, %s2944
          %s2947 = sshll.u32 %s2937, 4
          %s2948 = int_to_ptr.vmem [resolvable:$true] %s2947
          %2950 = dma.vmem_to_hbm [thread:$0]  %s2948, 16, %s2945, %s2935
        $region96: #{tpu_custom_call.1} parent=91 // pred_fallthru
          _
      $region92: #{tpu_custom_call.1} parent=5 // pred_fallthru
        _
      %p2951 = scmp.le.s32.totalorder 2, %s27
      // Predicated region
      $region97: #{tpu_custom_call.1} parent=5 // pred_check
        %p2952 = pneg %p2951
      $region98: #{tpu_custom_call.1} parent=5 // pred_check_branch
        %2954 = sbr.rel (%p2952) target = $region100
      $region99: #{tpu_custom_call.1} parent=5 // pred_region
        %s2955 = ssub.s32 %s27, 2
        // Predicated region
        $region101: #{tpu_custom_call.1} parent=99 // pred_check
          %p2956 = pneg %p439
        $region102: #{tpu_custom_call.1} parent=99 // pred_check_branch
          %2958 = sbr.rel (%p2956) target = $region104
        $region103: #{tpu_custom_call.1} parent=99 // pred_region
          %s2959 = sand.u32 %s424, 1
          %s2960 = scalar_lea.sflag [#allocation3], %s2959
          %s2961 = sand.u32 %s424, 1
          %s2962 = scalar_lea.vmem [#allocation2], %s2961
          %2963 = dma.done %s2960, 16
        $region104: #{tpu_custom_call.1} parent=99 // pred_fallthru
          _
      $region100: #{tpu_custom_call.1} parent=5 // pred_fallthru
        _
    $region6: #{tpu_custom_call.1} parent=1 // loop_footer
      %s31 = sadd.s32 1, %s27
    $region7: #{tpu_custom_call.1} parent=1 // loop_footer_branch
      %26 = sbr.rel target = $region3
    $region8: #{tpu_custom_call.1} parent=1 // loop_exit
      _
    %2964 = vsyncpa [#allocation3], 1
    %s2965 = scalar_lea.sflag [#allocation3], 1
    %2966 = vsyncpa %s2965, 1

</llo_original>
